<compile_context>
chip_gen: v6e
topology: v6e:2x2x1
jax: 0.10.0
libtpu: 0.0.40
codegen_flags: <defaults>
</compile_context>

<pallas_src>
import jax
import jax.numpy as jnp
from jax import lax
from jax.experimental import pallas as pl
from jax.experimental.pallas import tpu as pltpu


def _sa3d_kernel(x_ref, wvq_ref, bvq_ref, wk_ref, bk_ref, gamma_ref,
                 out_ref, attn_ref, v_scr, q_scr):
    # x_ref    : (N, C)      resident across the row-tile axis (same block index)
    # wvq_ref  : (C, C+C8)   fused [W_value | W_query] (1x1 conv weights, transposed)
    # bvq_ref  : (1, C+C8)
    # wk_ref   : (C, C8), bk_ref : (1, C8)
    # gamma_ref: (1,) in SMEM
    # out_ref  : (TJ, C)     rows j*TJ .. of the residual output
    # attn_ref : (TJ, N)     rows j*TJ .. of the attention map (lane-dense)
    # v_scr    : (N, C)  bf16   per-batch cached value projection
    # q_scr    : (N, C8) f32    per-batch cached query projection
    j = pl.program_id(1)
    tj = attn_ref.shape[0]
    c = x_ref.shape[1]

    # Per-batch V/Q projection, computed once (first row tile of each batch).
    # Safe because the row-tile grid axis is "arbitrary" (sequential per core).
    @pl.when(j == 0)
    def _():
        vq = jnp.dot(x_ref[...], wvq_ref[...],
                     preferred_element_type=jnp.float32) + bvq_ref[...]   # (N, C+C8)
        v_scr[...] = vq[:, :c].astype(v_scr.dtype)                        # (N, C) bf16
        q_scr[...] = vq[:, c:]                                            # (N, C8) f32

    row0 = pl.multiple_of(j * tj, tj)
    x_tile = x_ref[pl.ds(row0, tj), :]                      # (TJ, C) rows of this tile

    # Key projection only for this tile's rows.
    k = jnp.dot(x_tile, wk_ref[...],
                preferred_element_type=jnp.float32) + bk_ref[...]         # (TJ, C8)

    # attention_map rows == softmax(K_tile @ Q^T, axis=-1)  (no NxN transpose needed).
    s_t = lax.dot_general(k, q_scr[...], (((1,), (1,)), ((), ())),
                          preferred_element_type=jnp.float32)             # (TJ, N)
    s_max = jnp.max(s_t, axis=-1, keepdims=True)
    p = jnp.exp(s_t - s_max)
    p = p * pl.reciprocal(jnp.sum(p, axis=-1, keepdims=True), approx=True)

    attn_ref[...] = p.astype(attn_ref.dtype)                 # lane-dense (TJ, N) store

    # o = attn @ V : dominant matmul (contraction over N) -> bf16 inputs, f32 accum.
    o = jnp.dot(p.astype(jnp.bfloat16), v_scr[...],
                preferred_element_type=jnp.float32)          # (TJ, C)

    gamma = gamma_ref[0]                                     # scalar from SMEM
    # out lane width is C (<128) -> masked stores; negligible next to the attn write.
    out_ref[...] = (x_tile + gamma * o).astype(out_ref.dtype)


def _choose_row_tile(n, c, c8, attn_bytes=4, budget_bytes=18 * 1024 * 1024):
    """Largest row tile TJ dividing N whose per-step VMEM estimate fits the budget.

    Budget is sized so the kernel also fits v7x (64 MiB physical VMEM, half of v5e/v6e).
    """
    for tj in (2048, 1024, 512, 256, 128, 64, 32, 16, 8):
        if n % tj:
            continue
        est = (2 * tj * n * attn_bytes          # double-buffered attn output tile
               + 3 * tj * n * 4                 # s_t / p intermediates (+ bf16 copy)
               + 2 * n * c * 4                  # resident x window (double-buffered)
               + n * (c + c8) * 4               # vq temporary at j == 0
               + n * c * 2 + n * c8 * 4)        # V (bf16) / Q (f32) scratch caches
        if est <= budget_bytes:
            return tj
    return n  # N not a multiple of 8 (or tiny): single tile


def self_attention_3d(x, wq, bq, wk, bk, wv, bv, gamma, *,
                      row_tile=None, attn_dtype=jnp.float32):
    """x: (B, C, D, H, W) float32 (NCDHW, like the PyTorch module).

    wq/wk: (C, C//8) transposed 1x1-conv weights, bq/bk: (1, C//8)
    wv:    (C, C)    transposed 1x1-conv weight,  bv:    (1, C)
    gamma: (1,) scalar parameter.
    Returns (out (B,C,D,H,W), attention_map (B, N, N)) with N = D*H*W.
    """
    B, C, D, H, W = x.shape
    N = D * H * W
    C8 = wq.shape[1]

    # NCDHW -> channels-last (B, N, C): spatial -> sublanes, channels -> lanes.
    x_nc = jnp.transpose(x.reshape(B, C, N), (0, 2, 1)).astype(jnp.float32)

    # Fuse the two full-N projections (value, query) into one weight/bias.
    w_vq = jnp.concatenate([wv, wq], axis=1).astype(jnp.float32)   # (C, C + C8)
    b_vq = jnp.concatenate([bv, bq], axis=1).astype(jnp.float32)   # (1, C + C8)
    gamma_s = jnp.reshape(gamma, (1,)).astype(jnp.float32)

    tj = _choose_row_tile(N, C, C8) if row_tile is None else row_tile
    if N % tj != 0:
        raise ValueError(f"row_tile={tj} must divide N={N}")

    out_nc, attn = pl.pallas_call(
        _sa3d_kernel,
        out_shape=(
            jax.ShapeDtypeStruct((B, N, C), jnp.float32),
            jax.ShapeDtypeStruct((B, N, N), attn_dtype),
        ),
        grid_spec=pltpu.PrefetchScalarGridSpec(
            num_scalar_prefetch=0,
            grid=(B, N // tj),
            in_specs=[
                pl.BlockSpec((None, N, C), lambda b, j: (b, 0, 0)),    # x, resident over j
                pl.BlockSpec((C, C + C8), lambda b, j: (0, 0)),        # fused W_vq
                pl.BlockSpec((1, C + C8), lambda b, j: (0, 0)),        # fused b_vq
                pl.BlockSpec((C, C8), lambda b, j: (0, 0)),            # wk
                pl.BlockSpec((1, C8), lambda b, j: (0, 0)),            # bk
                pl.BlockSpec(memory_space=pltpu.MemorySpace.SMEM),     # gamma (scalar)
            ],
            out_specs=[
                pl.BlockSpec((None, tj, C), lambda b, j: (b, j, 0)),   # out rows
                pl.BlockSpec((None, tj, N), lambda b, j: (b, j, 0)),   # attn rows (lane-dense)
            ],
            scratch_shapes=[
                pltpu.VMEM((N, C), jnp.bfloat16),    # cached V projection (per batch)
                pltpu.VMEM((N, C8), jnp.float32),    # cached Q projection (per batch)
            ],
        ),
        compiler_params=pltpu.CompilerParams(
            dimension_semantics=("parallel", "arbitrary"),
            vmem_limit_bytes=48 * 1024 * 1024,
        ),
    )(x_nc, w_vq, b_vq, wk, bk, gamma_s)

    # (B, N, C) -> NCDHW
    out = jnp.transpose(out_nc, (0, 2, 1)).reshape(B, C, D, H, W)
    return out, attn


def _reference(x, wq, bq, wk, bk, wv, bv, gamma):
    """Pure-JAX f32 reference mirroring the PyTorch forward."""
    B, C, D, H, W = x.shape
    N = D * H * W
    xf = x.reshape(B, C, N)                                   # (B, C, N)
    q = jnp.einsum('bcn,ck->bkn', xf, wq) + bq.T[None]        # (B, C8, N)
    k = jnp.einsum('bcn,ck->bkn', xf, wk) + bk.T[None]        # (B, C8, N)
    v = jnp.einsum('bcn,ck->bkn', xf, wv) + bv.T[None]        # (B, C, N)
    s = jnp.einsum('bki,bkj->bij', q, k)                      # (B, N, N)
    a_t = jax.nn.softmax(s, axis=-2)                          # softmax over dim=-2
    attn = jnp.transpose(a_t, (0, 2, 1))
    o = jnp.einsum('bci,bij->bcj', v, a_t)                    # (B, C, N)
    out = x + gamma[0] * o.reshape(B, C, D, H, W)
    return out, attn


if __name__ == "__main__":
    key = jax.random.PRNGKey(0)
    B, C, D, H, W = 2, 16, 8, 8, 8          # in_dim=16 -> C//8 = 2 ; N = 512
    C8 = C // 8

    k_x, k_wq, k_bq, k_wk, k_bk, k_wv, k_bv = jax.random.split(key, 7)
    x = jax.random.normal(k_x, (B, C, D, H, W), dtype=jnp.float32)

    # Conv3d(kernel_size=1) weights (C_out, C_in, 1, 1, 1) stored transposed as (C_in, C_out)
    wq = 0.1 * jax.random.normal(k_wq, (C, C8), dtype=jnp.float32)
    bq = 0.1 * jax.random.normal(k_bq, (1, C8), dtype=jnp.float32)
    wk = 0.1 * jax.random.normal(k_wk, (C, C8), dtype=jnp.float32)
    bk = 0.1 * jax.random.normal(k_bk, (1, C8), dtype=jnp.float32)
    wv = 0.1 * jax.random.normal(k_wv, (C, C), dtype=jnp.float32)
    bv = 0.1 * jax.random.normal(k_bv, (1, C), dtype=jnp.float32)
    # The module initializes gamma to 0; use a non-zero value here so the
    # residual/attention path is actually exercised by the correctness check.
    gamma = jnp.full((1,), 0.3, dtype=jnp.float32)

    # row_tile=128 -> grid (B=2, N//128=4): exercises the tiled + cached-projection path.
    out, attn = self_attention_3d(x, wq, bq, wk, bk, wv, bv, gamma, row_tile=128)
    out = jax.block_until_ready(out)
    attn = jax.block_until_ready(attn)

    out_ref, attn_ref = _reference(x, wq, bq, wk, bk, wv, bv, gamma)
    assert out.shape == (B, C, D, H, W)
    assert attn.shape == (B, D * H * W, D * H * W)
    # attn is f32 end-to-end (only the approx softmax reciprocal differs);
    # out additionally carries the bf16 attn@V matmul error.
    assert jnp.allclose(attn, attn_ref, atol=2e-4, rtol=1e-3), \
        float(jnp.max(jnp.abs(attn - attn_ref)))
    assert jnp.allclose(out, out_ref, atol=5e-3, rtol=1e-3), \
        float(jnp.max(jnp.abs(out - out_ref)))

    print("KERNEL_OK")
</pallas_src>

<mosaic_0001>
module attributes {stable_mosaic.version = 11 : i64} {
  func.func @_sa3d_kernel(%arg0: i32, %arg1: i32, %arg2: memref<1x512x16xf32, #tpu.memory_space<vmem>>, %arg3: memref<16x18xf32, #tpu.memory_space<vmem>>, %arg4: memref<1x18xf32, #tpu.memory_space<vmem>>, %arg5: memref<16x2xf32, #tpu.memory_space<vmem>>, %arg6: memref<1x2xf32, #tpu.memory_space<vmem>>, %arg7: memref<1xf32, #tpu.memory_space<smem>>, %arg8: memref<1x128x16xf32, #tpu.memory_space<vmem>>, %arg9: memref<1x128x512xf32, #tpu.memory_space<vmem>>, %arg10: memref<512x16xbf16, #tpu.memory_space<vmem>>, %arg11: memref<512x2xf32, #tpu.memory_space<vmem>>) attributes {dimension_semantics = [#tpu.dimension_semantics<parallel>, #tpu.dimension_semantics<arbitrary>], iteration_bounds = array<i64: 2, 4>, scalar_prefetch = 0 : i64, scratch_operands = 2 : i64, tpu.core_type = #tpu.core_type<tc>, window_params = [{transform_indices = @transform_0, window_bounds = array<i64: 1, 512, 16>}, {pipeline_mode = #tpu.pipeline_mode<synchronous>, transform_indices = @transform_1, window_bounds = array<i64: 16, 18>}, {pipeline_mode = #tpu.pipeline_mode<synchronous>, transform_indices = @transform_2, window_bounds = array<i64: 1, 18>}, {pipeline_mode = #tpu.pipeline_mode<synchronous>, transform_indices = @transform_3, window_bounds = array<i64: 16, 2>}, {pipeline_mode = #tpu.pipeline_mode<synchronous>, transform_indices = @transform_4, window_bounds = array<i64: 1, 2>}, {transform_indices = @transform_5, window_bounds = array<i64: 1>}, {transform_indices = @transform_6, window_bounds = array<i64: 1, 128, 16>}, {transform_indices = @transform_7, window_bounds = array<i64: 1, 128, 512>}]} {
    %c0_i32 = arith.constant 0 : i32
    %0 = arith.cmpi eq, %arg1, %c0_i32 : i32
    %1 = arith.extui %0 : i1 to i32
    %c0_i32_0 = arith.constant 0 : i32
    %2 = arith.cmpi ne, %1, %c0_i32_0 : i32
    scf.if %2 {
      %c0_21 = arith.constant 0 : index
      %c0_22 = arith.constant 0 : index
      %c0_23 = arith.constant 0 : index
      %38 = vector.load %arg2[%c0_21, %c0_22, %c0_23] : memref<1x512x16xf32, #tpu.memory_space<vmem>>, vector<1x512x16xf32>
      %39 = vector.shape_cast %38 : vector<1x512x16xf32> to vector<512x16xf32>
      %c0_24 = arith.constant 0 : index
      %c0_25 = arith.constant 0 : index
      %40 = vector.load %arg3[%c0_24, %c0_25] : memref<16x18xf32, #tpu.memory_space<vmem>>, vector<16x18xf32>
      %cst_26 = arith.constant dense<0.000000e+00> : vector<512x18xf32>
      %41 = tpu.matmul %39, %40, %cst_26 {dimension_numbers = #tpu.dot_dimension_numbers<[1], [0], [0], [1], [0, 0, 1, 1], [], []>} : vector<512x16xf32>, vector<16x18xf32>, vector<512x18xf32> -> vector<512x18xf32>
      %c0_27 = arith.constant 0 : index
      %c0_28 = arith.constant 0 : index
      %42 = vector.load %arg4[%c0_27, %c0_28] : memref<1x18xf32, #tpu.memory_space<vmem>>, vector<1x18xf32>
      %43 = vector.broadcast %42 : vector<1x18xf32> to vector<512x18xf32>
      %44 = arith.addf %41, %43 : vector<512x18xf32>
      %45 = vector.extract_strided_slice %44 {offsets = [0, 0], sizes = [512, 16], strides = [1, 1]} : vector<512x18xf32> to vector<512x16xf32>
      %46 = arith.truncf %45 : vector<512x16xf32> to vector<512x16xbf16>
      %c0_29 = arith.constant 0 : index
      %c0_30 = arith.constant 0 : index
      %47 = vector.load %arg10[%c0_29, %c0_30] : memref<512x16xbf16, #tpu.memory_space<vmem>>, vector<512x16xbf16>
      tpu.vector_store %arg10[%c0_29, %c0_30], %46 {strides = array<i32>} : memref<512x16xbf16, #tpu.memory_space<vmem>>, vector<512x16xbf16>,
      %48 = vector.extract_strided_slice %44 {offsets = [0, 16], sizes = [512, 2], strides = [1, 1]} : vector<512x18xf32> to vector<512x2xf32>
      %c0_31 = arith.constant 0 : index
      %c0_32 = arith.constant 0 : index
      %49 = vector.load %arg11[%c0_31, %c0_32] : memref<512x2xf32, #tpu.memory_space<vmem>>, vector<512x2xf32>
      tpu.vector_store %arg11[%c0_31, %c0_32], %48 {strides = array<i32>} : memref<512x2xf32, #tpu.memory_space<vmem>>, vector<512x2xf32>,
    } else {
    }
    %c128_i32 = arith.constant 128 : i32
    %3 = arith.muli %arg1, %c128_i32 : i32
    %4 = tpu.assume_multiple %3, 128 : i32
    %c0 = arith.constant 0 : index
    %5 = arith.index_cast %4 : i32 to index
    %c0_1 = arith.constant 0 : index
    %6 = vector.load %arg2[%c0, %5, %c0_1] : memref<1x512x16xf32, #tpu.memory_space<vmem>>, vector<1x128x16xf32>
    %7 = vector.shape_cast %6 : vector<1x128x16xf32> to vector<128x16xf32>
    %c0_2 = arith.constant 0 : index
    %c0_3 = arith.constant 0 : index
    %8 = vector.load %arg5[%c0_2, %c0_3] : memref<16x2xf32, #tpu.memory_space<vmem>>, vector<16x2xf32>
    %cst = arith.constant dense<0.000000e+00> : vector<128x2xf32>
    %9 = tpu.matmul %7, %8, %cst {dimension_numbers = #tpu.dot_dimension_numbers<[1], [0], [0], [1], [0, 0, 1, 1], [], []>} : vector<128x16xf32>, vector<16x2xf32>, vector<128x2xf32> -> vector<128x2xf32>
    %c0_4 = arith.constant 0 : index
    %c0_5 = arith.constant 0 : index
    %10 = vector.load %arg6[%c0_4, %c0_5] : memref<1x2xf32, #tpu.memory_space<vmem>>, vector<1x2xf32>
    %11 = vector.broadcast %10 : vector<1x2xf32> to vector<128x2xf32>
    %12 = arith.addf %9, %11 : vector<128x2xf32>
    %c0_6 = arith.constant 0 : index
    %c0_7 = arith.constant 0 : index
    %13 = vector.load %arg11[%c0_6, %c0_7] : memref<512x2xf32, #tpu.memory_space<vmem>>, vector<512x2xf32>
    %cst_8 = arith.constant dense<0.000000e+00> : vector<128x512xf32>
    %14 = tpu.matmul %12, %13, %cst_8 {dimension_numbers = #tpu.dot_dimension_numbers<[1], [1], [0], [0], [0, 0, 1, 0], [], []>} : vector<128x2xf32>, vector<512x2xf32>, vector<128x512xf32> -> vector<128x512xf32>
    %cst_9 = arith.constant dense<0xFF800000> : vector<128xf32>
    %15 = vector.multi_reduction <maximumf>, %14, %cst_9 [1] : vector<128x512xf32> to vector<128xf32>
    %16 = vector.shape_cast %15 : vector<128xf32> to vector<128x1xf32>
    %17 = vector.broadcast %16 : vector<128x1xf32> to vector<128x512xf32>
    %18 = arith.subf %14, %17 : vector<128x512xf32>
    %19 = math.exp %18 : vector<128x512xf32>
    %cst_10 = arith.constant dense<0.000000e+00> : vector<128xf32>
    %20 = vector.multi_reduction <add>, %19, %cst_10 [1] : vector<128x512xf32> to vector<128xf32>
    %21 = vector.shape_cast %20 : vector<128xf32> to vector<128x1xf32>
    %22 = tpu.reciprocal %21 {approx = true} : vector<128x1xf32> -> vector<128x1xf32>
    %23 = vector.broadcast %22 : vector<128x1xf32> to vector<128x512xf32>
    %24 = arith.mulf %19, %23 : vector<128x512xf32>
    %c0_11 = arith.constant 0 : index
    %c0_12 = arith.constant 0 : index
    %c0_13 = arith.constant 0 : index
    %25 = vector.load %arg9[%c0_11, %c0_12, %c0_13] : memref<1x128x512xf32, #tpu.memory_space<vmem>>, vector<1x128x512xf32>
    %26 = vector.shape_cast %25 : vector<1x128x512xf32> to vector<128x512xf32>
    %27 = vector.shape_cast %24 : vector<128x512xf32> to vector<1x128x512xf32>
    tpu.vector_store %arg9[%c0_11, %c0_12, %c0_13], %27 {strides = array<i32>} : memref<1x128x512xf32, #tpu.memory_space<vmem>>, vector<1x128x512xf32>,
    %28 = arith.truncf %24 : vector<128x512xf32> to vector<128x512xbf16>
    %c0_14 = arith.constant 0 : index
    %c0_15 = arith.constant 0 : index
    %29 = vector.load %arg10[%c0_14, %c0_15] : memref<512x16xbf16, #tpu.memory_space<vmem>>, vector<512x16xbf16>
    %cst_16 = arith.constant dense<0.000000e+00> : vector<128x16xf32>
    %30 = tpu.matmul %28, %29, %cst_16 {dimension_numbers = #tpu.dot_dimension_numbers<[1], [0], [0], [1], [0, 0, 1, 1], [], []>} : vector<128x512xbf16>, vector<512x16xbf16>, vector<128x16xf32> -> vector<128x16xf32>
    %c0_17 = arith.constant 0 : index
    %31 = memref.load %arg7[%c0_17] : memref<1xf32, #tpu.memory_space<smem>>
    %32 = vector.broadcast %31 : f32 to vector<128x16xf32>
    %33 = arith.mulf %32, %30 : vector<128x16xf32>
    %34 = arith.addf %7, %33 : vector<128x16xf32>
    %c0_18 = arith.constant 0 : index
    %c0_19 = arith.constant 0 : index
    %c0_20 = arith.constant 0 : index
    %35 = vector.load %arg8[%c0_18, %c0_19, %c0_20] : memref<1x128x16xf32, #tpu.memory_space<vmem>>, vector<1x128x16xf32>
    %36 = vector.shape_cast %35 : vector<1x128x16xf32> to vector<128x16xf32>
    %37 = vector.shape_cast %34 : vector<128x16xf32> to vector<1x128x16xf32>
    tpu.vector_store %arg8[%c0_18, %c0_19, %c0_20], %37 {strides = array<i32>} : memref<1x128x16xf32, #tpu.memory_space<vmem>>, vector<1x128x16xf32>,
    return
  }
  func.func @transform_0(%arg0: i32, %arg1: i32) -> (i32, i32, i32) {
    %c0_i32 = arith.constant 0 : i32
    %c0_i32_0 = arith.constant 0 : i32
    %c0_i32_1 = arith.constant 0 : i32
    return %arg0, %c0_i32, %c0_i32_0 : i32, i32, i32
  }
  func.func @transform_1(%arg0: i32, %arg1: i32) -> (i32, i32) {
    %c0_i32 = arith.constant 0 : i32
    %c0_i32_0 = arith.constant 0 : i32
    %c0_i32_1 = arith.constant 0 : i32
    return %c0_i32, %c0_i32_0 : i32, i32
  }
  func.func @transform_2(%arg0: i32, %arg1: i32) -> (i32, i32) {
    %c0_i32 = arith.constant 0 : i32
    %c0_i32_0 = arith.constant 0 : i32
    %c0_i32_1 = arith.constant 0 : i32
    return %c0_i32, %c0_i32_0 : i32, i32
  }
  func.func @transform_3(%arg0: i32, %arg1: i32) -> (i32, i32) {
    %c0_i32 = arith.constant 0 : i32
    %c0_i32_0 = arith.constant 0 : i32
    %c0_i32_1 = arith.constant 0 : i32
    return %c0_i32, %c0_i32_0 : i32, i32
  }
  func.func @transform_4(%arg0: i32, %arg1: i32) -> (i32, i32) {
    %c0_i32 = arith.constant 0 : i32
    %c0_i32_0 = arith.constant 0 : i32
    %c0_i32_1 = arith.constant 0 : i32
    return %c0_i32, %c0_i32_0 : i32, i32
  }
  func.func @transform_5(%arg0: i32, %arg1: i32) -> i32 {
    %c0_i32 = arith.constant 0 : i32
    %c0_i32_0 = arith.constant 0 : i32
    return %c0_i32 : i32
  }
  func.func @transform_6(%arg0: i32, %arg1: i32) -> (i32, i32, i32) {
    %c0_i32 = arith.constant 0 : i32
    %c0_i32_0 = arith.constant 0 : i32
    return %arg0, %arg1, %c0_i32 : i32, i32, i32
  }
  func.func @transform_7(%arg0: i32, %arg1: i32) -> (i32, i32, i32) {
    %c0_i32 = arith.constant 0 : i32
    %c0_i32_0 = arith.constant 0 : i32
    return %arg0, %arg1, %c0_i32 : i32, i32, i32
  }
}

</mosaic_0001>

<llo_original>
// kernel: tpu_custom_call.1
$region0: #{tpu_custom_call.1}
  #allocation0 [shape = 'u32[]', space=smem, size = 0x4, offset = 0x4, fixed_abs, tag = 'smem constant byte address 0x4 - core index']
  #allocation1 [shape = 'u32[144,128]{1,0:T(1,128)}', space=vmem, size = 0x12000, scoped, tag = 'internal scratch']
  #allocation2 [shape = 'bf16[512,16]{1,0:T(8,128)(2,1)}', space=vmem, size = 0x20000, scoped, tag = 'scratch operand']
  #allocation3 [shape = 'f32[512,2]{1,0:T(8,128)}', space=vmem, size = 0x40000, scoped, tag = 'scratch operand']
  #allocation4 [shape = 'f32[1]{0:T(128)S(6)}', space=smem, size = 0x200, scoped, tag = 'scoped memory for tpu_custom_call.1']
  %s0 = inlined_call_operand.vmem [shape: f32[2,512,16], index: 0, kind: input, shape index: {}]
  %s1 = inlined_call_operand.hbm [shape: f32[16,18], index: 1, kind: input, shape index: {}]
  %s2 = inlined_call_operand.hbm [shape: f32[1,18], index: 2, kind: input, shape index: {}]
  %s3 = inlined_call_operand.vmem [shape: f32[16,2], index: 3, kind: input, shape index: {}]
  %s4 = inlined_call_operand.hbm [shape: f32[1,2], index: 4, kind: input, shape index: {}]
  %s5 = inlined_call_operand.<no memory space> [shape: f32[1], index: 5, kind: input, shape index: {}]
  %s6 = inlined_call_operand.vmem [shape: f32[2,512,16], index: 6, kind: output, shape index: {0}]
  %s7 = inlined_call_operand.hbm [shape: f32[2,512,512], index: 7, kind: output, shape index: {1}]
  %8 = xla_tuple %s6, %s7
  %s9 = sld [smem:[#allocation0]]
  $region81: #{tpu_custom_call.1} parent=0
    _
  %s11 = ssub.s32 1, %s9
  %s12 = scalar_select 0, %s11, %s9
  %13 = sst [smem:[#allocation4]] %s5
  $region1: #{tpu_custom_call.1} parent=0
    #allocation5 [shape = 'u8[8192]{0}', space=vmem, size = 0x2000, scoped, tag = 'input window, operand 1, single buffered']
    #allocation6 [shape = 's32[2]{0}', space=sflag, size = 0x8, scoped, tag = 'scoped memory for tpu_custom_call.1']
    #allocation7 [shape = 's32[2]{0}', space=sflag, size = 0x8, scoped, tag = 'scoped memory for tpu_custom_call.1']
    #allocation8 [shape = 'u8[512]{0}', space=vmem, size = 0x400, scoped, tag = 'input window, operand 2, single buffered']
    #allocation9 [shape = 's32[1]{0}', space=sflag, size = 0x4, scoped, tag = 'scoped memory for tpu_custom_call.1']
    #allocation10 [shape = 'u8[512]{0}', space=vmem, size = 0x400, scoped, tag = 'input window, operand 4, single buffered']
    #allocation11 [shape = 'u8[524288]{0}', space=vmem, size = 0x80000, scoped, tag = 'output window, operand 1']
    %14 = vsyncpa [#allocation6], 0
    %15 = vsyncpa [#allocation9], 0
    %16 = vsyncpa [#allocation7], 0
    %s17 = scalar_lea.sflag [#allocation7], 1
    %18 = vsyncpa %s17, 0
    loop: start=0, step=1, limit=10
    $region2: #{tpu_custom_call.1} parent=1 // loop_pre_header
      _
    $region3: #{tpu_custom_call.1} parent=1 // loop_header
      %s20 = sphi 0, %s24
      %p21 = scmp.ge.s32.totalorder %s20, 10
      %s27 = sphi 0, %s39
      %s28 = sphi 0, %s35
      %s29 = sphi 0, %s27
      %s30 = sphi 0, %s28
      %s31 = sphi 0, %s29
      %s32 = sphi 0, %s30
      %s42 = sphi 0, %s44
      %s45 = sphi 0, %s42
      %s46 = sphi 0, %s45
      %s62 = sphi 0, %s46
      %s66 = sphi 0, %s66
      %s68 = sphi 0, %s66
      %s69 = sphi 0, %s68
      %s83 = sphi 0, %s69
      %s87 = sphi 0, %s87
      %s89 = sphi 0, %s87
      %s90 = sphi 0, %s89
      %s104 = sphi 0, %s90
      %s108 = sphi 0, %s108
      %s110 = sphi 0, %s108
      %s111 = sphi 0, %s110
      %s125 = sphi 0, %s111
      %s129 = sphi 0, %s129
      %s131 = sphi 0, %s129
      %s132 = sphi 0, %s131
      %s146 = sphi 0, %s132
      %s150 = sphi 0, %s150
      %s152 = sphi 0, %s150
      %s153 = sphi 0, %s152
      %s167 = sphi 0, %s153
      %s175 = sphi 0, %s177
      %s178 = sphi 0, %s175
      %s179 = sphi 0, %s178
      %s195 = sphi 0, %s179
      %s203 = sphi 0, %s205
      %s206 = sphi 0, %s203
      %s207 = sphi 0, %s206
      %s223 = sphi 0, %s207
    $region4: #{tpu_custom_call.1} parent=1 // loop_header_branch
      %23 = sbr.rel (%p21) target = $region8
    $region5: #{tpu_custom_call.1} parent=1 // loop_body
      %s25 = ssub.s32 %s20, 1
      %s26 = ssub.s32 %s20, 2
      %s33 = sadd.s32 1, %s28
      %p34 = scmp.ge.s32.totalorder %s33, 4
      %s35 = scalar_select %p34, 0, %s33
      %s36 = sadd.s32 1, %s27
      %s37 = scalar_select %p34, %s36, %s27
      %p38 = scmp.ge.s32.totalorder %s37, 2
      %s39 = scalar_select %p38, 0, %s37
      %s40 = ssub.s32 %s27, %s39
      %p41 = scmp.eq.s32.totalorder %s40, 0
      %s43 = sadd.s32 %s42, 1
      %s44 = scalar_select %p41, %s42, %s43
      %p47 = pneg %p41
      %p48 = scmp.eq.s32.totalorder %s20, 7
      %p49 = por %p47, %p48
      %p50 = scmp.ne.s32.totalorder %s42, %s45
      %p51 = scmp.eq.s32.totalorder %s20, 0
      %p52 = por %p50, %p51
      %p53 = scmp.ne.s32.totalorder %s42, %s45
      %p54 = scmp.eq.s32.totalorder %s25, 7
      %p55 = por %p53, %p54
      %p56 = scmp.ne.s32.totalorder %s45, %s46
      %p57 = scmp.eq.s32.totalorder %s25, 0
      %p58 = por %p56, %p57
      %p59 = scmp.ne.s32.totalorder %s45, %s46
      %p60 = scmp.eq.s32.totalorder %s26, 7
      %p61 = por %p59, %p60
      %p63 = scmp.ne.s32.totalorder %s46, %s62
      %p64 = scmp.eq.s32.totalorder %s26, 0
      %p65 = por %p63, %p64
      %s67 = sadd.s32 %s66, 1
      %p70 = scmp.eq.s32.totalorder %s20, 7
      %p71 = scmp.ne.s32.totalorder %s66, %s68
      %p72 = scmp.eq.s32.totalorder %s20, 0
      %p73 = por %p71, %p72
      %p74 = scmp.ne.s32.totalorder %s66, %s68
      %p75 = scmp.eq.s32.totalorder %s25, 7
      %p76 = por %p74, %p75
      %p77 = scmp.ne.s32.totalorder %s68, %s69
      %p78 = scmp.eq.s32.totalorder %s25, 0
      %p79 = por %p77, %p78
      %p80 = scmp.ne.s32.totalorder %s68, %s69
      %p81 = scmp.eq.s32.totalorder %s26, 7
      %p82 = por %p80, %p81
      %p84 = scmp.ne.s32.totalorder %s69, %s83
      %p85 = scmp.eq.s32.totalorder %s26, 0
      %p86 = por %p84, %p85
      %s88 = sadd.s32 %s87, 1
      %p91 = scmp.eq.s32.totalorder %s20, 7
      %p92 = scmp.ne.s32.totalorder %s87, %s89
      %p93 = scmp.eq.s32.totalorder %s20, 0
      %p94 = por %p92, %p93
      %p95 = scmp.ne.s32.totalorder %s87, %s89
      %p96 = scmp.eq.s32.totalorder %s25, 7
      %p97 = por %p95, %p96
      %p98 = scmp.ne.s32.totalorder %s89, %s90
      %p99 = scmp.eq.s32.totalorder %s25, 0
      %p100 = por %p98, %p99
      %p101 = scmp.ne.s32.totalorder %s89, %s90
      %p102 = scmp.eq.s32.totalorder %s26, 7
      %p103 = por %p101, %p102
      %p105 = scmp.ne.s32.totalorder %s90, %s104
      %p106 = scmp.eq.s32.totalorder %s26, 0
      %p107 = por %p105, %p106
      %s109 = sadd.s32 %s108, 1
      %p112 = scmp.eq.s32.totalorder %s20, 7
      %p113 = scmp.ne.s32.totalorder %s108, %s110
      %p114 = scmp.eq.s32.totalorder %s20, 0
      %p115 = por %p113, %p114
      %p116 = scmp.ne.s32.totalorder %s108, %s110
      %p117 = scmp.eq.s32.totalorder %s25, 7
      %p118 = por %p116, %p117
      %p119 = scmp.ne.s32.totalorder %s110, %s111
      %p120 = scmp.eq.s32.totalorder %s25, 0
      %p121 = por %p119, %p120
      %p122 = scmp.ne.s32.totalorder %s110, %s111
      %p123 = scmp.eq.s32.totalorder %s26, 7
      %p124 = por %p122, %p123
      %p126 = scmp.ne.s32.totalorder %s111, %s125
      %p127 = scmp.eq.s32.totalorder %s26, 0
      %p128 = por %p126, %p127
      %s130 = sadd.s32 %s129, 1
      %p133 = scmp.eq.s32.totalorder %s20, 7
      %p134 = scmp.ne.s32.totalorder %s129, %s131
      %p135 = scmp.eq.s32.totalorder %s20, 0
      %p136 = por %p134, %p135
      %p137 = scmp.ne.s32.totalorder %s129, %s131
      %p138 = scmp.eq.s32.totalorder %s25, 7
      %p139 = por %p137, %p138
      %p140 = scmp.ne.s32.totalorder %s131, %s132
      %p141 = scmp.eq.s32.totalorder %s25, 0
      %p142 = por %p140, %p141
      %p143 = scmp.ne.s32.totalorder %s131, %s132
      %p144 = scmp.eq.s32.totalorder %s26, 7
      %p145 = por %p143, %p144
      %p147 = scmp.ne.s32.totalorder %s132, %s146
      %p148 = scmp.eq.s32.totalorder %s26, 0
      %p149 = por %p147, %p148
      %s151 = sadd.s32 %s150, 1
      %p154 = scmp.eq.s32.totalorder %s20, 7
      %p155 = scmp.ne.s32.totalorder %s150, %s152
      %p156 = scmp.eq.s32.totalorder %s20, 0
      %p157 = por %p155, %p156
      %p158 = scmp.ne.s32.totalorder %s150, %s152
      %p159 = scmp.eq.s32.totalorder %s25, 7
      %p160 = por %p158, %p159
      %p161 = scmp.ne.s32.totalorder %s152, %s153
      %p162 = scmp.eq.s32.totalorder %s25, 0
      %p163 = por %p161, %p162
      %p164 = scmp.ne.s32.totalorder %s152, %s153
      %p165 = scmp.eq.s32.totalorder %s26, 7
      %p166 = por %p164, %p165
      %p168 = scmp.ne.s32.totalorder %s153, %s167
      %p169 = scmp.eq.s32.totalorder %s26, 0
      %p170 = por %p168, %p169
      %s171 = ssub.s32 %s27, %s39
      %s172 = ssub.s32 %s28, %s35
      %s173 = sor.u32 %s171, %s172
      %p174 = scmp.eq.s32.totalorder %s173, 0
      %s176 = sadd.s32 %s175, 1
      %s177 = scalar_select %p174, %s175, %s176
      %p180 = pneg %p174
      %p181 = scmp.eq.s32.totalorder %s20, 7
      %p182 = por %p180, %p181
      %p183 = scmp.ne.s32.totalorder %s175, %s178
      %p184 = scmp.eq.s32.totalorder %s20, 0
      %p185 = por %p183, %p184
      %p186 = scmp.ne.s32.totalorder %s175, %s178
      %p187 = scmp.eq.s32.totalorder %s25, 7
      %p188 = por %p186, %p187
      %p189 = scmp.ne.s32.totalorder %s178, %s179
      %p190 = scmp.eq.s32.totalorder %s25, 0
      %p191 = por %p189, %p190
      %p192 = scmp.ne.s32.totalorder %s178, %s179
      %p193 = scmp.eq.s32.totalorder %s26, 7
      %p194 = por %p192, %p193
      %p196 = scmp.ne.s32.totalorder %s179, %s195
      %p197 = scmp.eq.s32.totalorder %s26, 0
      %p198 = por %p196, %p197
      %s199 = ssub.s32 %s27, %s39
      %s200 = ssub.s32 %s28, %s35
      %s201 = sor.u32 %s199, %s200
      %p202 = scmp.eq.s32.totalorder %s201, 0
      %s204 = sadd.s32 %s203, 1
      %s205 = scalar_select %p202, %s203, %s204
      %p208 = pneg %p202
      %p209 = scmp.eq.s32.totalorder %s20, 7
      %p210 = por %p208, %p209
      %p211 = scmp.ne.s32.totalorder %s203, %s206
      %p212 = scmp.eq.s32.totalorder %s20, 0
      %p213 = por %p211, %p212
      %p214 = scmp.ne.s32.totalorder %s203, %s206
      %p215 = scmp.eq.s32.totalorder %s25, 7
      %p216 = por %p214, %p215
      %p217 = scmp.ne.s32.totalorder %s206, %s207
      %p218 = scmp.eq.s32.totalorder %s25, 0
      %p219 = por %p217, %p218
      %p220 = scmp.ne.s32.totalorder %s206, %s207
      %p221 = scmp.eq.s32.totalorder %s26, 7
      %p222 = por %p220, %p221
      %p224 = scmp.ne.s32.totalorder %s207, %s223
      %p225 = scmp.eq.s32.totalorder %s26, 0
      %p226 = por %p224, %p225
      %p227 = scmp.le.s32.totalorder 1, %s20
      %p228 = scmp.lt.s32.totalorder %s20, 9
      %p229 = pnand %p227, %p228
      %p230 = pneg %p229
      // Predicated region
      $region9: #{tpu_custom_call.1} parent=5 // pred_check
        _
      $region10: #{tpu_custom_call.1} parent=5 // pred_check_branch
        %232 = sbr.rel (%p229) target = $region12
      $region11: #{tpu_custom_call.1} parent=5 // pred_region
        %s233 = ssub.s32 %s20, 1
        // Predicated region
        $region13: #{tpu_custom_call.1} parent=11 // pred_check
          %p234 = pneg %p79
        $region14: #{tpu_custom_call.1} parent=11 // pred_check_branch
          %236 = sbr.rel (%p234) target = $region16
        $region15: #{tpu_custom_call.1} parent=11 // pred_region
          %s238 = ssub.s32 256, 256
          %239 = vsyncadd [#allocation6], %s238
          %s240 = sshll.u32 [#allocation5], 4
          %s241 = int_to_ptr.vmem [resolvable:$true] %s240
          %246 = dma.hbm_to_vmem [thread:$0]  %s1, 256, %s241, [#allocation6], 128, 128, 8
        $region16: #{tpu_custom_call.1} parent=11 // pred_fallthru
          _
        // Predicated region
        $region17: #{tpu_custom_call.1} parent=11 // pred_check
          %p247 = pneg %p100
        $region18: #{tpu_custom_call.1} parent=11 // pred_check_branch
          %249 = sbr.rel (%p247) target = $region20
        $region19: #{tpu_custom_call.1} parent=11 // pred_region
          %s251 = ssub.s32 16, 16
          %252 = vsyncadd [#allocation9], %s251
          %s254 = sshll.u32 [#allocation8], 4
          %s255 = int_to_ptr.vmem [resolvable:$true] %s254
          %257 = dma.hbm_to_vmem [thread:$0]  %s2, 16, %s255, [#allocation9]
        $region20: #{tpu_custom_call.1} parent=11 // pred_fallthru
          _
        // Predicated region
        $region21: #{tpu_custom_call.1} parent=11 // pred_check
          %p258 = pneg %p121
        $region22: #{tpu_custom_call.1} parent=11 // pred_check_branch
          %260 = sbr.rel (%p258) target = $region24
        $region23: #{tpu_custom_call.1} parent=11 // pred_region
          _
        $region24: #{tpu_custom_call.1} parent=11 // pred_fallthru
          _
        // Predicated region
        $region25: #{tpu_custom_call.1} parent=11 // pred_check
          %p261 = pneg %p142
        $region26: #{tpu_custom_call.1} parent=11 // pred_check_branch
          %263 = sbr.rel (%p261) target = $region28
        $region27: #{tpu_custom_call.1} parent=11 // pred_region
          %s265 = ssub.s32 16, 16
          %266 = vsyncadd [#allocation9], %s265
          %s268 = sshll.u32 [#allocation10], 4
          %s269 = int_to_ptr.vmem [resolvable:$true] %s268
          %271 = dma.hbm_to_vmem [thread:$0]  %s4, 16, %s269, [#allocation9]
        $region28: #{tpu_custom_call.1} parent=11 // pred_fallthru
          _
        // Predicated region
        $region29: #{tpu_custom_call.1} parent=11 // pred_check
          %p272 = pneg %p163
        $region30: #{tpu_custom_call.1} parent=11 // pred_check_branch
          %274 = sbr.rel (%p272) target = $region32
        $region31: #{tpu_custom_call.1} parent=11 // pred_region
          _
        $region32: #{tpu_custom_call.1} parent=11 // pred_fallthru
          _
      $region12: #{tpu_custom_call.1} parent=5 // pred_fallthru
        _
      %p275 = scmp.lt.s32.totalorder %s20, 8
      // Predicated region
      $region33: #{tpu_custom_call.1} parent=5 // pred_check
        %p276 = pneg %p275
      $region34: #{tpu_custom_call.1} parent=5 // pred_check_branch
        %278 = sbr.rel (%p276) target = $region36
      $region35: #{tpu_custom_call.1} parent=5 // pred_region
        // Predicated region
        $region37: #{tpu_custom_call.1} parent=35 // pred_check
          %p279 = pneg %p52
        $region38: #{tpu_custom_call.1} parent=35 // pred_check_branch
          %281 = sbr.rel (%p279) target = $region40
        $region39: #{tpu_custom_call.1} parent=35 // pred_region
          %p282 = scmp.lt.s32.totalorder %s27, 1
          %s283 = scalar_select %p282, %s27, 1
          %s284 = smul.addr %s283, 64
          %s285 = smul.addr %s284, 8
          %s286 = scalar_lea.vmem %s0, %s285
        $region40: #{tpu_custom_call.1} parent=35 // pred_fallthru
          _
      $region36: #{tpu_custom_call.1} parent=5 // pred_fallthru
        _
      %p287 = scmp.le.s32.totalorder 1, %s20
      %p288 = scmp.lt.s32.totalorder %s20, 9
      %p289 = pnand %p287, %p288
      %p290 = pneg %p289
      // Predicated region
      $region41: #{tpu_custom_call.1} parent=5 // pred_check
        _
      $region42: #{tpu_custom_call.1} parent=5 // pred_check_branch
        %292 = sbr.rel (%p289) target = $region44
      $region43: #{tpu_custom_call.1} parent=5 // pred_region
        %s293 = ssub.s32 %s20, 1
        // Predicated region
        $region45: #{tpu_custom_call.1} parent=43 // pred_check
          %p294 = pneg %p79
        $region46: #{tpu_custom_call.1} parent=43 // pred_check_branch
          %296 = sbr.rel (%p294) target = $region48
        $region47: #{tpu_custom_call.1} parent=43 // pred_region
          %297 = dma.done [#allocation6], 256
        $region48: #{tpu_custom_call.1} parent=43 // pred_fallthru
          _
        // Predicated region
        $region49: #{tpu_custom_call.1} parent=43 // pred_check
          %p298 = pneg %p100
        $region50: #{tpu_custom_call.1} parent=43 // pred_check_branch
          %300 = sbr.rel (%p298) target = $region52
        $region51: #{tpu_custom_call.1} parent=43 // pred_region
          %301 = dma.done [#allocation9], 16
        $region52: #{tpu_custom_call.1} parent=43 // pred_fallthru
          _
        // Predicated region
        $region53: #{tpu_custom_call.1} parent=43 // pred_check
          %p302 = pneg %p142
        $region54: #{tpu_custom_call.1} parent=43 // pred_check_branch
          %304 = sbr.rel (%p302) target = $region56
        $region55: #{tpu_custom_call.1} parent=43 // pred_region
          %305 = dma.done [#allocation9], 16
        $region56: #{tpu_custom_call.1} parent=43 // pred_fallthru
          _
        %p306 = scmp.lt.s32.totalorder %s29, 1
        %s307 = scalar_select %p306, %s29, 1
        %s308 = smul.addr %s307, 64
        %s309 = smul.addr %s308, 8
        %s310 = scalar_lea.vmem %s0, %s309
        %p311 = pneg %p58
        %p312 = pneg %p55
        %p313 = pneg %p79
        %p314 = pneg %p76
        %p315 = pneg %p100
        %p316 = pneg %p97
        %p317 = pneg %p121
        %p318 = pneg %p118
        %p319 = pneg %p142
        %p320 = pneg %p139
        %p321 = pneg %p163
        %p322 = pneg %p160
        %p323 = pneg %p191
        %p324 = pneg %p188
        %s325 = smul.u32 16, %s30
        %p326 = scmp.lt.s32.totalorder %s29, 1
        %s327 = scalar_select %p326, %s29, 1
        %p328 = scmp.lt.s32.totalorder %s325, 63
        %s329 = scalar_select %p328, %s325, 63
        %s330 = smul.addr %s327, 64
        %s331 = sadd.s32 %s329, %s330
        %s332 = smul.addr %s331, 8
        %s333 = scalar_lea.vmem %s6, %s332
        %p334 = pneg %p219
        %p335 = pneg %p216
        %s336 = sand.u32 %s206, 1
        %s337 = scalar_lea.sflag [#allocation7], %s336
        %s338 = sand.u32 %s206, 1
        %s339 = smul.addr %s338, 512
        %s340 = scalar_lea.vmem [#allocation11], %s339
        %p341 = scmp.lt.s32.totalorder %s29, 1
        %s342 = scalar_select %p341, %s29, 1
        %s343 = smul.addr %s342, 64
        %s344 = smul.addr %s343, 8
        %s345 = scalar_lea.vmem %s0, %s344
        %s346 = smul.u32 16, %s30
        %p347 = scmp.lt.s32.totalorder %s29, 1
        %s348 = scalar_select %p347, %s29, 1
        %p349 = scmp.lt.s32.totalorder %s346, 63
        %s350 = scalar_select %p349, %s346, 63
        %s351 = smul.addr %s348, 64
        %s352 = sadd.s32 %s350, %s351
        %s353 = smul.addr %s352, 8
        %s354 = scalar_lea.vmem %s6, %s353
        %s355 = smul.u32 16, %s30
        %s356 = smul.u32 16, %s30
        %p358 = scmp.eq.s32.totalorder %s30, 0
        // Predicated region
        $region57: #{tpu_custom_call.1} parent=43 // pred_check
          %p359 = pneg %p358
        $region58: #{tpu_custom_call.1} parent=43 // pred_check_branch
          %361 = sbr.rel (%p359) target = $region60
        $region59: #{tpu_custom_call.1} parent=43 // pred_region
          %v362 = vld [vmem:[%s345] sm:$0xff]
          %v363 = vld [vmem:[%s345 + $0x8] sm:$0xff]
          %v364 = vld [vmem:[%s345 + $0x10] sm:$0xff]
          %v365 = vld [vmem:[%s345 + $0x18] sm:$0xff]
          %v366 = vld [vmem:[%s345 + $0x20] sm:$0xff]
          %v367 = vld [vmem:[%s345 + $0x28] sm:$0xff]
          %v368 = vld [vmem:[%s345 + $0x30] sm:$0xff]
          %v369 = vld [vmem:[%s345 + $0x38] sm:$0xff]
          %v370 = vld [vmem:[%s345 + $0x40] sm:$0xff]
          %v371 = vld [vmem:[%s345 + $0x48] sm:$0xff]
          %v372 = vld [vmem:[%s345 + $0x50] sm:$0xff]
          %v373 = vld [vmem:[%s345 + $0x58] sm:$0xff]
          %v374 = vld [vmem:[%s345 + $0x60] sm:$0xff]
          %v375 = vld [vmem:[%s345 + $0x68] sm:$0xff]
          %v376 = vld [vmem:[%s345 + $0x70] sm:$0xff]
          %v377 = vld [vmem:[%s345 + $0x78] sm:$0xff]
          %v378 = vld [vmem:[%s345 + $0x80] sm:$0xff]
          %v379 = vld [vmem:[%s345 + $0x88] sm:$0xff]
          %v380 = vld [vmem:[%s345 + $0x90] sm:$0xff]
          %v381 = vld [vmem:[%s345 + $0x98] sm:$0xff]
          %v382 = vld [vmem:[%s345 + $0xa0] sm:$0xff]
          %v383 = vld [vmem:[%s345 + $0xa8] sm:$0xff]
          %v384 = vld [vmem:[%s345 + $0xb0] sm:$0xff]
          %v385 = vld [vmem:[%s345 + $0xb8] sm:$0xff]
          %v386 = vld [vmem:[%s345 + $0xc0] sm:$0xff]
          %v387 = vld [vmem:[%s345 + $0xc8] sm:$0xff]
          %v388 = vld [vmem:[%s345 + $0xd0] sm:$0xff]
          %v389 = vld [vmem:[%s345 + $0xd8] sm:$0xff]
          %v390 = vld [vmem:[%s345 + $0xe0] sm:$0xff]
          %v391 = vld [vmem:[%s345 + $0xe8] sm:$0xff]
          %v392 = vld [vmem:[%s345 + $0xf0] sm:$0xff]
          %v393 = vld [vmem:[%s345 + $0xf8] sm:$0xff]
          %v394 = vld [vmem:[%s345 + $0x100] sm:$0xff]
          %v395 = vld [vmem:[%s345 + $0x108] sm:$0xff]
          %v396 = vld [vmem:[%s345 + $0x110] sm:$0xff]
          %v397 = vld [vmem:[%s345 + $0x118] sm:$0xff]
          %v398 = vld [vmem:[%s345 + $0x120] sm:$0xff]
          %v399 = vld [vmem:[%s345 + $0x128] sm:$0xff]
          %v400 = vld [vmem:[%s345 + $0x130] sm:$0xff]
          %v401 = vld [vmem:[%s345 + $0x138] sm:$0xff]
          %v402 = vld [vmem:[%s345 + $0x140] sm:$0xff]
          %v403 = vld [vmem:[%s345 + $0x148] sm:$0xff]
          %v404 = vld [vmem:[%s345 + $0x150] sm:$0xff]
          %v405 = vld [vmem:[%s345 + $0x158] sm:$0xff]
          %v406 = vld [vmem:[%s345 + $0x160] sm:$0xff]
          %v407 = vld [vmem:[%s345 + $0x168] sm:$0xff]
          %v408 = vld [vmem:[%s345 + $0x170] sm:$0xff]
          %v409 = vld [vmem:[%s345 + $0x178] sm:$0xff]
          %v410 = vld [vmem:[%s345 + $0x180] sm:$0xff]
          %v411 = vld [vmem:[%s345 + $0x188] sm:$0xff]
          %v412 = vld [vmem:[%s345 + $0x190] sm:$0xff]
          %v413 = vld [vmem:[%s345 + $0x198] sm:$0xff]
          %v414 = vld [vmem:[%s345 + $0x1a0] sm:$0xff]
          %v415 = vld [vmem:[%s345 + $0x1a8] sm:$0xff]
          %v416 = vld [vmem:[%s345 + $0x1b0] sm:$0xff]
          %v417 = vld [vmem:[%s345 + $0x1b8] sm:$0xff]
          %v418 = vld [vmem:[%s345 + $0x1c0] sm:$0xff]
          %v419 = vld [vmem:[%s345 + $0x1c8] sm:$0xff]
          %v420 = vld [vmem:[%s345 + $0x1d0] sm:$0xff]
          %v421 = vld [vmem:[%s345 + $0x1d8] sm:$0xff]
          %v422 = vld [vmem:[%s345 + $0x1e0] sm:$0xff]
          %v423 = vld [vmem:[%s345 + $0x1e8] sm:$0xff]
          %v424 = vld [vmem:[%s345 + $0x1f0] sm:$0xff]
          %v425 = vld [vmem:[%s345 + $0x1f8] sm:$0xff]
          %v426 = vld [vmem:[#allocation5] sm:$0xff]
          %v427 = vld [vmem:[#allocation5 + $0x8] sm:$0xff]
          %v428 = vld [vmem:[#allocation8] sm:$0x1]
          %v430 = vlaneseq
          %v431 = vshrl.u32 %v430, 7
          %v432 = vsub.s32 0, %v431
          %v433 = vrot.slane %v428, %v432
          %vm435 = vcmask 130048
          %v437 = vsel %vm435, %v362, 0
          %v440 = vsel %vm435, %v363, 0
          %v443 = vsel %vm435, %v364, 0
          %v446 = vsel %vm435, %v365, 0
          %v449 = vsel %vm435, %v366, 0
          %v452 = vsel %vm435, %v367, 0
          %v455 = vsel %vm435, %v368, 0
          %v458 = vsel %vm435, %v369, 0
          %v461 = vsel %vm435, %v370, 0
          %v464 = vsel %vm435, %v371, 0
          %v467 = vsel %vm435, %v372, 0
          %v470 = vsel %vm435, %v373, 0
          %v473 = vsel %vm435, %v374, 0
          %v476 = vsel %vm435, %v375, 0
          %v479 = vsel %vm435, %v376, 0
          %v482 = vsel %vm435, %v377, 0
          %v485 = vsel %vm435, %v378, 0
          %v488 = vsel %vm435, %v379, 0
          %v491 = vsel %vm435, %v380, 0
          %v494 = vsel %vm435, %v381, 0
          %v497 = vsel %vm435, %v382, 0
          %v500 = vsel %vm435, %v383, 0
          %v503 = vsel %vm435, %v384, 0
          %v506 = vsel %vm435, %v385, 0
          %v509 = vsel %vm435, %v386, 0
          %v512 = vsel %vm435, %v387, 0
          %v515 = vsel %vm435, %v388, 0
          %v518 = vsel %vm435, %v389, 0
          %v521 = vsel %vm435, %v390, 0
          %v524 = vsel %vm435, %v391, 0
          %v527 = vsel %vm435, %v392, 0
          %v530 = vsel %vm435, %v393, 0
          %v533 = vsel %vm435, %v394, 0
          %v536 = vsel %vm435, %v395, 0
          %v539 = vsel %vm435, %v396, 0
          %v542 = vsel %vm435, %v397, 0
          %v545 = vsel %vm435, %v398, 0
          %v548 = vsel %vm435, %v399, 0
          %v551 = vsel %vm435, %v400, 0
          %v554 = vsel %vm435, %v401, 0
          %v557 = vsel %vm435, %v402, 0
          %v560 = vsel %vm435, %v403, 0
          %v563 = vsel %vm435, %v404, 0
          %v566 = vsel %vm435, %v405, 0
          %v569 = vsel %vm435, %v406, 0
          %v572 = vsel %vm435, %v407, 0
          %v575 = vsel %vm435, %v408, 0
          %v578 = vsel %vm435, %v409, 0
          %v581 = vsel %vm435, %v410, 0
          %v584 = vsel %vm435, %v411, 0
          %v587 = vsel %vm435, %v412, 0
          %v590 = vsel %vm435, %v413, 0
          %v593 = vsel %vm435, %v414, 0
          %v596 = vsel %vm435, %v415, 0
          %v599 = vsel %vm435, %v416, 0
          %v602 = vsel %vm435, %v417, 0
          %v605 = vsel %vm435, %v418, 0
          %v608 = vsel %vm435, %v419, 0
          %v611 = vsel %vm435, %v420, 0
          %v614 = vsel %vm435, %v421, 0
          %v617 = vsel %vm435, %v422, 0
          %v620 = vsel %vm435, %v423, 0
          %v623 = vsel %vm435, %v424, 0
          %v626 = vsel %vm435, %v425, 0
          %628 = vmatprep.subr.mxu0 0.0
          %629 = vmatpush1.msra.mxu0 0.0
          %630 = vmatprep.subr.mxu0 0.0
          %631 = vmatpush1.msra.mxu0 0.0
          %632 = vmatprep.subr.mxu0 0.0
          %633 = vmatpush1.msra.mxu0 0.0
          %634 = vmatprep.subr.mxu0 0.0
          %635 = vmatpush1.msra.mxu0 0.0
          %636 = vmatprep.subr.mxu0 0.0
          %637 = vmatpush1.msra.mxu0 0.0
          %638 = vmatprep.subr.mxu0 0.0
          %639 = vmatpush1.msra.mxu0 0.0
          %640 = vmatprep.subr.mxu0 0.0
          %641 = vmatpush1.msra.mxu0 0.0
          %642 = vmatprep.subr.mxu0 0.0
          %643 = vmatpush1.msra.mxu0 0.0
          %644 = vmatprep.subr.mxu0 0.0
          %645 = vmatpush1.msra.mxu0 0.0
          %646 = vmatprep.subr.mxu0 0.0
          %647 = vmatpush1.msra.mxu0 0.0
          %648 = vmatprep.subr.mxu0 0.0
          %649 = vmatpush1.msra.mxu0 0.0
          %650 = vmatprep.subr.mxu0 0.0
          %651 = vmatpush1.msra.mxu0 0.0
          %652 = vmatprep.subr.mxu0 0.0
          %653 = vmatpush1.msra.mxu0 0.0
          %654 = vmatprep.subr.mxu0 0.0
          %655 = vmatpush1.msra.mxu0 0.0
          %656 = vmatprep.subr.mxu0 0.0
          %657 = vmatpush1.msra.mxu0 %v427
          %658 = vmatprep.subr.mxu0 0.0
          %659 = vmatpush1.msra.mxu0 %v426
          %660 = vmatprep.subr.mxu0 0.0
          %661 = vmatpush2.msra.mxu0 0.0
          %662 = vmatprep.subr.mxu0 0.0
          %663 = vmatpush2.msra.mxu0 0.0
          %664 = vmatprep.subr.mxu0 0.0
          %665 = vmatpush2.msra.mxu0 0.0
          %666 = vmatprep.subr.mxu0 0.0
          %667 = vmatpush2.msra.mxu0 0.0
          %668 = vmatprep.subr.mxu0 0.0
          %669 = vmatpush2.msra.mxu0 0.0
          %670 = vmatprep.subr.mxu0 0.0
          %671 = vmatpush2.msra.mxu0 0.0
          %672 = vmatprep.subr.mxu0 0.0
          %673 = vmatpush2.msra.mxu0 0.0
          %674 = vmatprep.subr.mxu0 0.0
          %675 = vmatpush2.msra.mxu0 0.0
          %676 = vmatprep.subr.mxu0 0.0
          %677 = vmatpush2.msra.mxu0 0.0
          %678 = vmatprep.subr.mxu0 0.0
          %679 = vmatpush2.msra.mxu0 0.0
          %680 = vmatprep.subr.mxu0 0.0
          %681 = vmatpush2.msra.mxu0 0.0
          %682 = vmatprep.subr.mxu0 0.0
          %683 = vmatpush2.msra.mxu0 0.0
          %684 = vmatprep.subr.mxu0 0.0
          %685 = vmatpush2.msra.mxu0 0.0
          %686 = vmatprep.subr.mxu0 0.0
          %687 = vmatpush2.msra.mxu0 0.0
          %688 = vmatprep.subr.mxu0 0.0
          %689 = vmatpush2.msra.mxu0 0.0
          %690 = vmatprep.subr.mxu0 0.0
          %691 = vmatpush2.msra.mxu0 0.0
          %692 = vmatprep.mubr.f32.mxu0 0.0
          %693 = vmatmul.mubr.f32.gmra.mxu0 %v437
          %v694 = vpop.f32.mrf.mxu0
          %v695 = vadd.f32 %v433, %v694
          %v696 = vpop.f32.mrf.mxu0
          %697 = vmatprep.mubr.f32.mxu0 0.0
          %698 = vmatmul.mubr.f32.gmra.mxu0 %v440
          %v699 = vpop.f32.mrf.mxu0
          %v700 = vadd.f32 %v433, %v699
          %v701 = vpop.f32.mrf.mxu0
          %702 = vmatprep.mubr.f32.mxu0 0.0
          %703 = vmatmul.mubr.f32.gmra.mxu0 %v443
          %v704 = vpop.f32.mrf.mxu0
          %v705 = vadd.f32 %v433, %v704
          %v706 = vpop.f32.mrf.mxu0
          %707 = vmatprep.mubr.f32.mxu0 0.0
          %708 = vmatmul.mubr.f32.gmra.mxu0 %v446
          %v709 = vpop.f32.mrf.mxu0
          %v710 = vadd.f32 %v433, %v709
          %v711 = vpop.f32.mrf.mxu0
          %712 = vmatprep.mubr.f32.mxu0 0.0
          %713 = vmatmul.mubr.f32.gmra.mxu0 %v449
          %v714 = vpop.f32.mrf.mxu0
          %v715 = vadd.f32 %v433, %v714
          %v716 = vpop.f32.mrf.mxu0
          %717 = vmatprep.mubr.f32.mxu0 0.0
          %718 = vmatmul.mubr.f32.gmra.mxu0 %v452
          %v719 = vpop.f32.mrf.mxu0
          %v720 = vadd.f32 %v433, %v719
          %v721 = vpop.f32.mrf.mxu0
          %722 = vmatprep.mubr.f32.mxu0 0.0
          %723 = vmatmul.mubr.f32.gmra.mxu0 %v455
          %v724 = vpop.f32.mrf.mxu0
          %v725 = vadd.f32 %v433, %v724
          %v726 = vpop.f32.mrf.mxu0
          %727 = vmatprep.mubr.f32.mxu0 0.0
          %728 = vmatmul.mubr.f32.gmra.mxu0 %v458
          %v729 = vpop.f32.mrf.mxu0
          %v730 = vadd.f32 %v433, %v729
          %v731 = vpop.f32.mrf.mxu0
          %732 = vmatprep.mubr.f32.mxu0 0.0
          %733 = vmatmul.mubr.f32.gmra.mxu0 %v461
          %v734 = vpop.f32.mrf.mxu0
          %v735 = vadd.f32 %v433, %v734
          %v736 = vpop.f32.mrf.mxu0
          %737 = vmatprep.mubr.f32.mxu0 0.0
          %738 = vmatmul.mubr.f32.gmra.mxu0 %v464
          %v739 = vpop.f32.mrf.mxu0
          %v740 = vadd.f32 %v433, %v739
          %v741 = vpop.f32.mrf.mxu0
          %742 = vmatprep.mubr.f32.mxu0 0.0
          %743 = vmatmul.mubr.f32.gmra.mxu0 %v467
          %v744 = vpop.f32.mrf.mxu0
          %v745 = vadd.f32 %v433, %v744
          %v746 = vpop.f32.mrf.mxu0
          %747 = vmatprep.mubr.f32.mxu0 0.0
          %748 = vmatmul.mubr.f32.gmra.mxu0 %v470
          %v749 = vpop.f32.mrf.mxu0
          %v750 = vadd.f32 %v433, %v749
          %v751 = vpop.f32.mrf.mxu0
          %752 = vmatprep.mubr.f32.mxu0 0.0
          %753 = vmatmul.mubr.f32.gmra.mxu0 %v473
          %v754 = vpop.f32.mrf.mxu0
          %v755 = vadd.f32 %v433, %v754
          %v756 = vpop.f32.mrf.mxu0
          %757 = vmatprep.mubr.f32.mxu0 0.0
          %758 = vmatmul.mubr.f32.gmra.mxu0 %v476
          %v759 = vpop.f32.mrf.mxu0
          %v760 = vadd.f32 %v433, %v759
          %v761 = vpop.f32.mrf.mxu0
          %762 = vmatprep.mubr.f32.mxu0 0.0
          %763 = vmatmul.mubr.f32.gmra.mxu0 %v479
          %v764 = vpop.f32.mrf.mxu0
          %v765 = vadd.f32 %v433, %v764
          %v766 = vpop.f32.mrf.mxu0
          %767 = vmatprep.mubr.f32.mxu0 0.0
          %768 = vmatmul.mubr.f32.gmra.mxu0 %v482
          %v769 = vpop.f32.mrf.mxu0
          %v770 = vadd.f32 %v433, %v769
          %v771 = vpop.f32.mrf.mxu0
          %772 = vmatprep.mubr.f32.mxu0 0.0
          %773 = vmatmul.mubr.f32.gmra.mxu0 %v485
          %v774 = vpop.f32.mrf.mxu0
          %v775 = vadd.f32 %v433, %v774
          %v776 = vpop.f32.mrf.mxu0
          %777 = vmatprep.mubr.f32.mxu0 0.0
          %778 = vmatmul.mubr.f32.gmra.mxu0 %v488
          %v779 = vpop.f32.mrf.mxu0
          %v780 = vadd.f32 %v433, %v779
          %v781 = vpop.f32.mrf.mxu0
          %782 = vmatprep.mubr.f32.mxu0 0.0
          %783 = vmatmul.mubr.f32.gmra.mxu0 %v491
          %v784 = vpop.f32.mrf.mxu0
          %v785 = vadd.f32 %v433, %v784
          %v786 = vpop.f32.mrf.mxu0
          %787 = vmatprep.mubr.f32.mxu0 0.0
          %788 = vmatmul.mubr.f32.gmra.mxu0 %v494
          %v789 = vpop.f32.mrf.mxu0
          %v790 = vadd.f32 %v433, %v789
          %v791 = vpop.f32.mrf.mxu0
          %792 = vmatprep.mubr.f32.mxu0 0.0
          %793 = vmatmul.mubr.f32.gmra.mxu0 %v497
          %v794 = vpop.f32.mrf.mxu0
          %v795 = vadd.f32 %v433, %v794
          %v796 = vpop.f32.mrf.mxu0
          %797 = vmatprep.mubr.f32.mxu0 0.0
          %798 = vmatmul.mubr.f32.gmra.mxu0 %v500
          %v799 = vpop.f32.mrf.mxu0
          %v800 = vadd.f32 %v433, %v799
          %v801 = vpop.f32.mrf.mxu0
          %802 = vmatprep.mubr.f32.mxu0 0.0
          %803 = vmatmul.mubr.f32.gmra.mxu0 %v503
          %v804 = vpop.f32.mrf.mxu0
          %v805 = vadd.f32 %v433, %v804
          %v806 = vpop.f32.mrf.mxu0
          %807 = vmatprep.mubr.f32.mxu0 0.0
          %808 = vmatmul.mubr.f32.gmra.mxu0 %v506
          %v809 = vpop.f32.mrf.mxu0
          %v810 = vadd.f32 %v433, %v809
          %v811 = vpop.f32.mrf.mxu0
          %812 = vmatprep.mubr.f32.mxu0 0.0
          %813 = vmatmul.mubr.f32.gmra.mxu0 %v509
          %v814 = vpop.f32.mrf.mxu0
          %v815 = vadd.f32 %v433, %v814
          %v816 = vpop.f32.mrf.mxu0
          %817 = vmatprep.mubr.f32.mxu0 0.0
          %818 = vmatmul.mubr.f32.gmra.mxu0 %v512
          %v819 = vpop.f32.mrf.mxu0
          %v820 = vadd.f32 %v433, %v819
          %v821 = vpop.f32.mrf.mxu0
          %822 = vmatprep.mubr.f32.mxu0 0.0
          %823 = vmatmul.mubr.f32.gmra.mxu0 %v515
          %v824 = vpop.f32.mrf.mxu0
          %v825 = vadd.f32 %v433, %v824
          %v826 = vpop.f32.mrf.mxu0
          %827 = vmatprep.mubr.f32.mxu0 0.0
          %828 = vmatmul.mubr.f32.gmra.mxu0 %v518
          %v829 = vpop.f32.mrf.mxu0
          %v830 = vadd.f32 %v433, %v829
          %v831 = vpop.f32.mrf.mxu0
          %832 = vmatprep.mubr.f32.mxu0 0.0
          %833 = vmatmul.mubr.f32.gmra.mxu0 %v521
          %v834 = vpop.f32.mrf.mxu0
          %v835 = vadd.f32 %v433, %v834
          %v836 = vpop.f32.mrf.mxu0
          %837 = vmatprep.mubr.f32.mxu0 0.0
          %838 = vmatmul.mubr.f32.gmra.mxu0 %v524
          %v839 = vpop.f32.mrf.mxu0
          %v840 = vadd.f32 %v433, %v839
          %v841 = vpop.f32.mrf.mxu0
          %842 = vmatprep.mubr.f32.mxu0 0.0
          %843 = vmatmul.mubr.f32.gmra.mxu0 %v527
          %v844 = vpop.f32.mrf.mxu0
          %v845 = vadd.f32 %v433, %v844
          %v846 = vpop.f32.mrf.mxu0
          %847 = vmatprep.mubr.f32.mxu0 0.0
          %848 = vmatmul.mubr.f32.gmra.mxu0 %v530
          %v849 = vpop.f32.mrf.mxu0
          %v850 = vadd.f32 %v433, %v849
          %v851 = vpop.f32.mrf.mxu0
          %852 = vmatprep.mubr.f32.mxu0 0.0
          %853 = vmatmul.mubr.f32.gmra.mxu0 %v533
          %v854 = vpop.f32.mrf.mxu0
          %v855 = vadd.f32 %v433, %v854
          %v856 = vpop.f32.mrf.mxu0
          %857 = vmatprep.mubr.f32.mxu0 0.0
          %858 = vmatmul.mubr.f32.gmra.mxu0 %v536
          %v859 = vpop.f32.mrf.mxu0
          %v860 = vadd.f32 %v433, %v859
          %v861 = vpop.f32.mrf.mxu0
          %862 = vmatprep.mubr.f32.mxu0 0.0
          %863 = vmatmul.mubr.f32.gmra.mxu0 %v539
          %v864 = vpop.f32.mrf.mxu0
          %v865 = vadd.f32 %v433, %v864
          %v866 = vpop.f32.mrf.mxu0
          %867 = vmatprep.mubr.f32.mxu0 0.0
          %868 = vmatmul.mubr.f32.gmra.mxu0 %v542
          %v869 = vpop.f32.mrf.mxu0
          %v870 = vadd.f32 %v433, %v869
          %v871 = vpop.f32.mrf.mxu0
          %872 = vmatprep.mubr.f32.mxu0 0.0
          %873 = vmatmul.mubr.f32.gmra.mxu0 %v545
          %v874 = vpop.f32.mrf.mxu0
          %v875 = vadd.f32 %v433, %v874
          %v876 = vpop.f32.mrf.mxu0
          %877 = vmatprep.mubr.f32.mxu0 0.0
          %878 = vmatmul.mubr.f32.gmra.mxu0 %v548
          %v879 = vpop.f32.mrf.mxu0
          %v880 = vadd.f32 %v433, %v879
          %v881 = vpop.f32.mrf.mxu0
          %882 = vmatprep.mubr.f32.mxu0 0.0
          %883 = vmatmul.mubr.f32.gmra.mxu0 %v551
          %v884 = vpop.f32.mrf.mxu0
          %v885 = vadd.f32 %v433, %v884
          %v886 = vpop.f32.mrf.mxu0
          %887 = vmatprep.mubr.f32.mxu0 0.0
          %888 = vmatmul.mubr.f32.gmra.mxu0 %v554
          %v889 = vpop.f32.mrf.mxu0
          %v890 = vadd.f32 %v433, %v889
          %v891 = vpop.f32.mrf.mxu0
          %892 = vmatprep.mubr.f32.mxu0 0.0
          %893 = vmatmul.mubr.f32.gmra.mxu0 %v557
          %v894 = vpop.f32.mrf.mxu0
          %v895 = vadd.f32 %v433, %v894
          %v896 = vpop.f32.mrf.mxu0
          %897 = vmatprep.mubr.f32.mxu0 0.0
          %898 = vmatmul.mubr.f32.gmra.mxu0 %v560
          %v899 = vpop.f32.mrf.mxu0
          %v900 = vadd.f32 %v433, %v899
          %v901 = vpop.f32.mrf.mxu0
          %902 = vmatprep.mubr.f32.mxu0 0.0
          %903 = vmatmul.mubr.f32.gmra.mxu0 %v563
          %v904 = vpop.f32.mrf.mxu0
          %v905 = vadd.f32 %v433, %v904
          %v906 = vpop.f32.mrf.mxu0
          %907 = vmatprep.mubr.f32.mxu0 0.0
          %908 = vmatmul.mubr.f32.gmra.mxu0 %v566
          %v909 = vpop.f32.mrf.mxu0
          %v910 = vadd.f32 %v433, %v909
          %v911 = vpop.f32.mrf.mxu0
          %912 = vmatprep.mubr.f32.mxu0 0.0
          %913 = vmatmul.mubr.f32.gmra.mxu0 %v569
          %v914 = vpop.f32.mrf.mxu0
          %v915 = vadd.f32 %v433, %v914
          %v916 = vpop.f32.mrf.mxu0
          %917 = vmatprep.mubr.f32.mxu0 0.0
          %918 = vmatmul.mubr.f32.gmra.mxu0 %v572
          %v919 = vpop.f32.mrf.mxu0
          %v920 = vadd.f32 %v433, %v919
          %v921 = vpop.f32.mrf.mxu0
          %922 = vmatprep.mubr.f32.mxu0 0.0
          %923 = vmatmul.mubr.f32.gmra.mxu0 %v575
          %v924 = vpop.f32.mrf.mxu0
          %v925 = vadd.f32 %v433, %v924
          %v926 = vpop.f32.mrf.mxu0
          %927 = vmatprep.mubr.f32.mxu0 0.0
          %928 = vmatmul.mubr.f32.gmra.mxu0 %v578
          %v929 = vpop.f32.mrf.mxu0
          %v930 = vadd.f32 %v433, %v929
          %v931 = vpop.f32.mrf.mxu0
          %932 = vmatprep.mubr.f32.mxu0 0.0
          %933 = vmatmul.mubr.f32.gmra.mxu0 %v581
          %v934 = vpop.f32.mrf.mxu0
          %v935 = vadd.f32 %v433, %v934
          %v936 = vpop.f32.mrf.mxu0
          %937 = vmatprep.mubr.f32.mxu0 0.0
          %938 = vmatmul.mubr.f32.gmra.mxu0 %v584
          %v939 = vpop.f32.mrf.mxu0
          %v940 = vadd.f32 %v433, %v939
          %v941 = vpop.f32.mrf.mxu0
          %942 = vmatprep.mubr.f32.mxu0 0.0
          %943 = vmatmul.mubr.f32.gmra.mxu0 %v587
          %v944 = vpop.f32.mrf.mxu0
          %v945 = vadd.f32 %v433, %v944
          %v946 = vpop.f32.mrf.mxu0
          %947 = vmatprep.mubr.f32.mxu0 0.0
          %948 = vmatmul.mubr.f32.gmra.mxu0 %v590
          %v949 = vpop.f32.mrf.mxu0
          %v950 = vadd.f32 %v433, %v949
          %v951 = vpop.f32.mrf.mxu0
          %952 = vmatprep.mubr.f32.mxu0 0.0
          %953 = vmatmul.mubr.f32.gmra.mxu0 %v593
          %v954 = vpop.f32.mrf.mxu0
          %v955 = vadd.f32 %v433, %v954
          %v956 = vpop.f32.mrf.mxu0
          %957 = vmatprep.mubr.f32.mxu0 0.0
          %958 = vmatmul.mubr.f32.gmra.mxu0 %v596
          %v959 = vpop.f32.mrf.mxu0
          %v960 = vadd.f32 %v433, %v959
          %v961 = vpop.f32.mrf.mxu0
          %962 = vmatprep.mubr.f32.mxu0 0.0
          %963 = vmatmul.mubr.f32.gmra.mxu0 %v599
          %v964 = vpop.f32.mrf.mxu0
          %v965 = vadd.f32 %v433, %v964
          %v966 = vpop.f32.mrf.mxu0
          %967 = vmatprep.mubr.f32.mxu0 0.0
          %968 = vmatmul.mubr.f32.gmra.mxu0 %v602
          %v969 = vpop.f32.mrf.mxu0
          %v970 = vadd.f32 %v433, %v969
          %v971 = vpop.f32.mrf.mxu0
          %972 = vmatprep.mubr.f32.mxu0 0.0
          %973 = vmatmul.mubr.f32.gmra.mxu0 %v605
          %v974 = vpop.f32.mrf.mxu0
          %v975 = vadd.f32 %v433, %v974
          %v976 = vpop.f32.mrf.mxu0
          %977 = vmatprep.mubr.f32.mxu0 0.0
          %978 = vmatmul.mubr.f32.gmra.mxu0 %v608
          %v979 = vpop.f32.mrf.mxu0
          %v980 = vadd.f32 %v433, %v979
          %v981 = vpop.f32.mrf.mxu0
          %982 = vmatprep.mubr.f32.mxu0 0.0
          %983 = vmatmul.mubr.f32.gmra.mxu0 %v611
          %v984 = vpop.f32.mrf.mxu0
          %v985 = vadd.f32 %v433, %v984
          %v986 = vpop.f32.mrf.mxu0
          %987 = vmatprep.mubr.f32.mxu0 0.0
          %988 = vmatmul.mubr.f32.gmra.mxu0 %v614
          %v989 = vpop.f32.mrf.mxu0
          %v990 = vadd.f32 %v433, %v989
          %v991 = vpop.f32.mrf.mxu0
          %992 = vmatprep.mubr.f32.mxu0 0.0
          %993 = vmatmul.mubr.f32.gmra.mxu0 %v617
          %v994 = vpop.f32.mrf.mxu0
          %v995 = vadd.f32 %v433, %v994
          %v996 = vpop.f32.mrf.mxu0
          %997 = vmatprep.mubr.f32.mxu0 0.0
          %998 = vmatmul.mubr.f32.gmra.mxu0 %v620
          %v999 = vpop.f32.mrf.mxu0
          %v1000 = vadd.f32 %v433, %v999
          %v1001 = vpop.f32.mrf.mxu0
          %1002 = vmatprep.mubr.f32.mxu0 0.0
          %1003 = vmatmul.mubr.f32.gmra.mxu0 %v623
          %v1004 = vpop.f32.mrf.mxu0
          %v1005 = vadd.f32 %v433, %v1004
          %v1006 = vpop.f32.mrf.mxu0
          %1007 = vmatprep.mubr.f32.mxu0 0.0
          %1008 = vmatmul.mubr.f32.gmra.mxu0 %v626
          %v1009 = vpop.f32.mrf.mxu0
          %v1010 = vadd.f32 %v433, %v1009
          %v1011 = vpop.f32.mrf.mxu0
          %1012 = vdwg.mxu0
          %v1013 = vpack.c.bf16 %v700, %v695
          %v1014 = vpack.c.bf16 %v710, %v705
          %v1015 = vpack.c.bf16 %v720, %v715
          %v1016 = vpack.c.bf16 %v730, %v725
          %v1017 = vpack.c.bf16 %v740, %v735
          %v1018 = vpack.c.bf16 %v750, %v745
          %v1019 = vpack.c.bf16 %v760, %v755
          %v1020 = vpack.c.bf16 %v770, %v765
          %v1021 = vpack.c.bf16 %v780, %v775
          %v1022 = vpack.c.bf16 %v790, %v785
          %v1023 = vpack.c.bf16 %v800, %v795
          %v1024 = vpack.c.bf16 %v810, %v805
          %v1025 = vpack.c.bf16 %v820, %v815
          %v1026 = vpack.c.bf16 %v830, %v825
          %v1027 = vpack.c.bf16 %v840, %v835
          %v1028 = vpack.c.bf16 %v850, %v845
          %v1029 = vpack.c.bf16 %v860, %v855
          %v1030 = vpack.c.bf16 %v870, %v865
          %v1031 = vpack.c.bf16 %v880, %v875
          %v1032 = vpack.c.bf16 %v890, %v885
          %v1033 = vpack.c.bf16 %v900, %v895
          %v1034 = vpack.c.bf16 %v910, %v905
          %v1035 = vpack.c.bf16 %v920, %v915
          %v1036 = vpack.c.bf16 %v930, %v925
          %v1037 = vpack.c.bf16 %v940, %v935
          %v1038 = vpack.c.bf16 %v950, %v945
          %v1039 = vpack.c.bf16 %v960, %v955
          %v1040 = vpack.c.bf16 %v970, %v965
          %v1041 = vpack.c.bf16 %v980, %v975
          %v1042 = vpack.c.bf16 %v990, %v985
          %v1043 = vpack.c.bf16 %v1000, %v995
          %v1044 = vpack.c.bf16 %v1010, %v1005
          %v1077 = vunpack.c.l.b16 %v1013
          %v1078 = vunpack.c.h.b16 %v1013
          %v1079 = vunpack.c.l.b16 %v1014
          %v1080 = vunpack.c.h.b16 %v1014
          %v1081 = vunpack.c.l.b16 %v1015
          %v1082 = vunpack.c.h.b16 %v1015
          %v1083 = vunpack.c.l.b16 %v1016
          %v1084 = vunpack.c.h.b16 %v1016
          %v1085 = vunpack.c.l.b16 %v1017
          %v1086 = vunpack.c.h.b16 %v1017
          %v1087 = vunpack.c.l.b16 %v1018
          %v1088 = vunpack.c.h.b16 %v1018
          %v1089 = vunpack.c.l.b16 %v1019
          %v1090 = vunpack.c.h.b16 %v1019
          %v1091 = vunpack.c.l.b16 %v1020
          %v1092 = vunpack.c.h.b16 %v1020
          %v1093 = vunpack.c.l.b16 %v1021
          %v1094 = vunpack.c.h.b16 %v1021
          %v1095 = vunpack.c.l.b16 %v1022
          %v1096 = vunpack.c.h.b16 %v1022
          %v1097 = vunpack.c.l.b16 %v1023
          %v1098 = vunpack.c.h.b16 %v1023
          %v1099 = vunpack.c.l.b16 %v1024
          %v1100 = vunpack.c.h.b16 %v1024
          %v1101 = vunpack.c.l.b16 %v1025
          %v1102 = vunpack.c.h.b16 %v1025
          %v1103 = vunpack.c.l.b16 %v1026
          %v1104 = vunpack.c.h.b16 %v1026
          %v1105 = vunpack.c.l.b16 %v1027
          %v1106 = vunpack.c.h.b16 %v1027
          %v1107 = vunpack.c.l.b16 %v1028
          %v1108 = vunpack.c.h.b16 %v1028
          %v1109 = vunpack.c.l.b16 %v1029
          %v1110 = vunpack.c.h.b16 %v1029
          %v1111 = vunpack.c.l.b16 %v1030
          %v1112 = vunpack.c.h.b16 %v1030
          %v1113 = vunpack.c.l.b16 %v1031
          %v1114 = vunpack.c.h.b16 %v1031
          %v1115 = vunpack.c.l.b16 %v1032
          %v1116 = vunpack.c.h.b16 %v1032
          %v1117 = vunpack.c.l.b16 %v1033
          %v1118 = vunpack.c.h.b16 %v1033
          %v1119 = vunpack.c.l.b16 %v1034
          %v1120 = vunpack.c.h.b16 %v1034
          %v1121 = vunpack.c.l.b16 %v1035
          %v1122 = vunpack.c.h.b16 %v1035
          %v1123 = vunpack.c.l.b16 %v1036
          %v1124 = vunpack.c.h.b16 %v1036
          %v1125 = vunpack.c.l.b16 %v1037
          %v1126 = vunpack.c.h.b16 %v1037
          %v1127 = vunpack.c.l.b16 %v1038
          %v1128 = vunpack.c.h.b16 %v1038
          %v1129 = vunpack.c.l.b16 %v1039
          %v1130 = vunpack.c.h.b16 %v1039
          %v1131 = vunpack.c.l.b16 %v1040
          %v1132 = vunpack.c.h.b16 %v1040
          %v1133 = vunpack.c.l.b16 %v1041
          %v1134 = vunpack.c.h.b16 %v1041
          %v1135 = vunpack.c.l.b16 %v1042
          %v1136 = vunpack.c.h.b16 %v1042
          %v1137 = vunpack.c.l.b16 %v1043
          %v1138 = vunpack.c.h.b16 %v1043
          %v1139 = vunpack.c.l.b16 %v1044
          %v1140 = vunpack.c.h.b16 %v1044
          %v1141 = vpack.c.b16 %v1077, %v1077
          %v1142 = vpack.c.b16 %v1078, %v1078
          %v1143 = vpack.c.b16 %v1079, %v1079
          %v1144 = vpack.c.b16 %v1080, %v1080
          %v1145 = vpack.c.b16 %v1081, %v1081
          %v1146 = vpack.c.b16 %v1082, %v1082
          %v1147 = vpack.c.b16 %v1083, %v1083
          %v1148 = vpack.c.b16 %v1084, %v1084
          %v1149 = vpack.c.b16 %v1085, %v1085
          %v1150 = vpack.c.b16 %v1086, %v1086
          %v1151 = vpack.c.b16 %v1087, %v1087
          %v1152 = vpack.c.b16 %v1088, %v1088
          %v1153 = vpack.c.b16 %v1089, %v1089
          %v1154 = vpack.c.b16 %v1090, %v1090
          %v1155 = vpack.c.b16 %v1091, %v1091
          %v1156 = vpack.c.b16 %v1092, %v1092
          %v1157 = vpack.c.b16 %v1093, %v1093
          %v1158 = vpack.c.b16 %v1094, %v1094
          %v1159 = vpack.c.b16 %v1095, %v1095
          %v1160 = vpack.c.b16 %v1096, %v1096
          %v1161 = vpack.c.b16 %v1097, %v1097
          %v1162 = vpack.c.b16 %v1098, %v1098
          %v1163 = vpack.c.b16 %v1099, %v1099
          %v1164 = vpack.c.b16 %v1100, %v1100
          %v1165 = vpack.c.b16 %v1101, %v1101
          %v1166 = vpack.c.b16 %v1102, %v1102
          %v1167 = vpack.c.b16 %v1103, %v1103
          %v1168 = vpack.c.b16 %v1104, %v1104
          %v1169 = vpack.c.b16 %v1105, %v1105
          %v1170 = vpack.c.b16 %v1106, %v1106
          %v1171 = vpack.c.b16 %v1107, %v1107
          %v1172 = vpack.c.b16 %v1108, %v1108
          %v1173 = vpack.c.b16 %v1109, %v1109
          %v1174 = vpack.c.b16 %v1110, %v1110
          %v1175 = vpack.c.b16 %v1111, %v1111
          %v1176 = vpack.c.b16 %v1112, %v1112
          %v1177 = vpack.c.b16 %v1113, %v1113
          %v1178 = vpack.c.b16 %v1114, %v1114
          %v1179 = vpack.c.b16 %v1115, %v1115
          %v1180 = vpack.c.b16 %v1116, %v1116
          %v1181 = vpack.c.b16 %v1117, %v1117
          %v1182 = vpack.c.b16 %v1118, %v1118
          %v1183 = vpack.c.b16 %v1119, %v1119
          %v1184 = vpack.c.b16 %v1120, %v1120
          %v1185 = vpack.c.b16 %v1121, %v1121
          %v1186 = vpack.c.b16 %v1122, %v1122
          %v1187 = vpack.c.b16 %v1123, %v1123
          %v1188 = vpack.c.b16 %v1124, %v1124
          %v1189 = vpack.c.b16 %v1125, %v1125
          %v1190 = vpack.c.b16 %v1126, %v1126
          %v1191 = vpack.c.b16 %v1127, %v1127
          %v1192 = vpack.c.b16 %v1128, %v1128
          %v1193 = vpack.c.b16 %v1129, %v1129
          %v1194 = vpack.c.b16 %v1130, %v1130
          %v1195 = vpack.c.b16 %v1131, %v1131
          %v1196 = vpack.c.b16 %v1132, %v1132
          %v1197 = vpack.c.b16 %v1133, %v1133
          %v1198 = vpack.c.b16 %v1134, %v1134
          %v1199 = vpack.c.b16 %v1135, %v1135
          %v1200 = vpack.c.b16 %v1136, %v1136
          %v1201 = vpack.c.b16 %v1137, %v1137
          %v1202 = vpack.c.b16 %v1138, %v1138
          %v1203 = vpack.c.b16 %v1139, %v1139
          %v1204 = vpack.c.b16 %v1140, %v1140
          %vm1269 = vcmask 125952
          %1270 = vst.msk [vmem:[#allocation2] sm:$0xf] %vm1269, %v1141
          %1271 = vst.msk [vmem:[#allocation2 + $0x4] sm:$0xf] %vm1269, %v1142
          %1272 = vst.msk [vmem:[#allocation2 + $0x8] sm:$0xf] %vm1269, %v1143
          %1273 = vst.msk [vmem:[#allocation2 + $0xc] sm:$0xf] %vm1269, %v1144
          %1274 = vst.msk [vmem:[#allocation2 + $0x10] sm:$0xf] %vm1269, %v1145
          %1275 = vst.msk [vmem:[#allocation2 + $0x14] sm:$0xf] %vm1269, %v1146
          %1276 = vst.msk [vmem:[#allocation2 + $0x18] sm:$0xf] %vm1269, %v1147
          %1277 = vst.msk [vmem:[#allocation2 + $0x1c] sm:$0xf] %vm1269, %v1148
          %1278 = vst.msk [vmem:[#allocation2 + $0x20] sm:$0xf] %vm1269, %v1149
          %1279 = vst.msk [vmem:[#allocation2 + $0x24] sm:$0xf] %vm1269, %v1150
          %1280 = vst.msk [vmem:[#allocation2 + $0x28] sm:$0xf] %vm1269, %v1151
          %1281 = vst.msk [vmem:[#allocation2 + $0x2c] sm:$0xf] %vm1269, %v1152
          %1282 = vst.msk [vmem:[#allocation2 + $0x30] sm:$0xf] %vm1269, %v1153
          %1283 = vst.msk [vmem:[#allocation2 + $0x34] sm:$0xf] %vm1269, %v1154
          %1284 = vst.msk [vmem:[#allocation2 + $0x38] sm:$0xf] %vm1269, %v1155
          %1285 = vst.msk [vmem:[#allocation2 + $0x3c] sm:$0xf] %vm1269, %v1156
          %1286 = vst.msk [vmem:[#allocation2 + $0x40] sm:$0xf] %vm1269, %v1157
          %1287 = vst.msk [vmem:[#allocation2 + $0x44] sm:$0xf] %vm1269, %v1158
          %1288 = vst.msk [vmem:[#allocation2 + $0x48] sm:$0xf] %vm1269, %v1159
          %1289 = vst.msk [vmem:[#allocation2 + $0x4c] sm:$0xf] %vm1269, %v1160
          %1290 = vst.msk [vmem:[#allocation2 + $0x50] sm:$0xf] %vm1269, %v1161
          %1291 = vst.msk [vmem:[#allocation2 + $0x54] sm:$0xf] %vm1269, %v1162
          %1292 = vst.msk [vmem:[#allocation2 + $0x58] sm:$0xf] %vm1269, %v1163
          %1293 = vst.msk [vmem:[#allocation2 + $0x5c] sm:$0xf] %vm1269, %v1164
          %1294 = vst.msk [vmem:[#allocation2 + $0x60] sm:$0xf] %vm1269, %v1165
          %1295 = vst.msk [vmem:[#allocation2 + $0x64] sm:$0xf] %vm1269, %v1166
          %1296 = vst.msk [vmem:[#allocation2 + $0x68] sm:$0xf] %vm1269, %v1167
          %1297 = vst.msk [vmem:[#allocation2 + $0x6c] sm:$0xf] %vm1269, %v1168
          %1298 = vst.msk [vmem:[#allocation2 + $0x70] sm:$0xf] %vm1269, %v1169
          %1299 = vst.msk [vmem:[#allocation2 + $0x74] sm:$0xf] %vm1269, %v1170
          %1300 = vst.msk [vmem:[#allocation2 + $0x78] sm:$0xf] %vm1269, %v1171
          %1301 = vst.msk [vmem:[#allocation2 + $0x7c] sm:$0xf] %vm1269, %v1172
          %1302 = vst.msk [vmem:[#allocation2 + $0x80] sm:$0xf] %vm1269, %v1173
          %1303 = vst.msk [vmem:[#allocation2 + $0x84] sm:$0xf] %vm1269, %v1174
          %1304 = vst.msk [vmem:[#allocation2 + $0x88] sm:$0xf] %vm1269, %v1175
          %1305 = vst.msk [vmem:[#allocation2 + $0x8c] sm:$0xf] %vm1269, %v1176
          %1306 = vst.msk [vmem:[#allocation2 + $0x90] sm:$0xf] %vm1269, %v1177
          %1307 = vst.msk [vmem:[#allocation2 + $0x94] sm:$0xf] %vm1269, %v1178
          %1308 = vst.msk [vmem:[#allocation2 + $0x98] sm:$0xf] %vm1269, %v1179
          %1309 = vst.msk [vmem:[#allocation2 + $0x9c] sm:$0xf] %vm1269, %v1180
          %1310 = vst.msk [vmem:[#allocation2 + $0xa0] sm:$0xf] %vm1269, %v1181
          %1311 = vst.msk [vmem:[#allocation2 + $0xa4] sm:$0xf] %vm1269, %v1182
          %1312 = vst.msk [vmem:[#allocation2 + $0xa8] sm:$0xf] %vm1269, %v1183
          %1313 = vst.msk [vmem:[#allocation2 + $0xac] sm:$0xf] %vm1269, %v1184
          %1314 = vst.msk [vmem:[#allocation2 + $0xb0] sm:$0xf] %vm1269, %v1185
          %1315 = vst.msk [vmem:[#allocation2 + $0xb4] sm:$0xf] %vm1269, %v1186
          %1316 = vst.msk [vmem:[#allocation2 + $0xb8] sm:$0xf] %vm1269, %v1187
          %1317 = vst.msk [vmem:[#allocation2 + $0xbc] sm:$0xf] %vm1269, %v1188
          %1318 = vst.msk [vmem:[#allocation2 + $0xc0] sm:$0xf] %vm1269, %v1189
          %1319 = vst.msk [vmem:[#allocation2 + $0xc4] sm:$0xf] %vm1269, %v1190
          %1320 = vst.msk [vmem:[#allocation2 + $0xc8] sm:$0xf] %vm1269, %v1191
          %1321 = vst.msk [vmem:[#allocation2 + $0xcc] sm:$0xf] %vm1269, %v1192
          %1322 = vst.msk [vmem:[#allocation2 + $0xd0] sm:$0xf] %vm1269, %v1193
          %1323 = vst.msk [vmem:[#allocation2 + $0xd4] sm:$0xf] %vm1269, %v1194
          %1324 = vst.msk [vmem:[#allocation2 + $0xd8] sm:$0xf] %vm1269, %v1195
          %1325 = vst.msk [vmem:[#allocation2 + $0xdc] sm:$0xf] %vm1269, %v1196
          %1326 = vst.msk [vmem:[#allocation2 + $0xe0] sm:$0xf] %vm1269, %v1197
          %1327 = vst.msk [vmem:[#allocation2 + $0xe4] sm:$0xf] %vm1269, %v1198
          %1328 = vst.msk [vmem:[#allocation2 + $0xe8] sm:$0xf] %vm1269, %v1199
          %1329 = vst.msk [vmem:[#allocation2 + $0xec] sm:$0xf] %vm1269, %v1200
          %1330 = vst.msk [vmem:[#allocation2 + $0xf0] sm:$0xf] %vm1269, %v1201
          %1331 = vst.msk [vmem:[#allocation2 + $0xf4] sm:$0xf] %vm1269, %v1202
          %1332 = vst.msk [vmem:[#allocation2 + $0xf8] sm:$0xf] %vm1269, %v1203
          %1333 = vst.msk [vmem:[#allocation2 + $0xfc] sm:$0xf] %vm1269, %v1204
          %1398 = vrot.lane.b32.xlu0 %v695, 112
          %v1399 = vpop.permute.xlu0 %1398
          %1400 = vrot.lane.b32.xlu0 %v700, 112
          %v1401 = vpop.permute.xlu0 %1400
          %1402 = vrot.lane.b32.xlu0 %v705, 112
          %v1403 = vpop.permute.xlu0 %1402
          %1404 = vrot.lane.b32.xlu0 %v710, 112
          %v1405 = vpop.permute.xlu0 %1404
          %1406 = vrot.lane.b32.xlu0 %v715, 112
          %v1407 = vpop.permute.xlu0 %1406
          %1408 = vrot.lane.b32.xlu0 %v720, 112
          %v1409 = vpop.permute.xlu0 %1408
          %1410 = vrot.lane.b32.xlu0 %v725, 112
          %v1411 = vpop.permute.xlu0 %1410
          %1412 = vrot.lane.b32.xlu0 %v730, 112
          %v1413 = vpop.permute.xlu0 %1412
          %1414 = vrot.lane.b32.xlu0 %v735, 112
          %v1415 = vpop.permute.xlu0 %1414
          %1416 = vrot.lane.b32.xlu0 %v740, 112
          %v1417 = vpop.permute.xlu0 %1416
          %1418 = vrot.lane.b32.xlu0 %v745, 112
          %v1419 = vpop.permute.xlu0 %1418
          %1420 = vrot.lane.b32.xlu0 %v750, 112
          %v1421 = vpop.permute.xlu0 %1420
          %1422 = vrot.lane.b32.xlu0 %v755, 112
          %v1423 = vpop.permute.xlu0 %1422
          %1424 = vrot.lane.b32.xlu0 %v760, 112
          %v1425 = vpop.permute.xlu0 %1424
          %1426 = vrot.lane.b32.xlu0 %v765, 112
          %v1427 = vpop.permute.xlu0 %1426
          %1428 = vrot.lane.b32.xlu0 %v770, 112
          %v1429 = vpop.permute.xlu0 %1428
          %1430 = vrot.lane.b32.xlu0 %v775, 112
          %v1431 = vpop.permute.xlu0 %1430
          %1432 = vrot.lane.b32.xlu0 %v780, 112
          %v1433 = vpop.permute.xlu0 %1432
          %1434 = vrot.lane.b32.xlu0 %v785, 112
          %v1435 = vpop.permute.xlu0 %1434
          %1436 = vrot.lane.b32.xlu0 %v790, 112
          %v1437 = vpop.permute.xlu0 %1436
          %1438 = vrot.lane.b32.xlu0 %v795, 112
          %v1439 = vpop.permute.xlu0 %1438
          %1440 = vrot.lane.b32.xlu0 %v800, 112
          %v1441 = vpop.permute.xlu0 %1440
          %1442 = vrot.lane.b32.xlu0 %v805, 112
          %v1443 = vpop.permute.xlu0 %1442
          %1444 = vrot.lane.b32.xlu0 %v810, 112
          %v1445 = vpop.permute.xlu0 %1444
          %1446 = vrot.lane.b32.xlu0 %v815, 112
          %v1447 = vpop.permute.xlu0 %1446
          %1448 = vrot.lane.b32.xlu0 %v820, 112
          %v1449 = vpop.permute.xlu0 %1448
          %1450 = vrot.lane.b32.xlu0 %v825, 112
          %v1451 = vpop.permute.xlu0 %1450
          %1452 = vrot.lane.b32.xlu0 %v830, 112
          %v1453 = vpop.permute.xlu0 %1452
          %1454 = vrot.lane.b32.xlu0 %v835, 112
          %v1455 = vpop.permute.xlu0 %1454
          %1456 = vrot.lane.b32.xlu0 %v840, 112
          %v1457 = vpop.permute.xlu0 %1456
          %1458 = vrot.lane.b32.xlu0 %v845, 112
          %v1459 = vpop.permute.xlu0 %1458
          %1460 = vrot.lane.b32.xlu0 %v850, 112
          %v1461 = vpop.permute.xlu0 %1460
          %1462 = vrot.lane.b32.xlu0 %v855, 112
          %v1463 = vpop.permute.xlu0 %1462
          %1464 = vrot.lane.b32.xlu0 %v860, 112
          %v1465 = vpop.permute.xlu0 %1464
          %1466 = vrot.lane.b32.xlu0 %v865, 112
          %v1467 = vpop.permute.xlu0 %1466
          %1468 = vrot.lane.b32.xlu0 %v870, 112
          %v1469 = vpop.permute.xlu0 %1468
          %1470 = vrot.lane.b32.xlu0 %v875, 112
          %v1471 = vpop.permute.xlu0 %1470
          %1472 = vrot.lane.b32.xlu0 %v880, 112
          %v1473 = vpop.permute.xlu0 %1472
          %1474 = vrot.lane.b32.xlu0 %v885, 112
          %v1475 = vpop.permute.xlu0 %1474
          %1476 = vrot.lane.b32.xlu0 %v890, 112
          %v1477 = vpop.permute.xlu0 %1476
          %1478 = vrot.lane.b32.xlu0 %v895, 112
          %v1479 = vpop.permute.xlu0 %1478
          %1480 = vrot.lane.b32.xlu0 %v900, 112
          %v1481 = vpop.permute.xlu0 %1480
          %1482 = vrot.lane.b32.xlu0 %v905, 112
          %v1483 = vpop.permute.xlu0 %1482
          %1484 = vrot.lane.b32.xlu0 %v910, 112
          %v1485 = vpop.permute.xlu0 %1484
          %1486 = vrot.lane.b32.xlu0 %v915, 112
          %v1487 = vpop.permute.xlu0 %1486
          %1488 = vrot.lane.b32.xlu0 %v920, 112
          %v1489 = vpop.permute.xlu0 %1488
          %1490 = vrot.lane.b32.xlu0 %v925, 112
          %v1491 = vpop.permute.xlu0 %1490
          %1492 = vrot.lane.b32.xlu0 %v930, 112
          %v1493 = vpop.permute.xlu0 %1492
          %1494 = vrot.lane.b32.xlu0 %v935, 112
          %v1495 = vpop.permute.xlu0 %1494
          %1496 = vrot.lane.b32.xlu0 %v940, 112
          %v1497 = vpop.permute.xlu0 %1496
          %1498 = vrot.lane.b32.xlu0 %v945, 112
          %v1499 = vpop.permute.xlu0 %1498
          %1500 = vrot.lane.b32.xlu0 %v950, 112
          %v1501 = vpop.permute.xlu0 %1500
          %1502 = vrot.lane.b32.xlu0 %v955, 112
          %v1503 = vpop.permute.xlu0 %1502
          %1504 = vrot.lane.b32.xlu0 %v960, 112
          %v1505 = vpop.permute.xlu0 %1504
          %1506 = vrot.lane.b32.xlu0 %v965, 112
          %v1507 = vpop.permute.xlu0 %1506
          %1508 = vrot.lane.b32.xlu0 %v970, 112
          %v1509 = vpop.permute.xlu0 %1508
          %1510 = vrot.lane.b32.xlu0 %v975, 112
          %v1511 = vpop.permute.xlu0 %1510
          %1512 = vrot.lane.b32.xlu0 %v980, 112
          %v1513 = vpop.permute.xlu0 %1512
          %1514 = vrot.lane.b32.xlu0 %v985, 112
          %v1515 = vpop.permute.xlu0 %1514
          %1516 = vrot.lane.b32.xlu0 %v990, 112
          %v1517 = vpop.permute.xlu0 %1516
          %1518 = vrot.lane.b32.xlu0 %v995, 112
          %v1519 = vpop.permute.xlu0 %1518
          %1520 = vrot.lane.b32.xlu0 %v1000, 112
          %v1521 = vpop.permute.xlu0 %1520
          %1522 = vrot.lane.b32.xlu0 %v1005, 112
          %v1523 = vpop.permute.xlu0 %1522
          %1524 = vrot.lane.b32.xlu0 %v1010, 112
          %v1525 = vpop.permute.xlu0 %1524
          %vm1590 = vcmask 15360
          %1591 = vst.msk [vmem:[#allocation3] sm:$0xff] %vm1590, %v1399
          %1592 = vst.msk [vmem:[#allocation3 + $0x8] sm:$0xff] %vm1590, %v1401
          %1593 = vst.msk [vmem:[#allocation3 + $0x10] sm:$0xff] %vm1590, %v1403
          %1594 = vst.msk [vmem:[#allocation3 + $0x18] sm:$0xff] %vm1590, %v1405
          %1595 = vst.msk [vmem:[#allocation3 + $0x20] sm:$0xff] %vm1590, %v1407
          %1596 = vst.msk [vmem:[#allocation3 + $0x28] sm:$0xff] %vm1590, %v1409
          %1597 = vst.msk [vmem:[#allocation3 + $0x30] sm:$0xff] %vm1590, %v1411
          %1598 = vst.msk [vmem:[#allocation3 + $0x38] sm:$0xff] %vm1590, %v1413
          %1599 = vst.msk [vmem:[#allocation3 + $0x40] sm:$0xff] %vm1590, %v1415
          %1600 = vst.msk [vmem:[#allocation3 + $0x48] sm:$0xff] %vm1590, %v1417
          %1601 = vst.msk [vmem:[#allocation3 + $0x50] sm:$0xff] %vm1590, %v1419
          %1602 = vst.msk [vmem:[#allocation3 + $0x58] sm:$0xff] %vm1590, %v1421
          %1603 = vst.msk [vmem:[#allocation3 + $0x60] sm:$0xff] %vm1590, %v1423
          %1604 = vst.msk [vmem:[#allocation3 + $0x68] sm:$0xff] %vm1590, %v1425
          %1605 = vst.msk [vmem:[#allocation3 + $0x70] sm:$0xff] %vm1590, %v1427
          %1606 = vst.msk [vmem:[#allocation3 + $0x78] sm:$0xff] %vm1590, %v1429
          %1607 = vst.msk [vmem:[#allocation3 + $0x80] sm:$0xff] %vm1590, %v1431
          %1608 = vst.msk [vmem:[#allocation3 + $0x88] sm:$0xff] %vm1590, %v1433
          %1609 = vst.msk [vmem:[#allocation3 + $0x90] sm:$0xff] %vm1590, %v1435
          %1610 = vst.msk [vmem:[#allocation3 + $0x98] sm:$0xff] %vm1590, %v1437
          %1611 = vst.msk [vmem:[#allocation3 + $0xa0] sm:$0xff] %vm1590, %v1439
          %1612 = vst.msk [vmem:[#allocation3 + $0xa8] sm:$0xff] %vm1590, %v1441
          %1613 = vst.msk [vmem:[#allocation3 + $0xb0] sm:$0xff] %vm1590, %v1443
          %1614 = vst.msk [vmem:[#allocation3 + $0xb8] sm:$0xff] %vm1590, %v1445
          %1615 = vst.msk [vmem:[#allocation3 + $0xc0] sm:$0xff] %vm1590, %v1447
          %1616 = vst.msk [vmem:[#allocation3 + $0xc8] sm:$0xff] %vm1590, %v1449
          %1617 = vst.msk [vmem:[#allocation3 + $0xd0] sm:$0xff] %vm1590, %v1451
          %1618 = vst.msk [vmem:[#allocation3 + $0xd8] sm:$0xff] %vm1590, %v1453
          %1619 = vst.msk [vmem:[#allocation3 + $0xe0] sm:$0xff] %vm1590, %v1455
          %1620 = vst.msk [vmem:[#allocation3 + $0xe8] sm:$0xff] %vm1590, %v1457
          %1621 = vst.msk [vmem:[#allocation3 + $0xf0] sm:$0xff] %vm1590, %v1459
          %1622 = vst.msk [vmem:[#allocation3 + $0xf8] sm:$0xff] %vm1590, %v1461
          %1623 = vst.msk [vmem:[#allocation3 + $0x100] sm:$0xff] %vm1590, %v1463
          %1624 = vst.msk [vmem:[#allocation3 + $0x108] sm:$0xff] %vm1590, %v1465
          %1625 = vst.msk [vmem:[#allocation3 + $0x110] sm:$0xff] %vm1590, %v1467
          %1626 = vst.msk [vmem:[#allocation3 + $0x118] sm:$0xff] %vm1590, %v1469
          %1627 = vst.msk [vmem:[#allocation3 + $0x120] sm:$0xff] %vm1590, %v1471
          %1628 = vst.msk [vmem:[#allocation3 + $0x128] sm:$0xff] %vm1590, %v1473
          %1629 = vst.msk [vmem:[#allocation3 + $0x130] sm:$0xff] %vm1590, %v1475
          %1630 = vst.msk [vmem:[#allocation3 + $0x138] sm:$0xff] %vm1590, %v1477
          %1631 = vst.msk [vmem:[#allocation3 + $0x140] sm:$0xff] %vm1590, %v1479
          %1632 = vst.msk [vmem:[#allocation3 + $0x148] sm:$0xff] %vm1590, %v1481
          %1633 = vst.msk [vmem:[#allocation3 + $0x150] sm:$0xff] %vm1590, %v1483
          %1634 = vst.msk [vmem:[#allocation3 + $0x158] sm:$0xff] %vm1590, %v1485
          %1635 = vst.msk [vmem:[#allocation3 + $0x160] sm:$0xff] %vm1590, %v1487
          %1636 = vst.msk [vmem:[#allocation3 + $0x168] sm:$0xff] %vm1590, %v1489
          %1637 = vst.msk [vmem:[#allocation3 + $0x170] sm:$0xff] %vm1590, %v1491
          %1638 = vst.msk [vmem:[#allocation3 + $0x178] sm:$0xff] %vm1590, %v1493
          %1639 = vst.msk [vmem:[#allocation3 + $0x180] sm:$0xff] %vm1590, %v1495
          %1640 = vst.msk [vmem:[#allocation3 + $0x188] sm:$0xff] %vm1590, %v1497
          %1641 = vst.msk [vmem:[#allocation3 + $0x190] sm:$0xff] %vm1590, %v1499
          %1642 = vst.msk [vmem:[#allocation3 + $0x198] sm:$0xff] %vm1590, %v1501
          %1643 = vst.msk [vmem:[#allocation3 + $0x1a0] sm:$0xff] %vm1590, %v1503
          %1644 = vst.msk [vmem:[#allocation3 + $0x1a8] sm:$0xff] %vm1590, %v1505
          %1645 = vst.msk [vmem:[#allocation3 + $0x1b0] sm:$0xff] %vm1590, %v1507
          %1646 = vst.msk [vmem:[#allocation3 + $0x1b8] sm:$0xff] %vm1590, %v1509
          %1647 = vst.msk [vmem:[#allocation3 + $0x1c0] sm:$0xff] %vm1590, %v1511
          %1648 = vst.msk [vmem:[#allocation3 + $0x1c8] sm:$0xff] %vm1590, %v1513
          %1649 = vst.msk [vmem:[#allocation3 + $0x1d0] sm:$0xff] %vm1590, %v1515
          %1650 = vst.msk [vmem:[#allocation3 + $0x1d8] sm:$0xff] %vm1590, %v1517
          %1651 = vst.msk [vmem:[#allocation3 + $0x1e0] sm:$0xff] %vm1590, %v1519
          %1652 = vst.msk [vmem:[#allocation3 + $0x1e8] sm:$0xff] %vm1590, %v1521
          %1653 = vst.msk [vmem:[#allocation3 + $0x1f0] sm:$0xff] %vm1590, %v1523
          %1654 = vst.msk [vmem:[#allocation3 + $0x1f8] sm:$0xff] %vm1590, %v1525
        $region60: #{tpu_custom_call.1} parent=43 // pred_fallthru
          _
        %s1655 = smul.u32 %s30, 128
        %s1656 = scalar_lea.vmem %s345, %s1655
        %v1657 = vld [vmem:[%s1656] sm:$0xff]
        %v1658 = vld [vmem:[%s1656 + $0x8] sm:$0xff]
        %v1659 = vld [vmem:[%s1656 + $0x10] sm:$0xff]
        %v1660 = vld [vmem:[%s1656 + $0x18] sm:$0xff]
        %v1661 = vld [vmem:[%s1656 + $0x20] sm:$0xff]
        %v1662 = vld [vmem:[%s1656 + $0x28] sm:$0xff]
        %v1663 = vld [vmem:[%s1656 + $0x30] sm:$0xff]
        %v1664 = vld [vmem:[%s1656 + $0x38] sm:$0xff]
        %v1665 = vld [vmem:[%s1656 + $0x40] sm:$0xff]
        %v1666 = vld [vmem:[%s1656 + $0x48] sm:$0xff]
        %v1667 = vld [vmem:[%s1656 + $0x50] sm:$0xff]
        %v1668 = vld [vmem:[%s1656 + $0x58] sm:$0xff]
        %v1669 = vld [vmem:[%s1656 + $0x60] sm:$0xff]
        %v1670 = vld [vmem:[%s1656 + $0x68] sm:$0xff]
        %v1671 = vld [vmem:[%s1656 + $0x70] sm:$0xff]
        %v1672 = vld [vmem:[%s1656 + $0x78] sm:$0xff]
        %v1673 = vld [vmem:[%s3] sm:$0xff]
        %v1674 = vld [vmem:[%s3 + $0x8] sm:$0xff]
        %v1675 = vld [vmem:[#allocation10] sm:$0x1]
        %v1677 = vlaneseq
        %v1678 = vshrl.u32 %v1677, 7
        %v1679 = vsub.s32 0, %v1678
        %v1680 = vrot.slane %v1675, %v1679
        %vm1682 = vcmask 130048
        %v1684 = vsel %vm1682, %v1657, 0
        %v1687 = vsel %vm1682, %v1658, 0
        %v1690 = vsel %vm1682, %v1659, 0
        %v1693 = vsel %vm1682, %v1660, 0
        %v1696 = vsel %vm1682, %v1661, 0
        %v1699 = vsel %vm1682, %v1662, 0
        %v1702 = vsel %vm1682, %v1663, 0
        %v1705 = vsel %vm1682, %v1664, 0
        %v1708 = vsel %vm1682, %v1665, 0
        %v1711 = vsel %vm1682, %v1666, 0
        %v1714 = vsel %vm1682, %v1667, 0
        %v1717 = vsel %vm1682, %v1668, 0
        %v1720 = vsel %vm1682, %v1669, 0
        %v1723 = vsel %vm1682, %v1670, 0
        %v1726 = vsel %vm1682, %v1671, 0
        %v1729 = vsel %vm1682, %v1672, 0
        %1731 = vmatprep.subr.mxu0 0.0
        %1732 = vmatpush1.msra.mxu0 0.0
        %1733 = vmatprep.subr.mxu0 0.0
        %1734 = vmatpush1.msra.mxu0 0.0
        %1735 = vmatprep.subr.mxu0 0.0
        %1736 = vmatpush1.msra.mxu0 0.0
        %1737 = vmatprep.subr.mxu0 0.0
        %1738 = vmatpush1.msra.mxu0 0.0
        %1739 = vmatprep.subr.mxu0 0.0
        %1740 = vmatpush1.msra.mxu0 0.0
        %1741 = vmatprep.subr.mxu0 0.0
        %1742 = vmatpush1.msra.mxu0 0.0
        %1743 = vmatprep.subr.mxu0 0.0
        %1744 = vmatpush1.msra.mxu0 0.0
        %1745 = vmatprep.subr.mxu0 0.0
        %1746 = vmatpush1.msra.mxu0 0.0
        %1747 = vmatprep.subr.mxu0 0.0
        %1748 = vmatpush1.msra.mxu0 0.0
        %1749 = vmatprep.subr.mxu0 0.0
        %1750 = vmatpush1.msra.mxu0 0.0
        %1751 = vmatprep.subr.mxu0 0.0
        %1752 = vmatpush1.msra.mxu0 0.0
        %1753 = vmatprep.subr.mxu0 0.0
        %1754 = vmatpush1.msra.mxu0 0.0
        %1755 = vmatprep.subr.mxu0 0.0
        %1756 = vmatpush1.msra.mxu0 0.0
        %1757 = vmatprep.subr.mxu0 0.0
        %1758 = vmatpush1.msra.mxu0 0.0
        %1759 = vmatprep.subr.mxu0 0.0
        %1760 = vmatpush1.msra.mxu0 %v1674
        %1761 = vmatprep.subr.mxu0 0.0
        %1762 = vmatpush1.msra.mxu0 %v1673
        %1763 = vmatprep.subr.mxu0 0.0
        %1764 = vmatpush2.msra.mxu0 0.0
        %1765 = vmatprep.subr.mxu0 0.0
        %1766 = vmatpush2.msra.mxu0 0.0
        %1767 = vmatprep.subr.mxu0 0.0
        %1768 = vmatpush2.msra.mxu0 0.0
        %1769 = vmatprep.subr.mxu0 0.0
        %1770 = vmatpush2.msra.mxu0 0.0
        %1771 = vmatprep.subr.mxu0 0.0
        %1772 = vmatpush2.msra.mxu0 0.0
        %1773 = vmatprep.subr.mxu0 0.0
        %1774 = vmatpush2.msra.mxu0 0.0
        %1775 = vmatprep.subr.mxu0 0.0
        %1776 = vmatpush2.msra.mxu0 0.0
        %1777 = vmatprep.subr.mxu0 0.0
        %1778 = vmatpush2.msra.mxu0 0.0
        %1779 = vmatprep.subr.mxu0 0.0
        %1780 = vmatpush2.msra.mxu0 0.0
        %1781 = vmatprep.subr.mxu0 0.0
        %1782 = vmatpush2.msra.mxu0 0.0
        %1783 = vmatprep.subr.mxu0 0.0
        %1784 = vmatpush2.msra.mxu0 0.0
        %1785 = vmatprep.subr.mxu0 0.0
        %1786 = vmatpush2.msra.mxu0 0.0
        %1787 = vmatprep.subr.mxu0 0.0
        %1788 = vmatpush2.msra.mxu0 0.0
        %1789 = vmatprep.subr.mxu0 0.0
        %1790 = vmatpush2.msra.mxu0 0.0
        %1791 = vmatprep.subr.mxu0 0.0
        %1792 = vmatpush2.msra.mxu0 0.0
        %1793 = vmatprep.subr.mxu0 0.0
        %1794 = vmatpush2.msra.mxu0 0.0
        %1795 = vmatprep.mubr.f32.mxu0 0.0
        %1796 = vmatmul.mubr.f32.gmra.mxu0 %v1684
        %v1797 = vpop.f32.mrf.mxu0
        %v1798 = vadd.f32 %v1680, %v1797
        %v1799 = vpop.f32.mrf.mxu0
        %1800 = vmatprep.mubr.f32.mxu0 0.0
        %1801 = vmatmul.mubr.f32.gmra.mxu0 %v1687
        %v1802 = vpop.f32.mrf.mxu0
        %v1803 = vadd.f32 %v1680, %v1802
        %v1804 = vpop.f32.mrf.mxu0
        %1805 = vmatprep.mubr.f32.mxu0 0.0
        %1806 = vmatmul.mubr.f32.gmra.mxu0 %v1690
        %v1807 = vpop.f32.mrf.mxu0
        %v1808 = vadd.f32 %v1680, %v1807
        %v1809 = vpop.f32.mrf.mxu0
        %1810 = vmatprep.mubr.f32.mxu0 0.0
        %1811 = vmatmul.mubr.f32.gmra.mxu0 %v1693
        %v1812 = vpop.f32.mrf.mxu0
        %v1813 = vadd.f32 %v1680, %v1812
        %v1814 = vpop.f32.mrf.mxu0
        %1815 = vmatprep.mubr.f32.mxu0 0.0
        %1816 = vmatmul.mubr.f32.gmra.mxu0 %v1696
        %v1817 = vpop.f32.mrf.mxu0
        %v1818 = vadd.f32 %v1680, %v1817
        %v1819 = vpop.f32.mrf.mxu0
        %1820 = vmatprep.mubr.f32.mxu0 0.0
        %1821 = vmatmul.mubr.f32.gmra.mxu0 %v1699
        %v1822 = vpop.f32.mrf.mxu0
        %v1823 = vadd.f32 %v1680, %v1822
        %v1824 = vpop.f32.mrf.mxu0
        %1825 = vmatprep.mubr.f32.mxu0 0.0
        %1826 = vmatmul.mubr.f32.gmra.mxu0 %v1702
        %v1827 = vpop.f32.mrf.mxu0
        %v1828 = vadd.f32 %v1680, %v1827
        %v1829 = vpop.f32.mrf.mxu0
        %1830 = vmatprep.mubr.f32.mxu0 0.0
        %1831 = vmatmul.mubr.f32.gmra.mxu0 %v1705
        %v1832 = vpop.f32.mrf.mxu0
        %v1833 = vadd.f32 %v1680, %v1832
        %v1834 = vpop.f32.mrf.mxu0
        %1835 = vmatprep.mubr.f32.mxu0 0.0
        %1836 = vmatmul.mubr.f32.gmra.mxu0 %v1708
        %v1837 = vpop.f32.mrf.mxu0
        %v1838 = vadd.f32 %v1680, %v1837
        %v1839 = vpop.f32.mrf.mxu0
        %1840 = vmatprep.mubr.f32.mxu0 0.0
        %1841 = vmatmul.mubr.f32.gmra.mxu0 %v1711
        %v1842 = vpop.f32.mrf.mxu0
        %v1843 = vadd.f32 %v1680, %v1842
        %v1844 = vpop.f32.mrf.mxu0
        %1845 = vmatprep.mubr.f32.mxu0 0.0
        %1846 = vmatmul.mubr.f32.gmra.mxu0 %v1714
        %v1847 = vpop.f32.mrf.mxu0
        %v1848 = vadd.f32 %v1680, %v1847
        %v1849 = vpop.f32.mrf.mxu0
        %1850 = vmatprep.mubr.f32.mxu0 0.0
        %1851 = vmatmul.mubr.f32.gmra.mxu0 %v1717
        %v1852 = vpop.f32.mrf.mxu0
        %v1853 = vadd.f32 %v1680, %v1852
        %v1854 = vpop.f32.mrf.mxu0
        %1855 = vmatprep.mubr.f32.mxu0 0.0
        %1856 = vmatmul.mubr.f32.gmra.mxu0 %v1720
        %v1857 = vpop.f32.mrf.mxu0
        %v1858 = vadd.f32 %v1680, %v1857
        %v1859 = vpop.f32.mrf.mxu0
        %1860 = vmatprep.mubr.f32.mxu0 0.0
        %1861 = vmatmul.mubr.f32.gmra.mxu0 %v1723
        %v1862 = vpop.f32.mrf.mxu0
        %v1863 = vadd.f32 %v1680, %v1862
        %v1864 = vpop.f32.mrf.mxu0
        %1865 = vmatprep.mubr.f32.mxu0 0.0
        %1866 = vmatmul.mubr.f32.gmra.mxu0 %v1726
        %v1867 = vpop.f32.mrf.mxu0
        %v1868 = vadd.f32 %v1680, %v1867
        %v1869 = vpop.f32.mrf.mxu0
        %1870 = vmatprep.mubr.f32.mxu0 0.0
        %1871 = vmatmul.mubr.f32.gmra.mxu0 %v1729
        %v1872 = vpop.f32.mrf.mxu0
        %v1873 = vadd.f32 %v1680, %v1872
        %v1874 = vpop.f32.mrf.mxu0
        %1875 = vdwg.mxu0
        %v1876 = vld [vmem:[#allocation3] sm:$0xff]
        %v1877 = vld [vmem:[#allocation3 + $0x8] sm:$0xff]
        %v1878 = vld [vmem:[#allocation3 + $0x10] sm:$0xff]
        %v1879 = vld [vmem:[#allocation3 + $0x18] sm:$0xff]
        %v1880 = vld [vmem:[#allocation3 + $0x20] sm:$0xff]
        %v1881 = vld [vmem:[#allocation3 + $0x28] sm:$0xff]
        %v1882 = vld [vmem:[#allocation3 + $0x30] sm:$0xff]
        %v1883 = vld [vmem:[#allocation3 + $0x38] sm:$0xff]
        %v1884 = vld [vmem:[#allocation3 + $0x40] sm:$0xff]
        %v1885 = vld [vmem:[#allocation3 + $0x48] sm:$0xff]
        %v1886 = vld [vmem:[#allocation3 + $0x50] sm:$0xff]
        %v1887 = vld [vmem:[#allocation3 + $0x58] sm:$0xff]
        %v1888 = vld [vmem:[#allocation3 + $0x60] sm:$0xff]
        %v1889 = vld [vmem:[#allocation3 + $0x68] sm:$0xff]
        %v1890 = vld [vmem:[#allocation3 + $0x70] sm:$0xff]
        %v1891 = vld [vmem:[#allocation3 + $0x78] sm:$0xff]
        %v1892 = vld [vmem:[#allocation3 + $0x80] sm:$0xff]
        %v1893 = vld [vmem:[#allocation3 + $0x88] sm:$0xff]
        %v1894 = vld [vmem:[#allocation3 + $0x90] sm:$0xff]
        %v1895 = vld [vmem:[#allocation3 + $0x98] sm:$0xff]
        %v1896 = vld [vmem:[#allocation3 + $0xa0] sm:$0xff]
        %v1897 = vld [vmem:[#allocation3 + $0xa8] sm:$0xff]
        %v1898 = vld [vmem:[#allocation3 + $0xb0] sm:$0xff]
        %v1899 = vld [vmem:[#allocation3 + $0xb8] sm:$0xff]
        %v1900 = vld [vmem:[#allocation3 + $0xc0] sm:$0xff]
        %v1901 = vld [vmem:[#allocation3 + $0xc8] sm:$0xff]
        %v1902 = vld [vmem:[#allocation3 + $0xd0] sm:$0xff]
        %v1903 = vld [vmem:[#allocation3 + $0xd8] sm:$0xff]
        %v1904 = vld [vmem:[#allocation3 + $0xe0] sm:$0xff]
        %v1905 = vld [vmem:[#allocation3 + $0xe8] sm:$0xff]
        %v1906 = vld [vmem:[#allocation3 + $0xf0] sm:$0xff]
        %v1907 = vld [vmem:[#allocation3 + $0xf8] sm:$0xff]
        %v1908 = vld [vmem:[#allocation3 + $0x100] sm:$0xff]
        %v1909 = vld [vmem:[#allocation3 + $0x108] sm:$0xff]
        %v1910 = vld [vmem:[#allocation3 + $0x110] sm:$0xff]
        %v1911 = vld [vmem:[#allocation3 + $0x118] sm:$0xff]
        %v1912 = vld [vmem:[#allocation3 + $0x120] sm:$0xff]
        %v1913 = vld [vmem:[#allocation3 + $0x128] sm:$0xff]
        %v1914 = vld [vmem:[#allocation3 + $0x130] sm:$0xff]
        %v1915 = vld [vmem:[#allocation3 + $0x138] sm:$0xff]
        %v1916 = vld [vmem:[#allocation3 + $0x140] sm:$0xff]
        %v1917 = vld [vmem:[#allocation3 + $0x148] sm:$0xff]
        %v1918 = vld [vmem:[#allocation3 + $0x150] sm:$0xff]
        %v1919 = vld [vmem:[#allocation3 + $0x158] sm:$0xff]
        %v1920 = vld [vmem:[#allocation3 + $0x160] sm:$0xff]
        %v1921 = vld [vmem:[#allocation3 + $0x168] sm:$0xff]
        %v1922 = vld [vmem:[#allocation3 + $0x170] sm:$0xff]
        %v1923 = vld [vmem:[#allocation3 + $0x178] sm:$0xff]
        %v1924 = vld [vmem:[#allocation3 + $0x180] sm:$0xff]
        %v1925 = vld [vmem:[#allocation3 + $0x188] sm:$0xff]
        %v1926 = vld [vmem:[#allocation3 + $0x190] sm:$0xff]
        %v1927 = vld [vmem:[#allocation3 + $0x198] sm:$0xff]
        %v1928 = vld [vmem:[#allocation3 + $0x1a0] sm:$0xff]
        %v1929 = vld [vmem:[#allocation3 + $0x1a8] sm:$0xff]
        %v1930 = vld [vmem:[#allocation3 + $0x1b0] sm:$0xff]
        %v1931 = vld [vmem:[#allocation3 + $0x1b8] sm:$0xff]
        %v1932 = vld [vmem:[#allocation3 + $0x1c0] sm:$0xff]
        %v1933 = vld [vmem:[#allocation3 + $0x1c8] sm:$0xff]
        %v1934 = vld [vmem:[#allocation3 + $0x1d0] sm:$0xff]
        %v1935 = vld [vmem:[#allocation3 + $0x1d8] sm:$0xff]
        %v1936 = vld [vmem:[#allocation3 + $0x1e0] sm:$0xff]
        %v1937 = vld [vmem:[#allocation3 + $0x1e8] sm:$0xff]
        %v1938 = vld [vmem:[#allocation3 + $0x1f0] sm:$0xff]
        %v1939 = vld [vmem:[#allocation3 + $0x1f8] sm:$0xff]
        %vm1940 = vcmask 15360
        %v1942 = vsel %vm1940, %v1798, 0
        %v1945 = vsel %vm1940, %v1803, 0
        %v1948 = vsel %vm1940, %v1808, 0
        %v1951 = vsel %vm1940, %v1813, 0
        %v1954 = vsel %vm1940, %v1818, 0
        %v1957 = vsel %vm1940, %v1823, 0
        %v1960 = vsel %vm1940, %v1828, 0
        %v1963 = vsel %vm1940, %v1833, 0
        %v1966 = vsel %vm1940, %v1838, 0
        %v1969 = vsel %vm1940, %v1843, 0
        %v1972 = vsel %vm1940, %v1848, 0
        %v1975 = vsel %vm1940, %v1853, 0
        %v1978 = vsel %vm1940, %v1858, 0
        %v1981 = vsel %vm1940, %v1863, 0
        %v1984 = vsel %vm1940, %v1868, 0
        %v1987 = vsel %vm1940, %v1873, 0
        %v1990 = vsel %vm1940, %v1876, 0
        %v1993 = vsel %vm1940, %v1877, 0
        %v1996 = vsel %vm1940, %v1878, 0
        %v1999 = vsel %vm1940, %v1879, 0
        %v2002 = vsel %vm1940, %v1880, 0
        %v2005 = vsel %vm1940, %v1881, 0
        %v2008 = vsel %vm1940, %v1882, 0
        %v2011 = vsel %vm1940, %v1883, 0
        %v2014 = vsel %vm1940, %v1884, 0
        %v2017 = vsel %vm1940, %v1885, 0
        %v2020 = vsel %vm1940, %v1886, 0
        %v2023 = vsel %vm1940, %v1887, 0
        %v2026 = vsel %vm1940, %v1888, 0
        %v2029 = vsel %vm1940, %v1889, 0
        %v2032 = vsel %vm1940, %v1890, 0
        %v2035 = vsel %vm1940, %v1891, 0
        %v2038 = vsel %vm1940, %v1892, 0
        %v2041 = vsel %vm1940, %v1893, 0
        %v2044 = vsel %vm1940, %v1894, 0
        %v2047 = vsel %vm1940, %v1895, 0
        %v2050 = vsel %vm1940, %v1896, 0
        %v2053 = vsel %vm1940, %v1897, 0
        %v2056 = vsel %vm1940, %v1898, 0
        %v2059 = vsel %vm1940, %v1899, 0
        %v2062 = vsel %vm1940, %v1900, 0
        %v2065 = vsel %vm1940, %v1901, 0
        %v2068 = vsel %vm1940, %v1902, 0
        %v2071 = vsel %vm1940, %v1903, 0
        %v2074 = vsel %vm1940, %v1904, 0
        %v2077 = vsel %vm1940, %v1905, 0
        %v2080 = vsel %vm1940, %v1906, 0
        %v2083 = vsel %vm1940, %v1907, 0
        %v2086 = vsel %vm1940, %v1908, 0
        %v2089 = vsel %vm1940, %v1909, 0
        %v2092 = vsel %vm1940, %v1910, 0
        %v2095 = vsel %vm1940, %v1911, 0
        %v2098 = vsel %vm1940, %v1912, 0
        %v2101 = vsel %vm1940, %v1913, 0
        %v2104 = vsel %vm1940, %v1914, 0
        %v2107 = vsel %vm1940, %v1915, 0
        %v2110 = vsel %vm1940, %v1916, 0
        %v2113 = vsel %vm1940, %v1917, 0
        %v2116 = vsel %vm1940, %v1918, 0
        %v2119 = vsel %vm1940, %v1919, 0
        %v2122 = vsel %vm1940, %v1920, 0
        %v2125 = vsel %vm1940, %v1921, 0
        %v2128 = vsel %vm1940, %v1922, 0
        %v2131 = vsel %vm1940, %v1923, 0
        %v2134 = vsel %vm1940, %v1924, 0
        %v2137 = vsel %vm1940, %v1925, 0
        %v2140 = vsel %vm1940, %v1926, 0
        %v2143 = vsel %vm1940, %v1927, 0
        %v2146 = vsel %vm1940, %v1928, 0
        %v2149 = vsel %vm1940, %v1929, 0
        %v2152 = vsel %vm1940, %v1930, 0
        %v2155 = vsel %vm1940, %v1931, 0
        %v2158 = vsel %vm1940, %v1932, 0
        %v2161 = vsel %vm1940, %v1933, 0
        %v2164 = vsel %vm1940, %v1934, 0
        %v2167 = vsel %vm1940, %v1935, 0
        %v2170 = vsel %vm1940, %v1936, 0
        %v2173 = vsel %vm1940, %v1937, 0
        %v2176 = vsel %vm1940, %v1938, 0
        %v2179 = vsel %vm1940, %v1939, 0
        %2181 = vmatprep.subr.mxu0 0.0
        %2182 = vmatpush1.xpose.msra.mxu0 %v2035
        %2183 = vmatprep.subr.mxu0 0.0
        %2184 = vmatpush1.xpose.msra.mxu0 %v2032
        %2185 = vmatprep.subr.mxu0 0.0
        %2186 = vmatpush1.xpose.msra.mxu0 %v2029
        %2187 = vmatprep.subr.mxu0 0.0
        %2188 = vmatpush1.xpose.msra.mxu0 %v2026
        %2189 = vmatprep.subr.mxu0 0.0
        %2190 = vmatpush1.xpose.msra.mxu0 %v2023
        %2191 = vmatprep.subr.mxu0 0.0
        %2192 = vmatpush1.xpose.msra.mxu0 %v2020
        %2193 = vmatprep.subr.mxu0 0.0
        %2194 = vmatpush1.xpose.msra.mxu0 %v2017
        %2195 = vmatprep.subr.mxu0 0.0
        %2196 = vmatpush1.xpose.msra.mxu0 %v2014
        %2197 = vmatprep.subr.mxu0 0.0
        %2198 = vmatpush1.xpose.msra.mxu0 %v2011
        %2199 = vmatprep.subr.mxu0 0.0
        %2200 = vmatpush1.xpose.msra.mxu0 %v2008
        %2201 = vmatprep.subr.mxu0 0.0
        %2202 = vmatpush1.xpose.msra.mxu0 %v2005
        %2203 = vmatprep.subr.mxu0 0.0
        %2204 = vmatpush1.xpose.msra.mxu0 %v2002
        %2205 = vmatprep.subr.mxu0 0.0
        %2206 = vmatpush1.xpose.msra.mxu0 %v1999
        %2207 = vmatprep.subr.mxu0 0.0
        %2208 = vmatpush1.xpose.msra.mxu0 %v1996
        %2209 = vmatprep.subr.mxu0 0.0
        %2210 = vmatpush1.xpose.msra.mxu0 %v1993
        %2211 = vmatprep.subr.mxu0 0.0
        %2212 = vmatpush1.xpose.msra.mxu0 %v1990
        %2213 = vmatprep.subr.mxu0 0.0
        %2214 = vmatpush2.xpose.msra.mxu0 %v2083
        %2215 = vmatprep.subr.mxu0 0.0
        %2216 = vmatpush2.xpose.msra.mxu0 %v2080
        %2217 = vmatprep.subr.mxu0 0.0
        %2218 = vmatpush2.xpose.msra.mxu0 %v2077
        %2219 = vmatprep.subr.mxu0 0.0
        %2220 = vmatpush2.xpose.msra.mxu0 %v2074
        %2221 = vmatprep.subr.mxu0 0.0
        %2222 = vmatpush2.xpose.msra.mxu0 %v2071
        %2223 = vmatprep.subr.mxu0 0.0
        %2224 = vmatpush2.xpose.msra.mxu0 %v2068
        %2225 = vmatprep.subr.mxu0 0.0
        %2226 = vmatpush2.xpose.msra.mxu0 %v2065
        %2227 = vmatprep.subr.mxu0 0.0
        %2228 = vmatpush2.xpose.msra.mxu0 %v2062
        %2229 = vmatprep.subr.mxu0 0.0
        %2230 = vmatpush2.xpose.msra.mxu0 %v2059
        %2231 = vmatprep.subr.mxu0 0.0
        %2232 = vmatpush2.xpose.msra.mxu0 %v2056
        %2233 = vmatprep.subr.mxu0 0.0
        %2234 = vmatpush2.xpose.msra.mxu0 %v2053
        %2235 = vmatprep.subr.mxu0 0.0
        %2236 = vmatpush2.xpose.msra.mxu0 %v2050
        %2237 = vmatprep.subr.mxu0 0.0
        %2238 = vmatpush2.xpose.msra.mxu0 %v2047
        %2239 = vmatprep.subr.mxu0 0.0
        %2240 = vmatpush2.xpose.msra.mxu0 %v2044
        %2241 = vmatprep.subr.mxu0 0.0
        %2242 = vmatpush2.xpose.msra.mxu0 %v2041
        %2243 = vmatprep.subr.mxu0 0.0
        %2244 = vmatpush2.xpose.msra.mxu0 %v2038
        %2245 = vmatprep.mubr.f32.mxu0 0.0
        %2246 = vmatmul.mubr.f32.gmra.mxu0 %v1942
        %v2247 = vpop.f32.mrf.mxu0
        %v2248 = vadd.f32 0.0, %v2247
        %v2249 = vpop.f32.mrf.mxu0
        %v2250 = vadd.f32 0.0, %v2249
        %2251 = vmatprep.mubr.f32.mxu0 0.0
        %2252 = vmatmul.mubr.f32.gmra.mxu0 %v1945
        %v2253 = vpop.f32.mrf.mxu0
        %v2254 = vadd.f32 0.0, %v2253
        %v2255 = vpop.f32.mrf.mxu0
        %v2256 = vadd.f32 0.0, %v2255
        %2257 = vmatprep.mubr.f32.mxu0 0.0
        %2258 = vmatmul.mubr.f32.gmra.mxu0 %v1948
        %v2259 = vpop.f32.mrf.mxu0
        %v2260 = vadd.f32 0.0, %v2259
        %v2261 = vpop.f32.mrf.mxu0
        %v2262 = vadd.f32 0.0, %v2261
        %2263 = vmatprep.mubr.f32.mxu0 0.0
        %2264 = vmatmul.mubr.f32.gmra.mxu0 %v1951
        %v2265 = vpop.f32.mrf.mxu0
        %v2266 = vadd.f32 0.0, %v2265
        %v2267 = vpop.f32.mrf.mxu0
        %v2268 = vadd.f32 0.0, %v2267
        %2269 = vmatprep.mubr.f32.mxu0 0.0
        %2270 = vmatmul.mubr.f32.gmra.mxu0 %v1954
        %v2271 = vpop.f32.mrf.mxu0
        %v2272 = vadd.f32 0.0, %v2271
        %v2273 = vpop.f32.mrf.mxu0
        %v2274 = vadd.f32 0.0, %v2273
        %2275 = vmatprep.mubr.f32.mxu0 0.0
        %2276 = vmatmul.mubr.f32.gmra.mxu0 %v1957
        %v2277 = vpop.f32.mrf.mxu0
        %v2278 = vadd.f32 0.0, %v2277
        %v2279 = vpop.f32.mrf.mxu0
        %v2280 = vadd.f32 0.0, %v2279
        %2281 = vmatprep.mubr.f32.mxu0 0.0
        %2282 = vmatmul.mubr.f32.gmra.mxu0 %v1960
        %v2283 = vpop.f32.mrf.mxu0
        %v2284 = vadd.f32 0.0, %v2283
        %v2285 = vpop.f32.mrf.mxu0
        %v2286 = vadd.f32 0.0, %v2285
        %2287 = vmatprep.mubr.f32.mxu0 0.0
        %2288 = vmatmul.mubr.f32.gmra.mxu0 %v1963
        %v2289 = vpop.f32.mrf.mxu0
        %v2290 = vadd.f32 0.0, %v2289
        %v2291 = vpop.f32.mrf.mxu0
        %v2292 = vadd.f32 0.0, %v2291
        %2293 = vmatprep.mubr.f32.mxu0 0.0
        %2294 = vmatmul.mubr.f32.gmra.mxu0 %v1966
        %v2295 = vpop.f32.mrf.mxu0
        %v2296 = vadd.f32 0.0, %v2295
        %v2297 = vpop.f32.mrf.mxu0
        %v2298 = vadd.f32 0.0, %v2297
        %2299 = vmatprep.mubr.f32.mxu0 0.0
        %2300 = vmatmul.mubr.f32.gmra.mxu0 %v1969
        %v2301 = vpop.f32.mrf.mxu0
        %v2302 = vadd.f32 0.0, %v2301
        %v2303 = vpop.f32.mrf.mxu0
        %v2304 = vadd.f32 0.0, %v2303
        %2305 = vmatprep.mubr.f32.mxu0 0.0
        %2306 = vmatmul.mubr.f32.gmra.mxu0 %v1972
        %v2307 = vpop.f32.mrf.mxu0
        %v2308 = vadd.f32 0.0, %v2307
        %v2309 = vpop.f32.mrf.mxu0
        %v2310 = vadd.f32 0.0, %v2309
        %2311 = vmatprep.mubr.f32.mxu0 0.0
        %2312 = vmatmul.mubr.f32.gmra.mxu0 %v1975
        %v2313 = vpop.f32.mrf.mxu0
        %v2314 = vadd.f32 0.0, %v2313
        %v2315 = vpop.f32.mrf.mxu0
        %v2316 = vadd.f32 0.0, %v2315
        %2317 = vmatprep.mubr.f32.mxu0 0.0
        %2318 = vmatmul.mubr.f32.gmra.mxu0 %v1978
        %v2319 = vpop.f32.mrf.mxu0
        %v2320 = vadd.f32 0.0, %v2319
        %v2321 = vpop.f32.mrf.mxu0
        %v2322 = vadd.f32 0.0, %v2321
        %2323 = vmatprep.mubr.f32.mxu0 0.0
        %2324 = vmatmul.mubr.f32.gmra.mxu0 %v1981
        %v2325 = vpop.f32.mrf.mxu0
        %v2326 = vadd.f32 0.0, %v2325
        %v2327 = vpop.f32.mrf.mxu0
        %v2328 = vadd.f32 0.0, %v2327
        %2329 = vmatprep.mubr.f32.mxu0 0.0
        %2330 = vmatmul.mubr.f32.gmra.mxu0 %v1984
        %v2331 = vpop.f32.mrf.mxu0
        %v2332 = vadd.f32 0.0, %v2331
        %v2333 = vpop.f32.mrf.mxu0
        %v2334 = vadd.f32 0.0, %v2333
        %2335 = vmatprep.mubr.f32.mxu0 0.0
        %2336 = vmatmul.mubr.f32.gmra.mxu0 %v1987
        %v2337 = vpop.f32.mrf.mxu0
        %v2338 = vadd.f32 0.0, %v2337
        %v2339 = vpop.f32.mrf.mxu0
        %v2340 = vadd.f32 0.0, %v2339
        %2341 = vdwg.mxu0
        %2342 = vmatprep.subr.mxu0 0.0
        %2343 = vmatpush1.xpose.msra.mxu0 %v2131
        %2344 = vmatprep.subr.mxu0 0.0
        %2345 = vmatpush1.xpose.msra.mxu0 %v2128
        %2346 = vmatprep.subr.mxu0 0.0
        %2347 = vmatpush1.xpose.msra.mxu0 %v2125
        %2348 = vmatprep.subr.mxu0 0.0
        %2349 = vmatpush1.xpose.msra.mxu0 %v2122
        %2350 = vmatprep.subr.mxu0 0.0
        %2351 = vmatpush1.xpose.msra.mxu0 %v2119
        %2352 = vmatprep.subr.mxu0 0.0
        %2353 = vmatpush1.xpose.msra.mxu0 %v2116
        %2354 = vmatprep.subr.mxu0 0.0
        %2355 = vmatpush1.xpose.msra.mxu0 %v2113
        %2356 = vmatprep.subr.mxu0 0.0
        %2357 = vmatpush1.xpose.msra.mxu0 %v2110
        %2358 = vmatprep.subr.mxu0 0.0
        %2359 = vmatpush1.xpose.msra.mxu0 %v2107
        %2360 = vmatprep.subr.mxu0 0.0
        %2361 = vmatpush1.xpose.msra.mxu0 %v2104
        %2362 = vmatprep.subr.mxu0 0.0
        %2363 = vmatpush1.xpose.msra.mxu0 %v2101
        %2364 = vmatprep.subr.mxu0 0.0
        %2365 = vmatpush1.xpose.msra.mxu0 %v2098
        %2366 = vmatprep.subr.mxu0 0.0
        %2367 = vmatpush1.xpose.msra.mxu0 %v2095
        %2368 = vmatprep.subr.mxu0 0.0
        %2369 = vmatpush1.xpose.msra.mxu0 %v2092
        %2370 = vmatprep.subr.mxu0 0.0
        %2371 = vmatpush1.xpose.msra.mxu0 %v2089
        %2372 = vmatprep.subr.mxu0 0.0
        %2373 = vmatpush1.xpose.msra.mxu0 %v2086
        %2374 = vmatprep.subr.mxu0 0.0
        %2375 = vmatpush2.xpose.msra.mxu0 %v2179
        %2376 = vmatprep.subr.mxu0 0.0
        %2377 = vmatpush2.xpose.msra.mxu0 %v2176
        %2378 = vmatprep.subr.mxu0 0.0
        %2379 = vmatpush2.xpose.msra.mxu0 %v2173
        %2380 = vmatprep.subr.mxu0 0.0
        %2381 = vmatpush2.xpose.msra.mxu0 %v2170
        %2382 = vmatprep.subr.mxu0 0.0
        %2383 = vmatpush2.xpose.msra.mxu0 %v2167
        %2384 = vmatprep.subr.mxu0 0.0
        %2385 = vmatpush2.xpose.msra.mxu0 %v2164
        %2386 = vmatprep.subr.mxu0 0.0
        %2387 = vmatpush2.xpose.msra.mxu0 %v2161
        %2388 = vmatprep.subr.mxu0 0.0
        %2389 = vmatpush2.xpose.msra.mxu0 %v2158
        %2390 = vmatprep.subr.mxu0 0.0
        %2391 = vmatpush2.xpose.msra.mxu0 %v2155
        %2392 = vmatprep.subr.mxu0 0.0
        %2393 = vmatpush2.xpose.msra.mxu0 %v2152
        %2394 = vmatprep.subr.mxu0 0.0
        %2395 = vmatpush2.xpose.msra.mxu0 %v2149
        %2396 = vmatprep.subr.mxu0 0.0
        %2397 = vmatpush2.xpose.msra.mxu0 %v2146
        %2398 = vmatprep.subr.mxu0 0.0
        %2399 = vmatpush2.xpose.msra.mxu0 %v2143
        %2400 = vmatprep.subr.mxu0 0.0
        %2401 = vmatpush2.xpose.msra.mxu0 %v2140
        %2402 = vmatprep.subr.mxu0 0.0
        %2403 = vmatpush2.xpose.msra.mxu0 %v2137
        %2404 = vmatprep.subr.mxu0 0.0
        %2405 = vmatpush2.xpose.msra.mxu0 %v2134
        %2406 = vmatprep.mubr.f32.mxu0 0.0
        %2407 = vmatmul.mubr.f32.gmra.mxu0 %v1942
        %v2408 = vpop.f32.mrf.mxu0
        %v2409 = vadd.f32 0.0, %v2408
        %v2410 = vpop.f32.mrf.mxu0
        %v2411 = vadd.f32 0.0, %v2410
        %2412 = vmatprep.mubr.f32.mxu0 0.0
        %2413 = vmatmul.mubr.f32.gmra.mxu0 %v1945
        %v2414 = vpop.f32.mrf.mxu0
        %v2415 = vadd.f32 0.0, %v2414
        %v2416 = vpop.f32.mrf.mxu0
        %v2417 = vadd.f32 0.0, %v2416
        %2418 = vmatprep.mubr.f32.mxu0 0.0
        %2419 = vmatmul.mubr.f32.gmra.mxu0 %v1948
        %v2420 = vpop.f32.mrf.mxu0
        %v2421 = vadd.f32 0.0, %v2420
        %v2422 = vpop.f32.mrf.mxu0
        %v2423 = vadd.f32 0.0, %v2422
        %2424 = vmatprep.mubr.f32.mxu0 0.0
        %2425 = vmatmul.mubr.f32.gmra.mxu0 %v1951
        %v2426 = vpop.f32.mrf.mxu0
        %v2427 = vadd.f32 0.0, %v2426
        %v2428 = vpop.f32.mrf.mxu0
        %v2429 = vadd.f32 0.0, %v2428
        %2430 = vmatprep.mubr.f32.mxu0 0.0
        %2431 = vmatmul.mubr.f32.gmra.mxu0 %v1954
        %v2432 = vpop.f32.mrf.mxu0
        %v2433 = vadd.f32 0.0, %v2432
        %v2434 = vpop.f32.mrf.mxu0
        %v2435 = vadd.f32 0.0, %v2434
        %2436 = vmatprep.mubr.f32.mxu0 0.0
        %2437 = vmatmul.mubr.f32.gmra.mxu0 %v1957
        %v2438 = vpop.f32.mrf.mxu0
        %v2439 = vadd.f32 0.0, %v2438
        %v2440 = vpop.f32.mrf.mxu0
        %v2441 = vadd.f32 0.0, %v2440
        %2442 = vmatprep.mubr.f32.mxu0 0.0
        %2443 = vmatmul.mubr.f32.gmra.mxu0 %v1960
        %v2444 = vpop.f32.mrf.mxu0
        %v2445 = vadd.f32 0.0, %v2444
        %v2446 = vpop.f32.mrf.mxu0
        %v2447 = vadd.f32 0.0, %v2446
        %2448 = vmatprep.mubr.f32.mxu0 0.0
        %2449 = vmatmul.mubr.f32.gmra.mxu0 %v1963
        %v2450 = vpop.f32.mrf.mxu0
        %v2451 = vadd.f32 0.0, %v2450
        %v2452 = vpop.f32.mrf.mxu0
        %v2453 = vadd.f32 0.0, %v2452
        %2454 = vmatprep.mubr.f32.mxu0 0.0
        %2455 = vmatmul.mubr.f32.gmra.mxu0 %v1966
        %v2456 = vpop.f32.mrf.mxu0
        %v2457 = vadd.f32 0.0, %v2456
        %v2458 = vpop.f32.mrf.mxu0
        %v2459 = vadd.f32 0.0, %v2458
        %2460 = vmatprep.mubr.f32.mxu0 0.0
        %2461 = vmatmul.mubr.f32.gmra.mxu0 %v1969
        %v2462 = vpop.f32.mrf.mxu0
        %v2463 = vadd.f32 0.0, %v2462
        %v2464 = vpop.f32.mrf.mxu0
        %v2465 = vadd.f32 0.0, %v2464
        %2466 = vmatprep.mubr.f32.mxu0 0.0
        %2467 = vmatmul.mubr.f32.gmra.mxu0 %v1972
        %v2468 = vpop.f32.mrf.mxu0
        %v2469 = vadd.f32 0.0, %v2468
        %v2470 = vpop.f32.mrf.mxu0
        %v2471 = vadd.f32 0.0, %v2470
        %2472 = vmatprep.mubr.f32.mxu0 0.0
        %2473 = vmatmul.mubr.f32.gmra.mxu0 %v1975
        %v2474 = vpop.f32.mrf.mxu0
        %v2475 = vadd.f32 0.0, %v2474
        %v2476 = vpop.f32.mrf.mxu0
        %v2477 = vadd.f32 0.0, %v2476
        %2478 = vmatprep.mubr.f32.mxu0 0.0
        %2479 = vmatmul.mubr.f32.gmra.mxu0 %v1978
        %v2480 = vpop.f32.mrf.mxu0
        %v2481 = vadd.f32 0.0, %v2480
        %v2482 = vpop.f32.mrf.mxu0
        %v2483 = vadd.f32 0.0, %v2482
        %2484 = vmatprep.mubr.f32.mxu0 0.0
        %2485 = vmatmul.mubr.f32.gmra.mxu0 %v1981
        %v2486 = vpop.f32.mrf.mxu0
        %v2487 = vadd.f32 0.0, %v2486
        %v2488 = vpop.f32.mrf.mxu0
        %v2489 = vadd.f32 0.0, %v2488
        %2490 = vmatprep.mubr.f32.mxu0 0.0
        %2491 = vmatmul.mubr.f32.gmra.mxu0 %v1984
        %v2492 = vpop.f32.mrf.mxu0
        %v2493 = vadd.f32 0.0, %v2492
        %v2494 = vpop.f32.mrf.mxu0
        %v2495 = vadd.f32 0.0, %v2494
        %2496 = vmatprep.mubr.f32.mxu0 0.0
        %2497 = vmatmul.mubr.f32.gmra.mxu0 %v1987
        %v2498 = vpop.f32.mrf.mxu0
        %v2499 = vadd.f32 0.0, %v2498
        %v2500 = vpop.f32.mrf.mxu0
        %v2501 = vadd.f32 0.0, %v2500
        %2502 = vdwg.mxu0
        %v2503 = vmax.f32 %v2248, %v2250
        %v2504 = vmax.f32 %v2503, %v2409
        %v2505 = vmax.f32 %v2504, %v2411
        %2506 = vmax.xlane.f32.xlu0 %v2505
        %v2507 = vpop.xlane.xlu0 %2506
        %v2508 = vmax.f32 %v2254, %v2256
        %v2509 = vmax.f32 %v2508, %v2415
        %v2510 = vmax.f32 %v2509, %v2417
        %2511 = vmax.xlane.f32.xlu0 %v2510
        %v2512 = vpop.xlane.xlu0 %2511
        %v2513 = vmax.f32 %v2260, %v2262
        %v2514 = vmax.f32 %v2513, %v2421
        %v2515 = vmax.f32 %v2514, %v2423
        %2516 = vmax.xlane.f32.xlu0 %v2515
        %v2517 = vpop.xlane.xlu0 %2516
        %v2518 = vmax.f32 %v2266, %v2268
        %v2519 = vmax.f32 %v2518, %v2427
        %v2520 = vmax.f32 %v2519, %v2429
        %2521 = vmax.xlane.f32.xlu0 %v2520
        %v2522 = vpop.xlane.xlu0 %2521
        %v2523 = vmax.f32 %v2272, %v2274
        %v2524 = vmax.f32 %v2523, %v2433
        %v2525 = vmax.f32 %v2524, %v2435
        %2526 = vmax.xlane.f32.xlu0 %v2525
        %v2527 = vpop.xlane.xlu0 %2526
        %v2528 = vmax.f32 %v2278, %v2280
        %v2529 = vmax.f32 %v2528, %v2439
        %v2530 = vmax.f32 %v2529, %v2441
        %2531 = vmax.xlane.f32.xlu0 %v2530
        %v2532 = vpop.xlane.xlu0 %2531
        %v2533 = vmax.f32 %v2284, %v2286
        %v2534 = vmax.f32 %v2533, %v2445
        %v2535 = vmax.f32 %v2534, %v2447
        %2536 = vmax.xlane.f32.xlu0 %v2535
        %v2537 = vpop.xlane.xlu0 %2536
        %v2538 = vmax.f32 %v2290, %v2292
        %v2539 = vmax.f32 %v2538, %v2451
        %v2540 = vmax.f32 %v2539, %v2453
        %2541 = vmax.xlane.f32.xlu0 %v2540
        %v2542 = vpop.xlane.xlu0 %2541
        %v2543 = vmax.f32 %v2296, %v2298
        %v2544 = vmax.f32 %v2543, %v2457
        %v2545 = vmax.f32 %v2544, %v2459
        %2546 = vmax.xlane.f32.xlu0 %v2545
        %v2547 = vpop.xlane.xlu0 %2546
        %v2548 = vmax.f32 %v2302, %v2304
        %v2549 = vmax.f32 %v2548, %v2463
        %v2550 = vmax.f32 %v2549, %v2465
        %2551 = vmax.xlane.f32.xlu0 %v2550
        %v2552 = vpop.xlane.xlu0 %2551
        %v2553 = vmax.f32 %v2308, %v2310
        %v2554 = vmax.f32 %v2553, %v2469
        %v2555 = vmax.f32 %v2554, %v2471
        %2556 = vmax.xlane.f32.xlu0 %v2555
        %v2557 = vpop.xlane.xlu0 %2556
        %v2558 = vmax.f32 %v2314, %v2316
        %v2559 = vmax.f32 %v2558, %v2475
        %v2560 = vmax.f32 %v2559, %v2477
        %2561 = vmax.xlane.f32.xlu0 %v2560
        %v2562 = vpop.xlane.xlu0 %2561
        %v2563 = vmax.f32 %v2320, %v2322
        %v2564 = vmax.f32 %v2563, %v2481
        %v2565 = vmax.f32 %v2564, %v2483
        %2566 = vmax.xlane.f32.xlu0 %v2565
        %v2567 = vpop.xlane.xlu0 %2566
        %v2568 = vmax.f32 %v2326, %v2328
        %v2569 = vmax.f32 %v2568, %v2487
        %v2570 = vmax.f32 %v2569, %v2489
        %2571 = vmax.xlane.f32.xlu0 %v2570
        %v2572 = vpop.xlane.xlu0 %2571
        %v2573 = vmax.f32 %v2332, %v2334
        %v2574 = vmax.f32 %v2573, %v2493
        %v2575 = vmax.f32 %v2574, %v2495
        %2576 = vmax.xlane.f32.xlu0 %v2575
        %v2577 = vpop.xlane.xlu0 %2576
        %v2578 = vmax.f32 %v2338, %v2340
        %v2579 = vmax.f32 %v2578, %v2499
        %v2580 = vmax.f32 %v2579, %v2501
        %2581 = vmax.xlane.f32.xlu0 %v2580
        %v2582 = vpop.xlane.xlu0 %2581
        %v2583 = vsub.f32 %v2248, %v2507
        %v2584 = vsub.f32 %v2250, %v2507
        %v2585 = vsub.f32 %v2409, %v2507
        %v2586 = vsub.f32 %v2411, %v2507
        %v2587 = vsub.f32 %v2254, %v2512
        %v2588 = vsub.f32 %v2256, %v2512
        %v2589 = vsub.f32 %v2415, %v2512
        %v2590 = vsub.f32 %v2417, %v2512
        %v2591 = vsub.f32 %v2260, %v2517
        %v2592 = vsub.f32 %v2262, %v2517
        %v2593 = vsub.f32 %v2421, %v2517
        %v2594 = vsub.f32 %v2423, %v2517
        %v2595 = vsub.f32 %v2266, %v2522
        %v2596 = vsub.f32 %v2268, %v2522
        %v2597 = vsub.f32 %v2427, %v2522
        %v2598 = vsub.f32 %v2429, %v2522
        %v2599 = vsub.f32 %v2272, %v2527
        %v2600 = vsub.f32 %v2274, %v2527
        %v2601 = vsub.f32 %v2433, %v2527
        %v2602 = vsub.f32 %v2435, %v2527
        %v2603 = vsub.f32 %v2278, %v2532
        %v2604 = vsub.f32 %v2280, %v2532
        %v2605 = vsub.f32 %v2439, %v2532
        %v2606 = vsub.f32 %v2441, %v2532
        %v2607 = vsub.f32 %v2284, %v2537
        %v2608 = vsub.f32 %v2286, %v2537
        %v2609 = vsub.f32 %v2445, %v2537
        %v2610 = vsub.f32 %v2447, %v2537
        %v2611 = vsub.f32 %v2290, %v2542
        %v2612 = vsub.f32 %v2292, %v2542
        %v2613 = vsub.f32 %v2451, %v2542
        %v2614 = vsub.f32 %v2453, %v2542
        %v2615 = vsub.f32 %v2296, %v2547
        %v2616 = vsub.f32 %v2298, %v2547
        %v2617 = vsub.f32 %v2457, %v2547
        %v2618 = vsub.f32 %v2459, %v2547
        %v2619 = vsub.f32 %v2302, %v2552
        %v2620 = vsub.f32 %v2304, %v2552
        %v2621 = vsub.f32 %v2463, %v2552
        %v2622 = vsub.f32 %v2465, %v2552
        %v2623 = vsub.f32 %v2308, %v2557
        %v2624 = vsub.f32 %v2310, %v2557
        %v2625 = vsub.f32 %v2469, %v2557
        %v2626 = vsub.f32 %v2471, %v2557
        %v2627 = vsub.f32 %v2314, %v2562
        %v2628 = vsub.f32 %v2316, %v2562
        %v2629 = vsub.f32 %v2475, %v2562
        %v2630 = vsub.f32 %v2477, %v2562
        %v2631 = vsub.f32 %v2320, %v2567
        %v2632 = vsub.f32 %v2322, %v2567
        %v2633 = vsub.f32 %v2481, %v2567
        %v2634 = vsub.f32 %v2483, %v2567
        %v2635 = vsub.f32 %v2326, %v2572
        %v2636 = vsub.f32 %v2328, %v2572
        %v2637 = vsub.f32 %v2487, %v2572
        %v2638 = vsub.f32 %v2489, %v2572
        %v2639 = vsub.f32 %v2332, %v2577
        %v2640 = vsub.f32 %v2334, %v2577
        %v2641 = vsub.f32 %v2493, %v2577
        %v2642 = vsub.f32 %v2495, %v2577
        %v2643 = vsub.f32 %v2338, %v2582
        %v2644 = vsub.f32 %v2340, %v2582
        %v2645 = vsub.f32 %v2499, %v2582
        %v2646 = vsub.f32 %v2501, %v2582
        %v2647 = vmul.f32 %v2583, 1.442695
        %v2648 = vpow.pop %v2647
        %v2649 = vmul.f32 %v2584, 1.442695
        %v2650 = vpow.pop %v2649
        %v2651 = vmul.f32 %v2585, 1.442695
        %v2652 = vpow.pop %v2651
        %v2653 = vmul.f32 %v2586, 1.442695
        %v2654 = vpow.pop %v2653
        %v2655 = vmul.f32 %v2587, 1.442695
        %v2656 = vpow.pop %v2655
        %v2657 = vmul.f32 %v2588, 1.442695
        %v2658 = vpow.pop %v2657
        %v2659 = vmul.f32 %v2589, 1.442695
        %v2660 = vpow.pop %v2659
        %v2661 = vmul.f32 %v2590, 1.442695
        %v2662 = vpow.pop %v2661
        %v2663 = vmul.f32 %v2591, 1.442695
        %v2664 = vpow.pop %v2663
        %v2665 = vmul.f32 %v2592, 1.442695
        %v2666 = vpow.pop %v2665
        %v2667 = vmul.f32 %v2593, 1.442695
        %v2668 = vpow.pop %v2667
        %v2669 = vmul.f32 %v2594, 1.442695
        %v2670 = vpow.pop %v2669
        %v2671 = vmul.f32 %v2595, 1.442695
        %v2672 = vpow.pop %v2671
        %v2673 = vmul.f32 %v2596, 1.442695
        %v2674 = vpow.pop %v2673
        %v2675 = vmul.f32 %v2597, 1.442695
        %v2676 = vpow.pop %v2675
        %v2677 = vmul.f32 %v2598, 1.442695
        %v2678 = vpow.pop %v2677
        %v2679 = vmul.f32 %v2599, 1.442695
        %v2680 = vpow.pop %v2679
        %v2681 = vmul.f32 %v2600, 1.442695
        %v2682 = vpow.pop %v2681
        %v2683 = vmul.f32 %v2601, 1.442695
        %v2684 = vpow.pop %v2683
        %v2685 = vmul.f32 %v2602, 1.442695
        %v2686 = vpow.pop %v2685
        %v2687 = vmul.f32 %v2603, 1.442695
        %v2688 = vpow.pop %v2687
        %v2689 = vmul.f32 %v2604, 1.442695
        %v2690 = vpow.pop %v2689
        %v2691 = vmul.f32 %v2605, 1.442695
        %v2692 = vpow.pop %v2691
        %v2693 = vmul.f32 %v2606, 1.442695
        %v2694 = vpow.pop %v2693
        %v2695 = vmul.f32 %v2607, 1.442695
        %v2696 = vpow.pop %v2695
        %v2697 = vmul.f32 %v2608, 1.442695
        %v2698 = vpow.pop %v2697
        %v2699 = vmul.f32 %v2609, 1.442695
        %v2700 = vpow.pop %v2699
        %v2701 = vmul.f32 %v2610, 1.442695
        %v2702 = vpow.pop %v2701
        %v2703 = vmul.f32 %v2611, 1.442695
        %v2704 = vpow.pop %v2703
        %v2705 = vmul.f32 %v2612, 1.442695
        %v2706 = vpow.pop %v2705
        %v2707 = vmul.f32 %v2613, 1.442695
        %v2708 = vpow.pop %v2707
        %v2709 = vmul.f32 %v2614, 1.442695
        %v2710 = vpow.pop %v2709
        %v2711 = vmul.f32 %v2615, 1.442695
        %v2712 = vpow.pop %v2711
        %v2713 = vmul.f32 %v2616, 1.442695
        %v2714 = vpow.pop %v2713
        %v2715 = vmul.f32 %v2617, 1.442695
        %v2716 = vpow.pop %v2715
        %v2717 = vmul.f32 %v2618, 1.442695
        %v2718 = vpow.pop %v2717
        %v2719 = vmul.f32 %v2619, 1.442695
        %v2720 = vpow.pop %v2719
        %v2721 = vmul.f32 %v2620, 1.442695
        %v2722 = vpow.pop %v2721
        %v2723 = vmul.f32 %v2621, 1.442695
        %v2724 = vpow.pop %v2723
        %v2725 = vmul.f32 %v2622, 1.442695
        %v2726 = vpow.pop %v2725
        %v2727 = vmul.f32 %v2623, 1.442695
        %v2728 = vpow.pop %v2727
        %v2729 = vmul.f32 %v2624, 1.442695
        %v2730 = vpow.pop %v2729
        %v2731 = vmul.f32 %v2625, 1.442695
        %v2732 = vpow.pop %v2731
        %v2733 = vmul.f32 %v2626, 1.442695
        %v2734 = vpow.pop %v2733
        %v2735 = vmul.f32 %v2627, 1.442695
        %v2736 = vpow.pop %v2735
        %v2737 = vmul.f32 %v2628, 1.442695
        %v2738 = vpow.pop %v2737
        %v2739 = vmul.f32 %v2629, 1.442695
        %v2740 = vpow.pop %v2739
        %v2741 = vmul.f32 %v2630, 1.442695
        %v2742 = vpow.pop %v2741
        %v2743 = vmul.f32 %v2631, 1.442695
        %v2744 = vpow.pop %v2743
        %v2745 = vmul.f32 %v2632, 1.442695
        %v2746 = vpow.pop %v2745
        %v2747 = vmul.f32 %v2633, 1.442695
        %v2748 = vpow.pop %v2747
        %v2749 = vmul.f32 %v2634, 1.442695
        %v2750 = vpow.pop %v2749
        %v2751 = vmul.f32 %v2635, 1.442695
        %v2752 = vpow.pop %v2751
        %v2753 = vmul.f32 %v2636, 1.442695
        %v2754 = vpow.pop %v2753
        %v2755 = vmul.f32 %v2637, 1.442695
        %v2756 = vpow.pop %v2755
        %v2757 = vmul.f32 %v2638, 1.442695
        %v2758 = vpow.pop %v2757
        %v2759 = vmul.f32 %v2639, 1.442695
        %v2760 = vpow.pop %v2759
        %v2761 = vmul.f32 %v2640, 1.442695
        %v2762 = vpow.pop %v2761
        %v2763 = vmul.f32 %v2641, 1.442695
        %v2764 = vpow.pop %v2763
        %v2765 = vmul.f32 %v2642, 1.442695
        %v2766 = vpow.pop %v2765
        %v2767 = vmul.f32 %v2643, 1.442695
        %v2768 = vpow.pop %v2767
        %v2769 = vmul.f32 %v2644, 1.442695
        %v2770 = vpow.pop %v2769
        %v2771 = vmul.f32 %v2645, 1.442695
        %v2772 = vpow.pop %v2771
        %v2773 = vmul.f32 %v2646, 1.442695
        %v2774 = vpow.pop %v2773
        %v2775 = vadd.f32 %v2648, %v2650
        %v2776 = vadd.f32 %v2775, %v2652
        %v2777 = vadd.f32 %v2776, %v2654
        %2778 = vadd.xlane.f32.xlu0 %v2777
        %v2779 = vpop.xlane.xlu0 %2778
        %v2780 = vadd.f32 %v2656, %v2658
        %v2781 = vadd.f32 %v2780, %v2660
        %v2782 = vadd.f32 %v2781, %v2662
        %2783 = vadd.xlane.f32.xlu0 %v2782
        %v2784 = vpop.xlane.xlu0 %2783
        %v2785 = vadd.f32 %v2664, %v2666
        %v2786 = vadd.f32 %v2785, %v2668
        %v2787 = vadd.f32 %v2786, %v2670
        %2788 = vadd.xlane.f32.xlu0 %v2787
        %v2789 = vpop.xlane.xlu0 %2788
        %v2790 = vadd.f32 %v2672, %v2674
        %v2791 = vadd.f32 %v2790, %v2676
        %v2792 = vadd.f32 %v2791, %v2678
        %2793 = vadd.xlane.f32.xlu0 %v2792
        %v2794 = vpop.xlane.xlu0 %2793
        %v2795 = vadd.f32 %v2680, %v2682
        %v2796 = vadd.f32 %v2795, %v2684
        %v2797 = vadd.f32 %v2796, %v2686
        %2798 = vadd.xlane.f32.xlu0 %v2797
        %v2799 = vpop.xlane.xlu0 %2798
        %v2800 = vadd.f32 %v2688, %v2690
        %v2801 = vadd.f32 %v2800, %v2692
        %v2802 = vadd.f32 %v2801, %v2694
        %2803 = vadd.xlane.f32.xlu0 %v2802
        %v2804 = vpop.xlane.xlu0 %2803
        %v2805 = vadd.f32 %v2696, %v2698
        %v2806 = vadd.f32 %v2805, %v2700
        %v2807 = vadd.f32 %v2806, %v2702
        %2808 = vadd.xlane.f32.xlu0 %v2807
        %v2809 = vpop.xlane.xlu0 %2808
        %v2810 = vadd.f32 %v2704, %v2706
        %v2811 = vadd.f32 %v2810, %v2708
        %v2812 = vadd.f32 %v2811, %v2710
        %2813 = vadd.xlane.f32.xlu0 %v2812
        %v2814 = vpop.xlane.xlu0 %2813
        %v2815 = vadd.f32 %v2712, %v2714
        %v2816 = vadd.f32 %v2815, %v2716
        %v2817 = vadd.f32 %v2816, %v2718
        %2818 = vadd.xlane.f32.xlu0 %v2817
        %v2819 = vpop.xlane.xlu0 %2818
        %v2820 = vadd.f32 %v2720, %v2722
        %v2821 = vadd.f32 %v2820, %v2724
        %v2822 = vadd.f32 %v2821, %v2726
        %2823 = vadd.xlane.f32.xlu0 %v2822
        %v2824 = vpop.xlane.xlu0 %2823
        %v2825 = vadd.f32 %v2728, %v2730
        %v2826 = vadd.f32 %v2825, %v2732
        %v2827 = vadd.f32 %v2826, %v2734
        %2828 = vadd.xlane.f32.xlu0 %v2827
        %v2829 = vpop.xlane.xlu0 %2828
        %v2830 = vadd.f32 %v2736, %v2738
        %v2831 = vadd.f32 %v2830, %v2740
        %v2832 = vadd.f32 %v2831, %v2742
        %2833 = vadd.xlane.f32.xlu0 %v2832
        %v2834 = vpop.xlane.xlu0 %2833
        %v2835 = vadd.f32 %v2744, %v2746
        %v2836 = vadd.f32 %v2835, %v2748
        %v2837 = vadd.f32 %v2836, %v2750
        %2838 = vadd.xlane.f32.xlu0 %v2837
        %v2839 = vpop.xlane.xlu0 %2838
        %v2840 = vadd.f32 %v2752, %v2754
        %v2841 = vadd.f32 %v2840, %v2756
        %v2842 = vadd.f32 %v2841, %v2758
        %2843 = vadd.xlane.f32.xlu0 %v2842
        %v2844 = vpop.xlane.xlu0 %2843
        %v2845 = vadd.f32 %v2760, %v2762
        %v2846 = vadd.f32 %v2845, %v2764
        %v2847 = vadd.f32 %v2846, %v2766
        %2848 = vadd.xlane.f32.xlu0 %v2847
        %v2849 = vpop.xlane.xlu0 %2848
        %v2850 = vadd.f32 %v2768, %v2770
        %v2851 = vadd.f32 %v2850, %v2772
        %v2852 = vadd.f32 %v2851, %v2774
        %2853 = vadd.xlane.f32.xlu0 %v2852
        %v2854 = vpop.xlane.xlu0 %2853
        %v2855 = vrcp.pop %v2779
        %v2856 = vrcp.pop %v2784
        %v2857 = vrcp.pop %v2789
        %v2858 = vrcp.pop %v2794
        %v2859 = vrcp.pop %v2799
        %v2860 = vrcp.pop %v2804
        %v2861 = vrcp.pop %v2809
        %v2862 = vrcp.pop %v2814
        %v2863 = vrcp.pop %v2819
        %v2864 = vrcp.pop %v2824
        %v2865 = vrcp.pop %v2829
        %v2866 = vrcp.pop %v2834
        %v2867 = vrcp.pop %v2839
        %v2868 = vrcp.pop %v2844
        %v2869 = vrcp.pop %v2849
        %v2870 = vrcp.pop %v2854
        %v2871 = vmul.f32 %v2648, %v2855
        %v2872 = vmul.f32 %v2650, %v2855
        %v2873 = vmul.f32 %v2652, %v2855
        %v2874 = vmul.f32 %v2654, %v2855
        %v2875 = vmul.f32 %v2656, %v2856
        %v2876 = vmul.f32 %v2658, %v2856
        %v2877 = vmul.f32 %v2660, %v2856
        %v2878 = vmul.f32 %v2662, %v2856
        %v2879 = vmul.f32 %v2664, %v2857
        %v2880 = vmul.f32 %v2666, %v2857
        %v2881 = vmul.f32 %v2668, %v2857
        %v2882 = vmul.f32 %v2670, %v2857
        %v2883 = vmul.f32 %v2672, %v2858
        %v2884 = vmul.f32 %v2674, %v2858
        %v2885 = vmul.f32 %v2676, %v2858
        %v2886 = vmul.f32 %v2678, %v2858
        %v2887 = vmul.f32 %v2680, %v2859
        %v2888 = vmul.f32 %v2682, %v2859
        %v2889 = vmul.f32 %v2684, %v2859
        %v2890 = vmul.f32 %v2686, %v2859
        %v2891 = vmul.f32 %v2688, %v2860
        %v2892 = vmul.f32 %v2690, %v2860
        %v2893 = vmul.f32 %v2692, %v2860
        %v2894 = vmul.f32 %v2694, %v2860
        %v2895 = vmul.f32 %v2696, %v2861
        %v2896 = vmul.f32 %v2698, %v2861
        %v2897 = vmul.f32 %v2700, %v2861
        %v2898 = vmul.f32 %v2702, %v2861
        %v2899 = vmul.f32 %v2704, %v2862
        %v2900 = vmul.f32 %v2706, %v2862
        %v2901 = vmul.f32 %v2708, %v2862
        %v2902 = vmul.f32 %v2710, %v2862
        %v2903 = vmul.f32 %v2712, %v2863
        %v2904 = vmul.f32 %v2714, %v2863
        %v2905 = vmul.f32 %v2716, %v2863
        %v2906 = vmul.f32 %v2718, %v2863
        %v2907 = vmul.f32 %v2720, %v2864
        %v2908 = vmul.f32 %v2722, %v2864
        %v2909 = vmul.f32 %v2724, %v2864
        %v2910 = vmul.f32 %v2726, %v2864
        %v2911 = vmul.f32 %v2728, %v2865
        %v2912 = vmul.f32 %v2730, %v2865
        %v2913 = vmul.f32 %v2732, %v2865
        %v2914 = vmul.f32 %v2734, %v2865
        %v2915 = vmul.f32 %v2736, %v2866
        %v2916 = vmul.f32 %v2738, %v2866
        %v2917 = vmul.f32 %v2740, %v2866
        %v2918 = vmul.f32 %v2742, %v2866
        %v2919 = vmul.f32 %v2744, %v2867
        %v2920 = vmul.f32 %v2746, %v2867
        %v2921 = vmul.f32 %v2748, %v2867
        %v2922 = vmul.f32 %v2750, %v2867
        %v2923 = vmul.f32 %v2752, %v2868
        %v2924 = vmul.f32 %v2754, %v2868
        %v2925 = vmul.f32 %v2756, %v2868
        %v2926 = vmul.f32 %v2758, %v2868
        %v2927 = vmul.f32 %v2760, %v2869
        %v2928 = vmul.f32 %v2762, %v2869
        %v2929 = vmul.f32 %v2764, %v2869
        %v2930 = vmul.f32 %v2766, %v2869
        %v2931 = vmul.f32 %v2768, %v2870
        %v2932 = vmul.f32 %v2770, %v2870
        %v2933 = vmul.f32 %v2772, %v2870
        %v2934 = vmul.f32 %v2774, %v2870
        %2935 = vst [vmem:[%s340] sm:$0xff] %v2871
        %2936 = vst [vmem:[%s340 + $0x8] sm:$0xff] %v2872
        %2937 = vst [vmem:[%s340 + $0x10] sm:$0xff] %v2873
        %2938 = vst [vmem:[%s340 + $0x18] sm:$0xff] %v2874
        %2939 = vst [vmem:[%s340 + $0x20] sm:$0xff] %v2875
        %2940 = vst [vmem:[%s340 + $0x28] sm:$0xff] %v2876
        %2941 = vst [vmem:[%s340 + $0x30] sm:$0xff] %v2877
        %2942 = vst [vmem:[%s340 + $0x38] sm:$0xff] %v2878
        %2943 = vst [vmem:[%s340 + $0x40] sm:$0xff] %v2879
        %2944 = vst [vmem:[%s340 + $0x48] sm:$0xff] %v2880
        %2945 = vst [vmem:[%s340 + $0x50] sm:$0xff] %v2881
        %2946 = vst [vmem:[%s340 + $0x58] sm:$0xff] %v2882
        %2947 = vst [vmem:[%s340 + $0x60] sm:$0xff] %v2883
        %2948 = vst [vmem:[%s340 + $0x68] sm:$0xff] %v2884
        %2949 = vst [vmem:[%s340 + $0x70] sm:$0xff] %v2885
        %2950 = vst [vmem:[%s340 + $0x78] sm:$0xff] %v2886
        %2951 = vst [vmem:[%s340 + $0x80] sm:$0xff] %v2887
        %2952 = vst [vmem:[%s340 + $0x88] sm:$0xff] %v2888
        %2953 = vst [vmem:[%s340 + $0x90] sm:$0xff] %v2889
        %2954 = vst [vmem:[%s340 + $0x98] sm:$0xff] %v2890
        %2955 = vst [vmem:[%s340 + $0xa0] sm:$0xff] %v2891
        %2956 = vst [vmem:[%s340 + $0xa8] sm:$0xff] %v2892
        %2957 = vst [vmem:[%s340 + $0xb0] sm:$0xff] %v2893
        %2958 = vst [vmem:[%s340 + $0xb8] sm:$0xff] %v2894
        %2959 = vst [vmem:[%s340 + $0xc0] sm:$0xff] %v2895
        %2960 = vst [vmem:[%s340 + $0xc8] sm:$0xff] %v2896
        %2961 = vst [vmem:[%s340 + $0xd0] sm:$0xff] %v2897
        %2962 = vst [vmem:[%s340 + $0xd8] sm:$0xff] %v2898
        %2963 = vst [vmem:[%s340 + $0xe0] sm:$0xff] %v2899
        %2964 = vst [vmem:[%s340 + $0xe8] sm:$0xff] %v2900
        %2965 = vst [vmem:[%s340 + $0xf0] sm:$0xff] %v2901
        %2966 = vst [vmem:[%s340 + $0xf8] sm:$0xff] %v2902
        %2967 = vst [vmem:[%s340 + $0x100] sm:$0xff] %v2903
        %2968 = vst [vmem:[%s340 + $0x108] sm:$0xff] %v2904
        %2969 = vst [vmem:[%s340 + $0x110] sm:$0xff] %v2905
        %2970 = vst [vmem:[%s340 + $0x118] sm:$0xff] %v2906
        %2971 = vst [vmem:[%s340 + $0x120] sm:$0xff] %v2907
        %2972 = vst [vmem:[%s340 + $0x128] sm:$0xff] %v2908
        %2973 = vst [vmem:[%s340 + $0x130] sm:$0xff] %v2909
        %2974 = vst [vmem:[%s340 + $0x138] sm:$0xff] %v2910
        %2975 = vst [vmem:[%s340 + $0x140] sm:$0xff] %v2911
        %2976 = vst [vmem:[%s340 + $0x148] sm:$0xff] %v2912
        %2977 = vst [vmem:[%s340 + $0x150] sm:$0xff] %v2913
        %2978 = vst [vmem:[%s340 + $0x158] sm:$0xff] %v2914
        %2979 = vst [vmem:[%s340 + $0x160] sm:$0xff] %v2915
        %2980 = vst [vmem:[%s340 + $0x168] sm:$0xff] %v2916
        %2981 = vst [vmem:[%s340 + $0x170] sm:$0xff] %v2917
        %2982 = vst [vmem:[%s340 + $0x178] sm:$0xff] %v2918
        %2983 = vst [vmem:[%s340 + $0x180] sm:$0xff] %v2919
        %2984 = vst [vmem:[%s340 + $0x188] sm:$0xff] %v2920
        %2985 = vst [vmem:[%s340 + $0x190] sm:$0xff] %v2921
        %2986 = vst [vmem:[%s340 + $0x198] sm:$0xff] %v2922
        %2987 = vst [vmem:[%s340 + $0x1a0] sm:$0xff] %v2923
        %2988 = vst [vmem:[%s340 + $0x1a8] sm:$0xff] %v2924
        %2989 = vst [vmem:[%s340 + $0x1b0] sm:$0xff] %v2925
        %2990 = vst [vmem:[%s340 + $0x1b8] sm:$0xff] %v2926
        %2991 = vst [vmem:[%s340 + $0x1c0] sm:$0xff] %v2927
        %2992 = vst [vmem:[%s340 + $0x1c8] sm:$0xff] %v2928
        %2993 = vst [vmem:[%s340 + $0x1d0] sm:$0xff] %v2929
        %2994 = vst [vmem:[%s340 + $0x1d8] sm:$0xff] %v2930
        %2995 = vst [vmem:[%s340 + $0x1e0] sm:$0xff] %v2931
        %2996 = vst [vmem:[%s340 + $0x1e8] sm:$0xff] %v2932
        %2997 = vst [vmem:[%s340 + $0x1f0] sm:$0xff] %v2933
        %2998 = vst [vmem:[%s340 + $0x1f8] sm:$0xff] %v2934
        %v2999 = vpack.c.bf16 %v2875, %v2871
        %v3000 = vpack.c.bf16 %v2876, %v2872
        %v3001 = vpack.c.bf16 %v2877, %v2873
        %v3002 = vpack.c.bf16 %v2878, %v2874
        %v3003 = vpack.c.bf16 %v2883, %v2879
        %v3004 = vpack.c.bf16 %v2884, %v2880
        %v3005 = vpack.c.bf16 %v2885, %v2881
        %v3006 = vpack.c.bf16 %v2886, %v2882
        %v3007 = vpack.c.bf16 %v2891, %v2887
        %v3008 = vpack.c.bf16 %v2892, %v2888
        %v3009 = vpack.c.bf16 %v2893, %v2889
        %v3010 = vpack.c.bf16 %v2894, %v2890
        %v3011 = vpack.c.bf16 %v2899, %v2895
        %v3012 = vpack.c.bf16 %v2900, %v2896
        %v3013 = vpack.c.bf16 %v2901, %v2897
        %v3014 = vpack.c.bf16 %v2902, %v2898
        %v3015 = vpack.c.bf16 %v2907, %v2903
        %v3016 = vpack.c.bf16 %v2908, %v2904
        %v3017 = vpack.c.bf16 %v2909, %v2905
        %v3018 = vpack.c.bf16 %v2910, %v2906
        %v3019 = vpack.c.bf16 %v2915, %v2911
        %v3020 = vpack.c.bf16 %v2916, %v2912
        %v3021 = vpack.c.bf16 %v2917, %v2913
        %v3022 = vpack.c.bf16 %v2918, %v2914
        %v3023 = vpack.c.bf16 %v2923, %v2919
        %v3024 = vpack.c.bf16 %v2924, %v2920
        %v3025 = vpack.c.bf16 %v2925, %v2921
        %v3026 = vpack.c.bf16 %v2926, %v2922
        %v3027 = vpack.c.bf16 %v2931, %v2927
        %v3028 = vpack.c.bf16 %v2932, %v2928
        %v3029 = vpack.c.bf16 %v2933, %v2929
        %v3030 = vpack.c.bf16 %v2934, %v2930
        %v3031 = vld [vmem:[#allocation2] sm:$0xf]
        %v3032 = vld [vmem:[#allocation2 + $0x4] sm:$0xf]
        %v3033 = vld [vmem:[#allocation2 + $0x8] sm:$0xf]
        %v3034 = vld [vmem:[#allocation2 + $0xc] sm:$0xf]
        %v3035 = vld [vmem:[#allocation2 + $0x10] sm:$0xf]
        %v3036 = vld [vmem:[#allocation2 + $0x14] sm:$0xf]
        %v3037 = vld [vmem:[#allocation2 + $0x18] sm:$0xf]
        %v3038 = vld [vmem:[#allocation2 + $0x1c] sm:$0xf]
        %v3039 = vld [vmem:[#allocation2 + $0x20] sm:$0xf]
        %v3040 = vld [vmem:[#allocation2 + $0x24] sm:$0xf]
        %v3041 = vld [vmem:[#allocation2 + $0x28] sm:$0xf]
        %v3042 = vld [vmem:[#allocation2 + $0x2c] sm:$0xf]
        %v3043 = vld [vmem:[#allocation2 + $0x30] sm:$0xf]
        %v3044 = vld [vmem:[#allocation2 + $0x34] sm:$0xf]
        %v3045 = vld [vmem:[#allocation2 + $0x38] sm:$0xf]
        %v3046 = vld [vmem:[#allocation2 + $0x3c] sm:$0xf]
        %v3047 = vld [vmem:[#allocation2 + $0x40] sm:$0xf]
        %v3048 = vld [vmem:[#allocation2 + $0x44] sm:$0xf]
        %v3049 = vld [vmem:[#allocation2 + $0x48] sm:$0xf]
        %v3050 = vld [vmem:[#allocation2 + $0x4c] sm:$0xf]
        %v3051 = vld [vmem:[#allocation2 + $0x50] sm:$0xf]
        %v3052 = vld [vmem:[#allocation2 + $0x54] sm:$0xf]
        %v3053 = vld [vmem:[#allocation2 + $0x58] sm:$0xf]
        %v3054 = vld [vmem:[#allocation2 + $0x5c] sm:$0xf]
        %v3055 = vld [vmem:[#allocation2 + $0x60] sm:$0xf]
        %v3056 = vld [vmem:[#allocation2 + $0x64] sm:$0xf]
        %v3057 = vld [vmem:[#allocation2 + $0x68] sm:$0xf]
        %v3058 = vld [vmem:[#allocation2 + $0x6c] sm:$0xf]
        %v3059 = vld [vmem:[#allocation2 + $0x70] sm:$0xf]
        %v3060 = vld [vmem:[#allocation2 + $0x74] sm:$0xf]
        %v3061 = vld [vmem:[#allocation2 + $0x78] sm:$0xf]
        %v3062 = vld [vmem:[#allocation2 + $0x7c] sm:$0xf]
        %v3063 = vld [vmem:[#allocation2 + $0x80] sm:$0xf]
        %v3064 = vld [vmem:[#allocation2 + $0x84] sm:$0xf]
        %v3065 = vld [vmem:[#allocation2 + $0x88] sm:$0xf]
        %v3066 = vld [vmem:[#allocation2 + $0x8c] sm:$0xf]
        %v3067 = vld [vmem:[#allocation2 + $0x90] sm:$0xf]
        %v3068 = vld [vmem:[#allocation2 + $0x94] sm:$0xf]
        %v3069 = vld [vmem:[#allocation2 + $0x98] sm:$0xf]
        %v3070 = vld [vmem:[#allocation2 + $0x9c] sm:$0xf]
        %v3071 = vld [vmem:[#allocation2 + $0xa0] sm:$0xf]
        %v3072 = vld [vmem:[#allocation2 + $0xa4] sm:$0xf]
        %v3073 = vld [vmem:[#allocation2 + $0xa8] sm:$0xf]
        %v3074 = vld [vmem:[#allocation2 + $0xac] sm:$0xf]
        %v3075 = vld [vmem:[#allocation2 + $0xb0] sm:$0xf]
        %v3076 = vld [vmem:[#allocation2 + $0xb4] sm:$0xf]
        %v3077 = vld [vmem:[#allocation2 + $0xb8] sm:$0xf]
        %v3078 = vld [vmem:[#allocation2 + $0xbc] sm:$0xf]
        %v3079 = vld [vmem:[#allocation2 + $0xc0] sm:$0xf]
        %v3080 = vld [vmem:[#allocation2 + $0xc4] sm:$0xf]
        %v3081 = vld [vmem:[#allocation2 + $0xc8] sm:$0xf]
        %v3082 = vld [vmem:[#allocation2 + $0xcc] sm:$0xf]
        %v3083 = vld [vmem:[#allocation2 + $0xd0] sm:$0xf]
        %v3084 = vld [vmem:[#allocation2 + $0xd4] sm:$0xf]
        %v3085 = vld [vmem:[#allocation2 + $0xd8] sm:$0xf]
        %v3086 = vld [vmem:[#allocation2 + $0xdc] sm:$0xf]
        %v3087 = vld [vmem:[#allocation2 + $0xe0] sm:$0xf]
        %v3088 = vld [vmem:[#allocation2 + $0xe4] sm:$0xf]
        %v3089 = vld [vmem:[#allocation2 + $0xe8] sm:$0xf]
        %v3090 = vld [vmem:[#allocation2 + $0xec] sm:$0xf]
        %v3091 = vld [vmem:[#allocation2 + $0xf0] sm:$0xf]
        %v3092 = vld [vmem:[#allocation2 + $0xf4] sm:$0xf]
        %v3093 = vld [vmem:[#allocation2 + $0xf8] sm:$0xf]
        %v3094 = vld [vmem:[#allocation2 + $0xfc] sm:$0xf]
        %v3159 = vunpack.c.l.b16 %v3031
        %v3160 = vunpack.c.l.b16 %v3032
        %v3161 = vunpack.c.l.b16 %v3033
        %v3162 = vunpack.c.l.b16 %v3034
        %v3163 = vunpack.c.l.b16 %v3035
        %v3164 = vunpack.c.l.b16 %v3036
        %v3165 = vunpack.c.l.b16 %v3037
        %v3166 = vunpack.c.l.b16 %v3038
        %v3167 = vunpack.c.l.b16 %v3039
        %v3168 = vunpack.c.l.b16 %v3040
        %v3169 = vunpack.c.l.b16 %v3041
        %v3170 = vunpack.c.l.b16 %v3042
        %v3171 = vunpack.c.l.b16 %v3043
        %v3172 = vunpack.c.l.b16 %v3044
        %v3173 = vunpack.c.l.b16 %v3045
        %v3174 = vunpack.c.l.b16 %v3046
        %v3175 = vunpack.c.l.b16 %v3047
        %v3176 = vunpack.c.l.b16 %v3048
        %v3177 = vunpack.c.l.b16 %v3049
        %v3178 = vunpack.c.l.b16 %v3050
        %v3179 = vunpack.c.l.b16 %v3051
        %v3180 = vunpack.c.l.b16 %v3052
        %v3181 = vunpack.c.l.b16 %v3053
        %v3182 = vunpack.c.l.b16 %v3054
        %v3183 = vunpack.c.l.b16 %v3055
        %v3184 = vunpack.c.l.b16 %v3056
        %v3185 = vunpack.c.l.b16 %v3057
        %v3186 = vunpack.c.l.b16 %v3058
        %v3187 = vunpack.c.l.b16 %v3059
        %v3188 = vunpack.c.l.b16 %v3060
        %v3189 = vunpack.c.l.b16 %v3061
        %v3190 = vunpack.c.l.b16 %v3062
        %v3191 = vunpack.c.l.b16 %v3063
        %v3192 = vunpack.c.l.b16 %v3064
        %v3193 = vunpack.c.l.b16 %v3065
        %v3194 = vunpack.c.l.b16 %v3066
        %v3195 = vunpack.c.l.b16 %v3067
        %v3196 = vunpack.c.l.b16 %v3068
        %v3197 = vunpack.c.l.b16 %v3069
        %v3198 = vunpack.c.l.b16 %v3070
        %v3199 = vunpack.c.l.b16 %v3071
        %v3200 = vunpack.c.l.b16 %v3072
        %v3201 = vunpack.c.l.b16 %v3073
        %v3202 = vunpack.c.l.b16 %v3074
        %v3203 = vunpack.c.l.b16 %v3075
        %v3204 = vunpack.c.l.b16 %v3076
        %v3205 = vunpack.c.l.b16 %v3077
        %v3206 = vunpack.c.l.b16 %v3078
        %v3207 = vunpack.c.l.b16 %v3079
        %v3208 = vunpack.c.l.b16 %v3080
        %v3209 = vunpack.c.l.b16 %v3081
        %v3210 = vunpack.c.l.b16 %v3082
        %v3211 = vunpack.c.l.b16 %v3083
        %v3212 = vunpack.c.l.b16 %v3084
        %v3213 = vunpack.c.l.b16 %v3085
        %v3214 = vunpack.c.l.b16 %v3086
        %v3215 = vunpack.c.l.b16 %v3087
        %v3216 = vunpack.c.l.b16 %v3088
        %v3217 = vunpack.c.l.b16 %v3089
        %v3218 = vunpack.c.l.b16 %v3090
        %v3219 = vunpack.c.l.b16 %v3091
        %v3220 = vunpack.c.l.b16 %v3092
        %v3221 = vunpack.c.l.b16 %v3093
        %v3222 = vunpack.c.l.b16 %v3094
        %v3223 = vpack.c.b16 %v3160, %v3159
        %v3224 = vpack.c.b16 %v3162, %v3161
        %v3225 = vpack.c.b16 %v3164, %v3163
        %v3226 = vpack.c.b16 %v3166, %v3165
        %v3227 = vpack.c.b16 %v3168, %v3167
        %v3228 = vpack.c.b16 %v3170, %v3169
        %v3229 = vpack.c.b16 %v3172, %v3171
        %v3230 = vpack.c.b16 %v3174, %v3173
        %v3231 = vpack.c.b16 %v3176, %v3175
        %v3232 = vpack.c.b16 %v3178, %v3177
        %v3233 = vpack.c.b16 %v3180, %v3179
        %v3234 = vpack.c.b16 %v3182, %v3181
        %v3235 = vpack.c.b16 %v3184, %v3183
        %v3236 = vpack.c.b16 %v3186, %v3185
        %v3237 = vpack.c.b16 %v3188, %v3187
        %v3238 = vpack.c.b16 %v3190, %v3189
        %v3239 = vpack.c.b16 %v3192, %v3191
        %v3240 = vpack.c.b16 %v3194, %v3193
        %v3241 = vpack.c.b16 %v3196, %v3195
        %v3242 = vpack.c.b16 %v3198, %v3197
        %v3243 = vpack.c.b16 %v3200, %v3199
        %v3244 = vpack.c.b16 %v3202, %v3201
        %v3245 = vpack.c.b16 %v3204, %v3203
        %v3246 = vpack.c.b16 %v3206, %v3205
        %v3247 = vpack.c.b16 %v3208, %v3207
        %v3248 = vpack.c.b16 %v3210, %v3209
        %v3249 = vpack.c.b16 %v3212, %v3211
        %v3250 = vpack.c.b16 %v3214, %v3213
        %v3251 = vpack.c.b16 %v3216, %v3215
        %v3252 = vpack.c.b16 %v3218, %v3217
        %v3253 = vpack.c.b16 %v3220, %v3219
        %v3254 = vpack.c.b16 %v3222, %v3221
        %3287 = vmatprep.subr.bf16.mxu0 0
        %3288 = vmatpush1.bf16.msra.mxu0 %v3230
        %3289 = vmatprep.subr.bf16.mxu0 0
        %3290 = vmatpush1.bf16.msra.mxu0 %v3229
        %3291 = vmatprep.subr.bf16.mxu0 0
        %3292 = vmatpush1.bf16.msra.mxu0 %v3228
        %3293 = vmatprep.subr.bf16.mxu0 0
        %3294 = vmatpush1.bf16.msra.mxu0 %v3227
        %3295 = vmatprep.subr.bf16.mxu0 0
        %3296 = vmatpush1.bf16.msra.mxu0 %v3226
        %3297 = vmatprep.subr.bf16.mxu0 0
        %3298 = vmatpush1.bf16.msra.mxu0 %v3225
        %3299 = vmatprep.subr.bf16.mxu0 0
        %3300 = vmatpush1.bf16.msra.mxu0 %v3224
        %3301 = vmatprep.subr.bf16.mxu0 0
        %3302 = vmatpush1.bf16.msra.mxu0 %v3223
        %3303 = vmatprep.subr.bf16.mxu0 0
        %3304 = vmatpush2.bf16.msra.mxu0 %v3238
        %3305 = vmatprep.subr.bf16.mxu0 0
        %3306 = vmatpush2.bf16.msra.mxu0 %v3237
        %3307 = vmatprep.subr.bf16.mxu0 0
        %3308 = vmatpush2.bf16.msra.mxu0 %v3236
        %3309 = vmatprep.subr.bf16.mxu0 0
        %3310 = vmatpush2.bf16.msra.mxu0 %v3235
        %3311 = vmatprep.subr.bf16.mxu0 0
        %3312 = vmatpush2.bf16.msra.mxu0 %v3234
        %3313 = vmatprep.subr.bf16.mxu0 0
        %3314 = vmatpush2.bf16.msra.mxu0 %v3233
        %3315 = vmatprep.subr.bf16.mxu0 0
        %3316 = vmatpush2.bf16.msra.mxu0 %v3232
        %3317 = vmatprep.subr.bf16.mxu0 0
        %3318 = vmatpush2.bf16.msra.mxu0 %v3231
        %3319 = vmatprep.mubr.bf16.mxu0 %v3000
        %3320 = vmatmul.mubr.bf16.gmra.mxu0 %v2999
        %v3321 = vpop.f32.mrf.mxu0
        %v3322 = vadd.f32 0.0, %v3321
        %v3323 = vpop.f32.mrf.mxu0
        %v3324 = vpop.f32.mrf.mxu0
        %v3325 = vadd.f32 0.0, %v3324
        %v3326 = vpop.f32.mrf.mxu0
        %3327 = vmatprep.mubr.bf16.mxu0 %v3004
        %3328 = vmatmul.mubr.bf16.gmra.mxu0 %v3003
        %v3329 = vpop.f32.mrf.mxu0
        %v3330 = vadd.f32 0.0, %v3329
        %v3331 = vpop.f32.mrf.mxu0
        %v3332 = vpop.f32.mrf.mxu0
        %v3333 = vadd.f32 0.0, %v3332
        %v3334 = vpop.f32.mrf.mxu0
        %3335 = vmatprep.mubr.bf16.mxu0 %v3008
        %3336 = vmatmul.mubr.bf16.gmra.mxu0 %v3007
        %v3337 = vpop.f32.mrf.mxu0
        %v3338 = vadd.f32 0.0, %v3337
        %v3339 = vpop.f32.mrf.mxu0
        %v3340 = vpop.f32.mrf.mxu0
        %v3341 = vadd.f32 0.0, %v3340
        %v3342 = vpop.f32.mrf.mxu0
        %3343 = vmatprep.mubr.bf16.mxu0 %v3012
        %3344 = vmatmul.mubr.bf16.gmra.mxu0 %v3011
        %v3345 = vpop.f32.mrf.mxu0
        %v3346 = vadd.f32 0.0, %v3345
        %v3347 = vpop.f32.mrf.mxu0
        %v3348 = vpop.f32.mrf.mxu0
        %v3349 = vadd.f32 0.0, %v3348
        %v3350 = vpop.f32.mrf.mxu0
        %3351 = vmatprep.mubr.bf16.mxu0 %v3016
        %3352 = vmatmul.mubr.bf16.gmra.mxu0 %v3015
        %v3353 = vpop.f32.mrf.mxu0
        %v3354 = vadd.f32 0.0, %v3353
        %v3355 = vpop.f32.mrf.mxu0
        %v3356 = vpop.f32.mrf.mxu0
        %v3357 = vadd.f32 0.0, %v3356
        %v3358 = vpop.f32.mrf.mxu0
        %3359 = vmatprep.mubr.bf16.mxu0 %v3020
        %3360 = vmatmul.mubr.bf16.gmra.mxu0 %v3019
        %v3361 = vpop.f32.mrf.mxu0
        %v3362 = vadd.f32 0.0, %v3361
        %v3363 = vpop.f32.mrf.mxu0
        %v3364 = vpop.f32.mrf.mxu0
        %v3365 = vadd.f32 0.0, %v3364
        %v3366 = vpop.f32.mrf.mxu0
        %3367 = vmatprep.mubr.bf16.mxu0 %v3024
        %3368 = vmatmul.mubr.bf16.gmra.mxu0 %v3023
        %v3369 = vpop.f32.mrf.mxu0
        %v3370 = vadd.f32 0.0, %v3369
        %v3371 = vpop.f32.mrf.mxu0
        %v3372 = vpop.f32.mrf.mxu0
        %v3373 = vadd.f32 0.0, %v3372
        %v3374 = vpop.f32.mrf.mxu0
        %3375 = vmatprep.mubr.bf16.mxu0 %v3028
        %3376 = vmatmul.mubr.bf16.gmra.mxu0 %v3027
        %v3377 = vpop.f32.mrf.mxu0
        %v3378 = vadd.f32 0.0, %v3377
        %v3379 = vpop.f32.mrf.mxu0
        %v3380 = vpop.f32.mrf.mxu0
        %v3381 = vadd.f32 0.0, %v3380
        %v3382 = vpop.f32.mrf.mxu0
        %3383 = vdwg.mxu0
        %3384 = vmatprep.subr.bf16.mxu0 0
        %3385 = vmatpush1.bf16.msra.mxu0 %v3246
        %3386 = vmatprep.subr.bf16.mxu0 0
        %3387 = vmatpush1.bf16.msra.mxu0 %v3245
        %3388 = vmatprep.subr.bf16.mxu0 0
        %3389 = vmatpush1.bf16.msra.mxu0 %v3244
        %3390 = vmatprep.subr.bf16.mxu0 0
        %3391 = vmatpush1.bf16.msra.mxu0 %v3243
        %3392 = vmatprep.subr.bf16.mxu0 0
        %3393 = vmatpush1.bf16.msra.mxu0 %v3242
        %3394 = vmatprep.subr.bf16.mxu0 0
        %3395 = vmatpush1.bf16.msra.mxu0 %v3241
        %3396 = vmatprep.subr.bf16.mxu0 0
        %3397 = vmatpush1.bf16.msra.mxu0 %v3240
        %3398 = vmatprep.subr.bf16.mxu0 0
        %3399 = vmatpush1.bf16.msra.mxu0 %v3239
        %3400 = vmatprep.subr.bf16.mxu0 0
        %3401 = vmatpush2.bf16.msra.mxu0 %v3254
        %3402 = vmatprep.subr.bf16.mxu0 0
        %3403 = vmatpush2.bf16.msra.mxu0 %v3253
        %3404 = vmatprep.subr.bf16.mxu0 0
        %3405 = vmatpush2.bf16.msra.mxu0 %v3252
        %3406 = vmatprep.subr.bf16.mxu0 0
        %3407 = vmatpush2.bf16.msra.mxu0 %v3251
        %3408 = vmatprep.subr.bf16.mxu0 0
        %3409 = vmatpush2.bf16.msra.mxu0 %v3250
        %3410 = vmatprep.subr.bf16.mxu0 0
        %3411 = vmatpush2.bf16.msra.mxu0 %v3249
        %3412 = vmatprep.subr.bf16.mxu0 0
        %3413 = vmatpush2.bf16.msra.mxu0 %v3248
        %3414 = vmatprep.subr.bf16.mxu0 0
        %3415 = vmatpush2.bf16.msra.mxu0 %v3247
        %3416 = vmatprep.mubr.bf16.mxu0 %v3002
        %3417 = vmatmul.mubr.bf16.gmra.mxu0 %v3001
        %v3418 = vpop.f32.mrf.mxu0
        %v3419 = vadd.f32 %v3322, %v3418
        %v3420 = vpop.f32.mrf.mxu0
        %v3421 = vpop.f32.mrf.mxu0
        %v3422 = vadd.f32 %v3325, %v3421
        %v3423 = vpop.f32.mrf.mxu0
        %3424 = vmatprep.mubr.bf16.mxu0 %v3006
        %3425 = vmatmul.mubr.bf16.gmra.mxu0 %v3005
        %v3426 = vpop.f32.mrf.mxu0
        %v3427 = vadd.f32 %v3330, %v3426
        %v3428 = vpop.f32.mrf.mxu0
        %v3429 = vpop.f32.mrf.mxu0
        %v3430 = vadd.f32 %v3333, %v3429
        %v3431 = vpop.f32.mrf.mxu0
        %3432 = vmatprep.mubr.bf16.mxu0 %v3010
        %3433 = vmatmul.mubr.bf16.gmra.mxu0 %v3009
        %v3434 = vpop.f32.mrf.mxu0
        %v3435 = vadd.f32 %v3338, %v3434
        %v3436 = vpop.f32.mrf.mxu0
        %v3437 = vpop.f32.mrf.mxu0
        %v3438 = vadd.f32 %v3341, %v3437
        %v3439 = vpop.f32.mrf.mxu0
        %3440 = vmatprep.mubr.bf16.mxu0 %v3014
        %3441 = vmatmul.mubr.bf16.gmra.mxu0 %v3013
        %v3442 = vpop.f32.mrf.mxu0
        %v3443 = vadd.f32 %v3346, %v3442
        %v3444 = vpop.f32.mrf.mxu0
        %v3445 = vpop.f32.mrf.mxu0
        %v3446 = vadd.f32 %v3349, %v3445
        %v3447 = vpop.f32.mrf.mxu0
        %3448 = vmatprep.mubr.bf16.mxu0 %v3018
        %3449 = vmatmul.mubr.bf16.gmra.mxu0 %v3017
        %v3450 = vpop.f32.mrf.mxu0
        %v3451 = vadd.f32 %v3354, %v3450
        %v3452 = vpop.f32.mrf.mxu0
        %v3453 = vpop.f32.mrf.mxu0
        %v3454 = vadd.f32 %v3357, %v3453
        %v3455 = vpop.f32.mrf.mxu0
        %3456 = vmatprep.mubr.bf16.mxu0 %v3022
        %3457 = vmatmul.mubr.bf16.gmra.mxu0 %v3021
        %v3458 = vpop.f32.mrf.mxu0
        %v3459 = vadd.f32 %v3362, %v3458
        %v3460 = vpop.f32.mrf.mxu0
        %v3461 = vpop.f32.mrf.mxu0
        %v3462 = vadd.f32 %v3365, %v3461
        %v3463 = vpop.f32.mrf.mxu0
        %3464 = vmatprep.mubr.bf16.mxu0 %v3026
        %3465 = vmatmul.mubr.bf16.gmra.mxu0 %v3025
        %v3466 = vpop.f32.mrf.mxu0
        %v3467 = vadd.f32 %v3370, %v3466
        %v3468 = vpop.f32.mrf.mxu0
        %v3469 = vpop.f32.mrf.mxu0
        %v3470 = vadd.f32 %v3373, %v3469
        %v3471 = vpop.f32.mrf.mxu0
        %3472 = vmatprep.mubr.bf16.mxu0 %v3030
        %3473 = vmatmul.mubr.bf16.gmra.mxu0 %v3029
        %v3474 = vpop.f32.mrf.mxu0
        %v3475 = vadd.f32 %v3378, %v3474
        %v3476 = vpop.f32.mrf.mxu0
        %v3477 = vpop.f32.mrf.mxu0
        %v3478 = vadd.f32 %v3381, %v3477
        %v3479 = vpop.f32.mrf.mxu0
        %3480 = vdwg.mxu0
        %s3481 = sld [smem:[#allocation4]]
        %v3482 = vstv %s3481
        %v3483 = vmul.f32 %v3482, %v3419
        %v3484 = vmul.f32 %v3482, %v3422
        %v3485 = vmul.f32 %v3482, %v3427
        %v3486 = vmul.f32 %v3482, %v3430
        %v3487 = vmul.f32 %v3482, %v3435
        %v3488 = vmul.f32 %v3482, %v3438
        %v3489 = vmul.f32 %v3482, %v3443
        %v3490 = vmul.f32 %v3482, %v3446
        %v3491 = vmul.f32 %v3482, %v3451
        %v3492 = vmul.f32 %v3482, %v3454
        %v3493 = vmul.f32 %v3482, %v3459
        %v3494 = vmul.f32 %v3482, %v3462
        %v3495 = vmul.f32 %v3482, %v3467
        %v3496 = vmul.f32 %v3482, %v3470
        %v3497 = vmul.f32 %v3482, %v3475
        %v3498 = vmul.f32 %v3482, %v3478
        %v3499 = vadd.f32 %v1657, %v3483
        %v3500 = vadd.f32 %v1658, %v3484
        %v3501 = vadd.f32 %v1659, %v3485
        %v3502 = vadd.f32 %v1660, %v3486
        %v3503 = vadd.f32 %v1661, %v3487
        %v3504 = vadd.f32 %v1662, %v3488
        %v3505 = vadd.f32 %v1663, %v3489
        %v3506 = vadd.f32 %v1664, %v3490
        %v3507 = vadd.f32 %v1665, %v3491
        %v3508 = vadd.f32 %v1666, %v3492
        %v3509 = vadd.f32 %v1667, %v3493
        %v3510 = vadd.f32 %v1668, %v3494
        %v3511 = vadd.f32 %v1669, %v3495
        %v3512 = vadd.f32 %v1670, %v3496
        %v3513 = vadd.f32 %v1671, %v3497
        %v3514 = vadd.f32 %v1672, %v3498
        %3515 = vst.msk [vmem:[%s354] sm:$0xff] %vm1682, %v3499
        %3516 = vst.msk [vmem:[%s354 + $0x8] sm:$0xff] %vm1682, %v3500
        %3517 = vst.msk [vmem:[%s354 + $0x10] sm:$0xff] %vm1682, %v3501
        %3518 = vst.msk [vmem:[%s354 + $0x18] sm:$0xff] %vm1682, %v3502
        %3519 = vst.msk [vmem:[%s354 + $0x20] sm:$0xff] %vm1682, %v3503
        %3520 = vst.msk [vmem:[%s354 + $0x28] sm:$0xff] %vm1682, %v3504
        %3521 = vst.msk [vmem:[%s354 + $0x30] sm:$0xff] %vm1682, %v3505
        %3522 = vst.msk [vmem:[%s354 + $0x38] sm:$0xff] %vm1682, %v3506
        %3523 = vst.msk [vmem:[%s354 + $0x40] sm:$0xff] %vm1682, %v3507
        %3524 = vst.msk [vmem:[%s354 + $0x48] sm:$0xff] %vm1682, %v3508
        %3525 = vst.msk [vmem:[%s354 + $0x50] sm:$0xff] %vm1682, %v3509
        %3526 = vst.msk [vmem:[%s354 + $0x58] sm:$0xff] %vm1682, %v3510
        %3527 = vst.msk [vmem:[%s354 + $0x60] sm:$0xff] %vm1682, %v3511
        %3528 = vst.msk [vmem:[%s354 + $0x68] sm:$0xff] %vm1682, %v3512
        %3529 = vst.msk [vmem:[%s354 + $0x70] sm:$0xff] %vm1682, %v3513
        %3530 = vst.msk [vmem:[%s354 + $0x78] sm:$0xff] %vm1682, %v3514
        %s3531 = smul.u32 16, %s30
        %p3532 = scmp.lt.s32.totalorder %s29, 1
        %s3533 = scalar_select %p3532, %s29, 1
        %p3534 = scmp.lt.s32.totalorder %s3531, 63
        %s3535 = scalar_select %p3534, %s3531, 63
        %s3536 = smul.addr %s3533, 64
        %s3537 = sadd.s32 %s3535, %s3536
        %s3538 = smul.addr %s3537, 8
        %s3539 = scalar_lea.vmem %s6, %s3538
        %s3540 = sand.u32 %s206, 1
        %s3541 = scalar_lea.sflag [#allocation7], %s3540
        %s3542 = sand.u32 %s206, 1
        %s3543 = smul.addr %s3542, 512
        %s3544 = scalar_lea.vmem [#allocation11], %s3543
        // Predicated region
        $region61: #{tpu_custom_call.1} parent=43 // pred_check
          %p3545 = pneg %p188
        $region62: #{tpu_custom_call.1} parent=43 // pred_check_branch
          %3547 = sbr.rel (%p3545) target = $region64
        $region63: #{tpu_custom_call.1} parent=43 // pred_region
          %s3548 = smul.u32 16, %s30
        $region64: #{tpu_custom_call.1} parent=43 // pred_fallthru
          _
        // Predicated region
        $region65: #{tpu_custom_call.1} parent=43 // pred_check
          %p3549 = pneg %p216
        $region66: #{tpu_custom_call.1} parent=43 // pred_check_branch
          %3551 = sbr.rel (%p3549) target = $region68
        $region67: #{tpu_custom_call.1} parent=43 // pred_region
          %s3552 = smul.u32 16, %s30
          %s3554 = ssub.s32 8192, 8192
          %3555 = vsyncadd %s3541, %s3554
          %s3556 = smul.addr %s3552, 4
          %s3557 = smul.addr %s29, 256
          %s3558 = sadd.s32 %s3556, %s3557
          %s3559 = smul.addr %s3558, 128
          %s3560 = scalar_lea.hbm %s7, %s3559
          %s3561 = sshll.u32 %s3544, 4
          %s3562 = int_to_ptr.vmem [resolvable:$true] %s3561
          %3567 = dma.vmem_to_hbm [thread:$0]  %s3562, 8192, %s3560, %s3541, 512, 512, 32
        $region68: #{tpu_custom_call.1} parent=43 // pred_fallthru
          _
      $region44: #{tpu_custom_call.1} parent=5 // pred_fallthru
        _
      %p3568 = scmp.le.s32.totalorder 2, %s20
      // Predicated region
      $region69: #{tpu_custom_call.1} parent=5 // pred_check
        %p3569 = pneg %p3568
      $region70: #{tpu_custom_call.1} parent=5 // pred_check_branch
        %3571 = sbr.rel (%p3569) target = $region72
      $region71: #{tpu_custom_call.1} parent=5 // pred_region
        %s3572 = ssub.s32 %s20, 2
        // Predicated region
        $region73: #{tpu_custom_call.1} parent=71 // pred_check
          %p3573 = pneg %p194
        $region74: #{tpu_custom_call.1} parent=71 // pred_check_branch
          %3575 = sbr.rel (%p3573) target = $region76
        $region75: #{tpu_custom_call.1} parent=71 // pred_region
          %s3576 = smul.u32 16, %s32
          %p3577 = scmp.lt.s32.totalorder %s31, 1
          %s3578 = scalar_select %p3577, %s31, 1
          %p3579 = scmp.lt.s32.totalorder %s3576, 63
          %s3580 = scalar_select %p3579, %s3576, 63
          %s3581 = smul.addr %s3578, 64
          %s3582 = sadd.s32 %s3580, %s3581
          %s3583 = smul.addr %s3582, 8
          %s3584 = scalar_lea.vmem %s6, %s3583
        $region76: #{tpu_custom_call.1} parent=71 // pred_fallthru
          _
        // Predicated region
        $region77: #{tpu_custom_call.1} parent=71 // pred_check
          %p3585 = pneg %p222
        $region78: #{tpu_custom_call.1} parent=71 // pred_check_branch
          %3587 = sbr.rel (%p3585) target = $region80
        $region79: #{tpu_custom_call.1} parent=71 // pred_region
          %s3588 = sand.u32 %s207, 1
          %s3589 = scalar_lea.sflag [#allocation7], %s3588
          %s3590 = sand.u32 %s207, 1
          %s3591 = smul.addr %s3590, 512
          %s3592 = scalar_lea.vmem [#allocation11], %s3591
          %3593 = dma.done %s3589, 8192
        $region80: #{tpu_custom_call.1} parent=71 // pred_fallthru
          _
      $region72: #{tpu_custom_call.1} parent=5 // pred_fallthru
        _
    $region6: #{tpu_custom_call.1} parent=1 // loop_footer
      %s24 = sadd.s32 1, %s20
    $region7: #{tpu_custom_call.1} parent=1 // loop_footer_branch
      %19 = sbr.rel target = $region3
    $region8: #{tpu_custom_call.1} parent=1 // loop_exit
      _
    %3594 = vsyncpa [#allocation6], 1
    %s3595 = scalar_lea.sflag [#allocation6], 1
    %3596 = vsyncpa %s3595, 1
    %3597 = vsyncpa [#allocation9], 1
    %3598 = vsyncpa [#allocation7], 1
    %s3599 = scalar_lea.sflag [#allocation7], 1
    %3600 = vsyncpa %s3599, 1

</llo_original>
